<compile_context>
chip_gen: v7x
topology: tpu7x:2x2x1
jax: 0.10.0
libtpu: 0.0.40
codegen_flags: <defaults>
</compile_context>

<pallas_src>
import math
import jax
import jax.numpy as jnp
import numpy as np
from jax.experimental import pallas as pl
from jax.experimental.pallas import tpu as pltpu  # noqa: F401

# ---- model config (small, consistent with the module) ----
BATCH = 2
SEQ = 8
D_MODEL = 32
NUM_HEADS = 4
D_K = D_MODEL // NUM_HEADS
DIM_FF = 64
NUM_LAYERS = 2
LN_EPS = 1e-5                     # PyTorch nn.LayerNorm default
HB = NUM_HEADS * BATCH            # fused (head, batch) attention batch dim
LANES = 128                       # parameter-slab lane width (vreg lane count)


# ---------------------------------------------------------------------------
# Static parameter-slab layout (row-stacked, every param starts 8-row aligned)
# ---------------------------------------------------------------------------
def _build_layer_layout():
    layout = {}
    row = 0

    def add(name, nrows, ncols):
        nonlocal row
        layout[name] = (row, nrows, ncols)
        row += ((nrows + 7) // 8) * 8          # keep every param 8-row aligned

    add("wqkv", D_MODEL, 3 * D_MODEL)          # fused per-head [Q|K|V] weight
    add("bqkv", 1, 3 * D_MODEL)
    add("wo", D_MODEL, D_MODEL)
    add("bo", 1, D_MODEL)
    add("g1", 1, D_MODEL)
    add("be1", 1, D_MODEL)
    add("w1", D_MODEL, DIM_FF)
    add("b1", 1, DIM_FF)
    add("w2", DIM_FF, D_MODEL)
    add("b2", 1, D_MODEL)
    add("g2", 1, D_MODEL)
    add("be2", 1, D_MODEL)
    return layout, row


LAYER_LAYOUT, LAYER_ROWS = _build_layer_layout()
FG_ROW = NUM_LAYERS * LAYER_ROWS
FB_ROW = FG_ROW + 8
TOTAL_ROWS = FB_ROW + 8                         # multiple of 8 by construction


# ---------------------------------------------------------------------------
# In-kernel helpers
# ---------------------------------------------------------------------------
def _param(p_ref, base, name):
    """Static (zero-index-math) slice of the packed parameter slab."""
    r, nr, nc = LAYER_LAYOUT[name]
    return p_ref[base + r: base + r + nr, 0:nc]


def _layernorm(x, gamma, beta):
    # E[x^2] - mu^2: the two reductions are independent -> can overlap on XLU.
    mu = jnp.mean(x, axis=-1, keepdims=True)
    ms = jnp.mean(x * x, axis=-1, keepdims=True)
    var = ms - mu * mu
    return (x - mu) * jax.lax.rsqrt(var + LN_EPS) * gamma + beta


def _softmax_rows(s):
    s = s - jnp.max(s, axis=-1, keepdims=True)     # keep for numerical safety
    e = jnp.exp(s)
    denom = jnp.sum(e, axis=-1, keepdims=True)
    r = pl.reciprocal(denom, approx=True)          # EUP slot (co-issues free)
    r = r * (2.0 - denom * r)                      # one Newton step -> ~f32 exact
    return e * r


def _attention(h2d, p_ref, base):
    """Multi-head self-attention on the (B*S, D) slab.

    QKV: one 2-D MXU push. Scores/context: (head*batch)-batched 3-D dots.
    Output projection: one 2-D MXU push after a small heads->lanes relayout.
    The 1/sqrt(d_k) scale is folded into the Q weights host-side.
    """
    w_qkv = _param(p_ref, base, "wqkv")            # (D, 3D), per-head [Q|K|V]
    b_qkv = _param(p_ref, base, "bqkv")            # (1, 3D)
    qkv = jnp.dot(h2d, w_qkv, preferred_element_type=jnp.float32) + b_qkv  # (B*S, 3D)

    # Small relayout: per-head 3*D_K lane blocks -> leading fused (head, batch)
    # axis (index = h*BATCH + b).
    qkv3 = qkv.reshape(BATCH, SEQ, 3 * D_MODEL)
    qkv_hb = jnp.concatenate(
        [qkv3[:, :, h * 3 * D_K:(h + 1) * 3 * D_K] for h in range(NUM_HEADS)],
        axis=0)                                     # (HB, S, 3*D_K)
    q = qkv_hb[:, :, 0 * D_K:1 * D_K]
    k = qkv_hb[:, :, 1 * D_K:2 * D_K]
    v = qkv_hb[:, :, 2 * D_K:3 * D_K]

    s = jnp.einsum("bqd,bkd->bqk", q, k,
                   preferred_element_type=jnp.float32)              # (HB, S, S)
    attn = _softmax_rows(s)
    ctx = jnp.einsum("bqk,bkd->bqd", attn, v,
                     preferred_element_type=jnp.float32)            # (HB, S, D_K)

    # Relayout back: heads -> lanes (head-major, matching PyTorch's concat),
    # then ONE (B*S, D) @ (D, D) output projection.
    ctx_bs = jnp.concatenate(
        [ctx[h * BATCH:(h + 1) * BATCH] for h in range(NUM_HEADS)], axis=-1)  # (B, S, D)
    ctx2d = ctx_bs.reshape(BATCH * SEQ, D_MODEL)
    wo = _param(p_ref, base, "wo")
    bo = _param(p_ref, base, "bo")
    return jnp.dot(ctx2d, wo, preferred_element_type=jnp.float32) + bo


def encoder_kernel(x_ref, p_ref, o_ref):
    """Entire encoder (all layers + final LayerNorm) in one invocation."""
    h = x_ref[...]                                                  # (B*S, D)
    for l in range(NUM_LAYERS):                                     # static unroll
        base = l * LAYER_ROWS
        # --- multi-head self attention + residual + norm1 ---
        a = _attention(h, p_ref, base)
        h = _layernorm(h + a, _param(p_ref, base, "g1"), _param(p_ref, base, "be1"))
        # --- feed forward + residual + norm2 (dropout = identity, eval mode) ---
        ff = jnp.dot(h, _param(p_ref, base, "w1"),
                     preferred_element_type=jnp.float32)
        ff = jnp.maximum(ff + _param(p_ref, base, "b1"), 0.0)
        ff = jnp.dot(ff, _param(p_ref, base, "w2"),
                     preferred_element_type=jnp.float32)
        ff = ff + _param(p_ref, base, "b2")
        h = _layernorm(h + ff, _param(p_ref, base, "g2"), _param(p_ref, base, "be2"))

    fg = p_ref[FG_ROW:FG_ROW + 1, 0:D_MODEL]
    fb = p_ref[FB_ROW:FB_ROW + 1, 0:D_MODEL]
    o_ref[...] = _layernorm(h, fg, fb)


# ---------------------------------------------------------------------------
# Wrapper
# ---------------------------------------------------------------------------
def encoder_forward(x, param_slab):
    B, S, D = x.shape
    out2d = pl.pallas_call(
        encoder_kernel,
        out_shape=jax.ShapeDtypeStruct((B * S, D), jnp.float32),
        # gridless: the activation (2 KB) + one parameter slab (~230 KB) live
        # in VMEM for the single kernel invocation -> 2 input DMAs total.
    )(x.reshape(B * S, D), param_slab)
    return out2d.reshape(B, S, D)


# ---------------------------------------------------------------------------
# Host-side packing of all parameters into one tile-aligned f32 slab
# ---------------------------------------------------------------------------
def pack_params(layer_params, final_gamma, final_beta):
    slab = np.zeros((TOTAL_ROWS, LANES), np.float32)

    def put(base, name, arr):
        r, nr, nc = LAYER_LAYOUT[name]
        a = np.asarray(arr, np.float32).reshape(nr, nc)
        slab[base + r: base + r + nr, 0:nc] = a

    scale = 1.0 / math.sqrt(D_K)
    for l, p in enumerate(layer_params):
        base = l * LAYER_ROWS
        wq = np.asarray(p["wq"], np.float32) * scale      # fold softmax scale
        wk = np.asarray(p["wk"], np.float32)
        wv = np.asarray(p["wv"], np.float32)
        bq = np.asarray(p["bq"], np.float32).reshape(-1) * scale
        bk = np.asarray(p["bk"], np.float32).reshape(-1)
        bv = np.asarray(p["bv"], np.float32).reshape(-1)

        # Fused per-head column layout: [q_h | k_h | v_h] blocks of 3*D_K cols.
        w_blocks, b_blocks = [], []
        for h in range(NUM_HEADS):
            sl = slice(h * D_K, (h + 1) * D_K)
            w_blocks += [wq[:, sl], wk[:, sl], wv[:, sl]]
            b_blocks += [bq[sl], bk[sl], bv[sl]]
        put(base, "wqkv", np.concatenate(w_blocks, axis=1))          # (D, 3D)
        put(base, "bqkv", np.concatenate(b_blocks, axis=0)[None, :]) # (1, 3D)

        put(base, "wo", p["wo"]); put(base, "bo", p["bo"])
        put(base, "g1", p["g1"]); put(base, "be1", p["be1"])
        put(base, "w1", p["w1"]); put(base, "b1", p["b1"])
        put(base, "w2", p["w2"]); put(base, "b2", p["b2"])
        put(base, "g2", p["g2"]); put(base, "be2", p["be2"])

    slab[FG_ROW, 0:D_MODEL] = np.asarray(final_gamma, np.float32).reshape(-1)
    slab[FB_ROW, 0:D_MODEL] = np.asarray(final_beta, np.float32).reshape(-1)
    return jnp.asarray(slab)


# ---------------------------------------------------------------------------
# Deterministic parameter init (PyTorch-like uniform bounds, fixed key)
# ---------------------------------------------------------------------------
def _linear(key, fan_in, fan_out):
    kw, kb = jax.random.split(key)
    bound = 1.0 / math.sqrt(fan_in)
    # stored already transposed: [in, out]; biases as [1, out] for 2D layout
    w = jax.random.uniform(kw, (fan_in, fan_out), jnp.float32, -bound, bound)
    b = jax.random.uniform(kb, (1, fan_out), jnp.float32, -bound, bound)
    return w, b


def init_params(key):
    layer_params = []
    for _ in range(NUM_LAYERS):
        keys = jax.random.split(key, 7)
        key = keys[0]
        wq, bq = _linear(keys[1], D_MODEL, D_MODEL)
        wk, bk = _linear(keys[2], D_MODEL, D_MODEL)
        wv, bv = _linear(keys[3], D_MODEL, D_MODEL)
        wo, bo = _linear(keys[4], D_MODEL, D_MODEL)
        w1, b1 = _linear(keys[5], D_MODEL, DIM_FF)
        w2, b2 = _linear(keys[6], DIM_FF, D_MODEL)
        layer_params.append(dict(
            wq=wq, bq=bq, wk=wk, bk=bk, wv=wv, bv=bv, wo=wo, bo=bo,
            g1=jnp.ones((1, D_MODEL), jnp.float32),
            be1=jnp.zeros((1, D_MODEL), jnp.float32),
            w1=w1, b1=b1, w2=w2, b2=b2,
            g2=jnp.ones((1, D_MODEL), jnp.float32),
            be2=jnp.zeros((1, D_MODEL), jnp.float32),
        ))
    final_gamma = jnp.ones((1, D_MODEL), jnp.float32)
    final_beta = jnp.zeros((1, D_MODEL), jnp.float32)
    return layer_params, final_gamma, final_beta, key


# ---------------------------------------------------------------------------
# Pure-JAX reference (mirrors the PyTorch forward, eval mode)
# ---------------------------------------------------------------------------
def _layernorm_ref(x, gamma, beta):
    mu = jnp.mean(x, axis=-1, keepdims=True)
    var = jnp.mean((x - mu) ** 2, axis=-1, keepdims=True)
    return (x - mu) / jnp.sqrt(var + LN_EPS) * gamma + beta


def reference_forward(x, layer_params, final_gamma, final_beta):
    def mha(x, p):
        q = x @ p["wq"] + p["bq"]
        k = x @ p["wk"] + p["bk"]
        v = x @ p["wv"] + p["bv"]
        B, S, D = x.shape

        def split(t):
            return t.reshape(B, S, NUM_HEADS, D_K).transpose(0, 2, 1, 3)

        qh, kh, vh = split(q), split(k), split(v)
        scores = jnp.einsum("bhqd,bhkd->bhqk", qh, kh) / math.sqrt(D_K)
        attn = jax.nn.softmax(scores, axis=-1)
        ctx = jnp.einsum("bhqk,bhkd->bhqd", attn, vh)
        ctx = ctx.transpose(0, 2, 1, 3).reshape(B, S, D)
        return ctx @ p["wo"] + p["bo"]

    for p in layer_params:
        a = mha(x, p)
        x = _layernorm_ref(x + a, p["g1"], p["be1"])
        f = jnp.maximum(x @ p["w1"] + p["b1"], 0.0) @ p["w2"] + p["b2"]
        x = _layernorm_ref(x + f, p["g2"], p["be2"])
    return _layernorm_ref(x, final_gamma, final_beta)


if __name__ == "__main__":
    key = jax.random.PRNGKey(0)
    layer_params, fg, fb, key = init_params(key)
    x = jax.random.normal(key, (BATCH, SEQ, D_MODEL), jnp.float32)

    slab = pack_params(layer_params, fg, fb)
    out = encoder_forward(x, slab)
    out = jax.block_until_ready(out)

    ref = reference_forward(x, layer_params, fg, fb)
    np.testing.assert_allclose(np.asarray(out), np.asarray(ref), rtol=1e-4, atol=1e-4)

    print("KERNEL_OK")
</pallas_src>

<mosaic_0001>
module attributes {stable_mosaic.version = 11 : i64} {
  func.func @encoder_kernel(%arg0: memref<16x32xf32, #tpu.memory_space<vmem>>, %arg1: memref<464x128xf32, #tpu.memory_space<vmem>>, %arg2: memref<16x32xf32, #tpu.memory_space<vmem>>) attributes {dimension_semantics = [], scalar_prefetch = 0 : i64, scratch_operands = 0 : i64, tpu.core_type = #tpu.core_type<tc>} {
    %c0 = arith.constant 0 : index
    %c0_0 = arith.constant 0 : index
    %0 = vector.load %arg0[%c0, %c0_0] : memref<16x32xf32, #tpu.memory_space<vmem>>, vector<16x32xf32>
    %c0_1 = arith.constant 0 : index
    %c0_2 = arith.constant 0 : index
    %1 = vector.load %arg1[%c0_1, %c0_2] : memref<464x128xf32, #tpu.memory_space<vmem>>, vector<32x96xf32>
    %c32 = arith.constant 32 : index
    %c0_3 = arith.constant 0 : index
    %2 = vector.load %arg1[%c32, %c0_3] : memref<464x128xf32, #tpu.memory_space<vmem>>, vector<1x96xf32>
    %cst = arith.constant dense<0.000000e+00> : vector<16x96xf32>
    %3 = tpu.matmul %0, %1, %cst {dimension_numbers = #tpu.dot_dimension_numbers<[1], [0], [0], [1], [0, 0, 1, 1], [], []>} : vector<16x32xf32>, vector<32x96xf32>, vector<16x96xf32> -> vector<16x96xf32>
    %4 = vector.broadcast %2 : vector<1x96xf32> to vector<16x96xf32>
    %5 = arith.addf %3, %4 : vector<16x96xf32>
    %6 = vector.shape_cast %5 : vector<16x96xf32> to vector<2x8x96xf32>
    %7 = vector.extract_strided_slice %6 {offsets = [0, 0, 0], sizes = [2, 8, 24], strides = [1, 1, 1]} : vector<2x8x96xf32> to vector<2x8x24xf32>
    %8 = vector.extract_strided_slice %6 {offsets = [0, 0, 24], sizes = [2, 8, 24], strides = [1, 1, 1]} : vector<2x8x96xf32> to vector<2x8x24xf32>
    %9 = vector.extract_strided_slice %6 {offsets = [0, 0, 48], sizes = [2, 8, 24], strides = [1, 1, 1]} : vector<2x8x96xf32> to vector<2x8x24xf32>
    %10 = vector.extract_strided_slice %6 {offsets = [0, 0, 72], sizes = [2, 8, 24], strides = [1, 1, 1]} : vector<2x8x96xf32> to vector<2x8x24xf32>
    %11 = tpu.concatenate %7, %8, %9, %10 in 0 : vector<2x8x24xf32>, vector<2x8x24xf32>, vector<2x8x24xf32>, vector<2x8x24xf32> -> vector<8x8x24xf32>
    %12 = vector.extract_strided_slice %11 {offsets = [0, 0, 0], sizes = [8, 8, 8], strides = [1, 1, 1]} : vector<8x8x24xf32> to vector<8x8x8xf32>
    %13 = vector.extract_strided_slice %11 {offsets = [0, 0, 8], sizes = [8, 8, 8], strides = [1, 1, 1]} : vector<8x8x24xf32> to vector<8x8x8xf32>
    %14 = vector.extract_strided_slice %11 {offsets = [0, 0, 16], sizes = [8, 8, 8], strides = [1, 1, 1]} : vector<8x8x24xf32> to vector<8x8x8xf32>
    "tpu.trace_start"() <{level = 10 : i32, message = "bqd,bkd->bqk"}> : () -> ()
    %cst_4 = arith.constant dense<0.000000e+00> : vector<8x8x8xf32>
    %15 = tpu.matmul %12, %13, %cst_4 {dimension_numbers = #tpu.dot_dimension_numbers<[2], [2], [1], [1], [0, 0, 0, 1, 1, 1], [0], [0]>} : vector<8x8x8xf32>, vector<8x8x8xf32>, vector<8x8x8xf32> -> vector<8x8x8xf32>
    "tpu.trace_stop"() : () -> ()
    %cst_5 = arith.constant dense<0xFF800000> : vector<8x8xf32>
    %16 = vector.multi_reduction <maximumf>, %15, %cst_5 [2] : vector<8x8x8xf32> to vector<8x8xf32>
    %17 = vector.shape_cast %16 : vector<8x8xf32> to vector<8x8x1xf32>
    %18 = vector.broadcast %17 : vector<8x8x1xf32> to vector<8x8x8xf32>
    %19 = arith.subf %15, %18 : vector<8x8x8xf32>
    %20 = math.exp %19 : vector<8x8x8xf32>
    %cst_6 = arith.constant dense<0.000000e+00> : vector<8x8xf32>
    %21 = vector.multi_reduction <add>, %20, %cst_6 [2] : vector<8x8x8xf32> to vector<8x8xf32>
    %22 = vector.shape_cast %21 : vector<8x8xf32> to vector<8x8x1xf32>
    %23 = tpu.reciprocal %22 {approx = true} : vector<8x8x1xf32> -> vector<8x8x1xf32>
    %24 = arith.mulf %22, %23 : vector<8x8x1xf32>
    %cst_7 = arith.constant 2.000000e+00 : f32
    %25 = vector.broadcast %cst_7 : f32 to vector<8x8x1xf32>
    %26 = arith.subf %25, %24 : vector<8x8x1xf32>
    %27 = arith.mulf %23, %26 : vector<8x8x1xf32>
    %28 = vector.broadcast %27 : vector<8x8x1xf32> to vector<8x8x8xf32>
    %29 = arith.mulf %20, %28 : vector<8x8x8xf32>
    "tpu.trace_start"() <{level = 10 : i32, message = "bqk,bkd->bqd"}> : () -> ()
    %cst_8 = arith.constant dense<0.000000e+00> : vector<8x8x8xf32>
    %30 = tpu.matmul %29, %14, %cst_8 {dimension_numbers = #tpu.dot_dimension_numbers<[2], [1], [1], [2], [0, 0, 0, 1, 1, 2], [0], [0]>} : vector<8x8x8xf32>, vector<8x8x8xf32>, vector<8x8x8xf32> -> vector<8x8x8xf32>
    "tpu.trace_stop"() : () -> ()
    %31 = vector.extract_strided_slice %30 {offsets = [0, 0, 0], sizes = [2, 8, 8], strides = [1, 1, 1]} : vector<8x8x8xf32> to vector<2x8x8xf32>
    %32 = vector.extract_strided_slice %30 {offsets = [2, 0, 0], sizes = [2, 8, 8], strides = [1, 1, 1]} : vector<8x8x8xf32> to vector<2x8x8xf32>
    %33 = vector.extract_strided_slice %30 {offsets = [4, 0, 0], sizes = [2, 8, 8], strides = [1, 1, 1]} : vector<8x8x8xf32> to vector<2x8x8xf32>
    %34 = vector.extract_strided_slice %30 {offsets = [6, 0, 0], sizes = [2, 8, 8], strides = [1, 1, 1]} : vector<8x8x8xf32> to vector<2x8x8xf32>
    %35 = tpu.concatenate %31, %32, %33, %34 in 2 : vector<2x8x8xf32>, vector<2x8x8xf32>, vector<2x8x8xf32>, vector<2x8x8xf32> -> vector<2x8x32xf32>
    %36 = vector.shape_cast %35 : vector<2x8x32xf32> to vector<16x32xf32>
    %c40 = arith.constant 40 : index
    %c0_9 = arith.constant 0 : index
    %37 = vector.load %arg1[%c40, %c0_9] : memref<464x128xf32, #tpu.memory_space<vmem>>, vector<32x32xf32>
    %c72 = arith.constant 72 : index
    %c0_10 = arith.constant 0 : index
    %38 = vector.load %arg1[%c72, %c0_10] : memref<464x128xf32, #tpu.memory_space<vmem>>, vector<1x32xf32>
    %cst_11 = arith.constant dense<0.000000e+00> : vector<16x32xf32>
    %39 = tpu.matmul %36, %37, %cst_11 {dimension_numbers = #tpu.dot_dimension_numbers<[1], [0], [0], [1], [0, 0, 1, 1], [], []>} : vector<16x32xf32>, vector<32x32xf32>, vector<16x32xf32> -> vector<16x32xf32>
    %40 = vector.broadcast %38 : vector<1x32xf32> to vector<16x32xf32>
    %41 = arith.addf %39, %40 : vector<16x32xf32>
    %42 = arith.addf %0, %41 : vector<16x32xf32>
    %c80 = arith.constant 80 : index
    %c0_12 = arith.constant 0 : index
    %43 = vector.load %arg1[%c80, %c0_12] : memref<464x128xf32, #tpu.memory_space<vmem>>, vector<1x32xf32>
    %c88 = arith.constant 88 : index
    %c0_13 = arith.constant 0 : index
    %44 = vector.load %arg1[%c88, %c0_13] : memref<464x128xf32, #tpu.memory_space<vmem>>, vector<1x32xf32>
    %cst_14 = arith.constant dense<0.000000e+00> : vector<16xf32>
    %45 = vector.multi_reduction <add>, %42, %cst_14 [1] : vector<16x32xf32> to vector<16xf32>
    %46 = vector.shape_cast %45 : vector<16xf32> to vector<16x1xf32>
    %cst_15 = arith.constant 3.200000e+01 : f32
    %47 = vector.broadcast %cst_15 : f32 to vector<16x1xf32>
    %48 = arith.divf %46, %47 : vector<16x1xf32>
    %49 = arith.mulf %42, %42 : vector<16x32xf32>
    %cst_16 = arith.constant dense<0.000000e+00> : vector<16xf32>
    %50 = vector.multi_reduction <add>, %49, %cst_16 [1] : vector<16x32xf32> to vector<16xf32>
    %51 = vector.shape_cast %50 : vector<16xf32> to vector<16x1xf32>
    %cst_17 = arith.constant 3.200000e+01 : f32
    %52 = vector.broadcast %cst_17 : f32 to vector<16x1xf32>
    %53 = arith.divf %51, %52 : vector<16x1xf32>
    %54 = arith.mulf %48, %48 : vector<16x1xf32>
    %55 = arith.subf %53, %54 : vector<16x1xf32>
    %56 = vector.broadcast %48 : vector<16x1xf32> to vector<16x32xf32>
    %57 = arith.subf %42, %56 : vector<16x32xf32>
    %cst_18 = arith.constant 9.99999974E-6 : f32
    %58 = vector.broadcast %cst_18 : f32 to vector<16x1xf32>
    %59 = arith.addf %55, %58 : vector<16x1xf32>
    %60 = math.rsqrt %59 : vector<16x1xf32>
    %61 = vector.broadcast %60 : vector<16x1xf32> to vector<16x32xf32>
    %62 = arith.mulf %57, %61 : vector<16x32xf32>
    %63 = vector.broadcast %43 : vector<1x32xf32> to vector<16x32xf32>
    %64 = arith.mulf %62, %63 : vector<16x32xf32>
    %65 = vector.broadcast %44 : vector<1x32xf32> to vector<16x32xf32>
    %66 = arith.addf %64, %65 : vector<16x32xf32>
    %c96 = arith.constant 96 : index
    %c0_19 = arith.constant 0 : index
    %67 = vector.load %arg1[%c96, %c0_19] : memref<464x128xf32, #tpu.memory_space<vmem>>, vector<32x64xf32>
    %cst_20 = arith.constant dense<0.000000e+00> : vector<16x64xf32>
    %68 = tpu.matmul %66, %67, %cst_20 {dimension_numbers = #tpu.dot_dimension_numbers<[1], [0], [0], [1], [0, 0, 1, 1], [], []>} : vector<16x32xf32>, vector<32x64xf32>, vector<16x64xf32> -> vector<16x64xf32>
    %c128 = arith.constant 128 : index
    %c0_21 = arith.constant 0 : index
    %69 = vector.load %arg1[%c128, %c0_21] : memref<464x128xf32, #tpu.memory_space<vmem>>, vector<1x64xf32>
    %70 = vector.broadcast %69 : vector<1x64xf32> to vector<16x64xf32>
    %71 = arith.addf %68, %70 : vector<16x64xf32>
    %cst_22 = arith.constant 0.000000e+00 : f32
    %72 = vector.broadcast %cst_22 : f32 to vector<16x64xf32>
    %73 = arith.maximumf %71, %72 : vector<16x64xf32>
    %c136 = arith.constant 136 : index
    %c0_23 = arith.constant 0 : index
    %74 = vector.load %arg1[%c136, %c0_23] : memref<464x128xf32, #tpu.memory_space<vmem>>, vector<64x32xf32>
    %cst_24 = arith.constant dense<0.000000e+00> : vector<16x32xf32>
    %75 = tpu.matmul %73, %74, %cst_24 {dimension_numbers = #tpu.dot_dimension_numbers<[1], [0], [0], [1], [0, 0, 1, 1], [], []>} : vector<16x64xf32>, vector<64x32xf32>, vector<16x32xf32> -> vector<16x32xf32>
    %c200 = arith.constant 200 : index
    %c0_25 = arith.constant 0 : index
    %76 = vector.load %arg1[%c200, %c0_25] : memref<464x128xf32, #tpu.memory_space<vmem>>, vector<1x32xf32>
    %77 = vector.broadcast %76 : vector<1x32xf32> to vector<16x32xf32>
    %78 = arith.addf %75, %77 : vector<16x32xf32>
    %79 = arith.addf %66, %78 : vector<16x32xf32>
    %c208 = arith.constant 208 : index
    %c0_26 = arith.constant 0 : index
    %80 = vector.load %arg1[%c208, %c0_26] : memref<464x128xf32, #tpu.memory_space<vmem>>, vector<1x32xf32>
    %c216 = arith.constant 216 : index
    %c0_27 = arith.constant 0 : index
    %81 = vector.load %arg1[%c216, %c0_27] : memref<464x128xf32, #tpu.memory_space<vmem>>, vector<1x32xf32>
    %cst_28 = arith.constant dense<0.000000e+00> : vector<16xf32>
    %82 = vector.multi_reduction <add>, %79, %cst_28 [1] : vector<16x32xf32> to vector<16xf32>
    %83 = vector.shape_cast %82 : vector<16xf32> to vector<16x1xf32>
    %cst_29 = arith.constant 3.200000e+01 : f32
    %84 = vector.broadcast %cst_29 : f32 to vector<16x1xf32>
    %85 = arith.divf %83, %84 : vector<16x1xf32>
    %86 = arith.mulf %79, %79 : vector<16x32xf32>
    %cst_30 = arith.constant dense<0.000000e+00> : vector<16xf32>
    %87 = vector.multi_reduction <add>, %86, %cst_30 [1] : vector<16x32xf32> to vector<16xf32>
    %88 = vector.shape_cast %87 : vector<16xf32> to vector<16x1xf32>
    %cst_31 = arith.constant 3.200000e+01 : f32
    %89 = vector.broadcast %cst_31 : f32 to vector<16x1xf32>
    %90 = arith.divf %88, %89 : vector<16x1xf32>
    %91 = arith.mulf %85, %85 : vector<16x1xf32>
    %92 = arith.subf %90, %91 : vector<16x1xf32>
    %93 = vector.broadcast %85 : vector<16x1xf32> to vector<16x32xf32>
    %94 = arith.subf %79, %93 : vector<16x32xf32>
    %cst_32 = arith.constant 9.99999974E-6 : f32
    %95 = vector.broadcast %cst_32 : f32 to vector<16x1xf32>
    %96 = arith.addf %92, %95 : vector<16x1xf32>
    %97 = math.rsqrt %96 : vector<16x1xf32>
    %98 = vector.broadcast %97 : vector<16x1xf32> to vector<16x32xf32>
    %99 = arith.mulf %94, %98 : vector<16x32xf32>
    %100 = vector.broadcast %80 : vector<1x32xf32> to vector<16x32xf32>
    %101 = arith.mulf %99, %100 : vector<16x32xf32>
    %102 = vector.broadcast %81 : vector<1x32xf32> to vector<16x32xf32>
    %103 = arith.addf %101, %102 : vector<16x32xf32>
    %c224 = arith.constant 224 : index
    %c0_33 = arith.constant 0 : index
    %104 = vector.load %arg1[%c224, %c0_33] : memref<464x128xf32, #tpu.memory_space<vmem>>, vector<32x96xf32>
    %c256 = arith.constant 256 : index
    %c0_34 = arith.constant 0 : index
    %105 = vector.load %arg1[%c256, %c0_34] : memref<464x128xf32, #tpu.memory_space<vmem>>, vector<1x96xf32>
    %cst_35 = arith.constant dense<0.000000e+00> : vector<16x96xf32>
    %106 = tpu.matmul %103, %104, %cst_35 {dimension_numbers = #tpu.dot_dimension_numbers<[1], [0], [0], [1], [0, 0, 1, 1], [], []>} : vector<16x32xf32>, vector<32x96xf32>, vector<16x96xf32> -> vector<16x96xf32>
    %107 = vector.broadcast %105 : vector<1x96xf32> to vector<16x96xf32>
    %108 = arith.addf %106, %107 : vector<16x96xf32>
    %109 = vector.shape_cast %108 : vector<16x96xf32> to vector<2x8x96xf32>
    %110 = vector.extract_strided_slice %109 {offsets = [0, 0, 0], sizes = [2, 8, 24], strides = [1, 1, 1]} : vector<2x8x96xf32> to vector<2x8x24xf32>
    %111 = vector.extract_strided_slice %109 {offsets = [0, 0, 24], sizes = [2, 8, 24], strides = [1, 1, 1]} : vector<2x8x96xf32> to vector<2x8x24xf32>
    %112 = vector.extract_strided_slice %109 {offsets = [0, 0, 48], sizes = [2, 8, 24], strides = [1, 1, 1]} : vector<2x8x96xf32> to vector<2x8x24xf32>
    %113 = vector.extract_strided_slice %109 {offsets = [0, 0, 72], sizes = [2, 8, 24], strides = [1, 1, 1]} : vector<2x8x96xf32> to vector<2x8x24xf32>
    %114 = tpu.concatenate %110, %111, %112, %113 in 0 : vector<2x8x24xf32>, vector<2x8x24xf32>, vector<2x8x24xf32>, vector<2x8x24xf32> -> vector<8x8x24xf32>
    %115 = vector.extract_strided_slice %114 {offsets = [0, 0, 0], sizes = [8, 8, 8], strides = [1, 1, 1]} : vector<8x8x24xf32> to vector<8x8x8xf32>
    %116 = vector.extract_strided_slice %114 {offsets = [0, 0, 8], sizes = [8, 8, 8], strides = [1, 1, 1]} : vector<8x8x24xf32> to vector<8x8x8xf32>
    %117 = vector.extract_strided_slice %114 {offsets = [0, 0, 16], sizes = [8, 8, 8], strides = [1, 1, 1]} : vector<8x8x24xf32> to vector<8x8x8xf32>
    "tpu.trace_start"() <{level = 10 : i32, message = "bqd,bkd->bqk"}> : () -> ()
    %cst_36 = arith.constant dense<0.000000e+00> : vector<8x8x8xf32>
    %118 = tpu.matmul %115, %116, %cst_36 {dimension_numbers = #tpu.dot_dimension_numbers<[2], [2], [1], [1], [0, 0, 0, 1, 1, 1], [0], [0]>} : vector<8x8x8xf32>, vector<8x8x8xf32>, vector<8x8x8xf32> -> vector<8x8x8xf32>
    "tpu.trace_stop"() : () -> ()
    %cst_37 = arith.constant dense<0xFF800000> : vector<8x8xf32>
    %119 = vector.multi_reduction <maximumf>, %118, %cst_37 [2] : vector<8x8x8xf32> to vector<8x8xf32>
    %120 = vector.shape_cast %119 : vector<8x8xf32> to vector<8x8x1xf32>
    %121 = vector.broadcast %120 : vector<8x8x1xf32> to vector<8x8x8xf32>
    %122 = arith.subf %118, %121 : vector<8x8x8xf32>
    %123 = math.exp %122 : vector<8x8x8xf32>
    %cst_38 = arith.constant dense<0.000000e+00> : vector<8x8xf32>
    %124 = vector.multi_reduction <add>, %123, %cst_38 [2] : vector<8x8x8xf32> to vector<8x8xf32>
    %125 = vector.shape_cast %124 : vector<8x8xf32> to vector<8x8x1xf32>
    %126 = tpu.reciprocal %125 {approx = true} : vector<8x8x1xf32> -> vector<8x8x1xf32>
    %127 = arith.mulf %125, %126 : vector<8x8x1xf32>
    %cst_39 = arith.constant 2.000000e+00 : f32
    %128 = vector.broadcast %cst_39 : f32 to vector<8x8x1xf32>
    %129 = arith.subf %128, %127 : vector<8x8x1xf32>
    %130 = arith.mulf %126, %129 : vector<8x8x1xf32>
    %131 = vector.broadcast %130 : vector<8x8x1xf32> to vector<8x8x8xf32>
    %132 = arith.mulf %123, %131 : vector<8x8x8xf32>
    "tpu.trace_start"() <{level = 10 : i32, message = "bqk,bkd->bqd"}> : () -> ()
    %cst_40 = arith.constant dense<0.000000e+00> : vector<8x8x8xf32>
    %133 = tpu.matmul %132, %117, %cst_40 {dimension_numbers = #tpu.dot_dimension_numbers<[2], [1], [1], [2], [0, 0, 0, 1, 1, 2], [0], [0]>} : vector<8x8x8xf32>, vector<8x8x8xf32>, vector<8x8x8xf32> -> vector<8x8x8xf32>
    "tpu.trace_stop"() : () -> ()
    %134 = vector.extract_strided_slice %133 {offsets = [0, 0, 0], sizes = [2, 8, 8], strides = [1, 1, 1]} : vector<8x8x8xf32> to vector<2x8x8xf32>
    %135 = vector.extract_strided_slice %133 {offsets = [2, 0, 0], sizes = [2, 8, 8], strides = [1, 1, 1]} : vector<8x8x8xf32> to vector<2x8x8xf32>
    %136 = vector.extract_strided_slice %133 {offsets = [4, 0, 0], sizes = [2, 8, 8], strides = [1, 1, 1]} : vector<8x8x8xf32> to vector<2x8x8xf32>
    %137 = vector.extract_strided_slice %133 {offsets = [6, 0, 0], sizes = [2, 8, 8], strides = [1, 1, 1]} : vector<8x8x8xf32> to vector<2x8x8xf32>
    %138 = tpu.concatenate %134, %135, %136, %137 in 2 : vector<2x8x8xf32>, vector<2x8x8xf32>, vector<2x8x8xf32>, vector<2x8x8xf32> -> vector<2x8x32xf32>
    %139 = vector.shape_cast %138 : vector<2x8x32xf32> to vector<16x32xf32>
    %c264 = arith.constant 264 : index
    %c0_41 = arith.constant 0 : index
    %140 = vector.load %arg1[%c264, %c0_41] : memref<464x128xf32, #tpu.memory_space<vmem>>, vector<32x32xf32>
    %c296 = arith.constant 296 : index
    %c0_42 = arith.constant 0 : index
    %141 = vector.load %arg1[%c296, %c0_42] : memref<464x128xf32, #tpu.memory_space<vmem>>, vector<1x32xf32>
    %cst_43 = arith.constant dense<0.000000e+00> : vector<16x32xf32>
    %142 = tpu.matmul %139, %140, %cst_43 {dimension_numbers = #tpu.dot_dimension_numbers<[1], [0], [0], [1], [0, 0, 1, 1], [], []>} : vector<16x32xf32>, vector<32x32xf32>, vector<16x32xf32> -> vector<16x32xf32>
    %143 = vector.broadcast %141 : vector<1x32xf32> to vector<16x32xf32>
    %144 = arith.addf %142, %143 : vector<16x32xf32>
    %145 = arith.addf %103, %144 : vector<16x32xf32>
    %c304 = arith.constant 304 : index
    %c0_44 = arith.constant 0 : index
    %146 = vector.load %arg1[%c304, %c0_44] : memref<464x128xf32, #tpu.memory_space<vmem>>, vector<1x32xf32>
    %c312 = arith.constant 312 : index
    %c0_45 = arith.constant 0 : index
    %147 = vector.load %arg1[%c312, %c0_45] : memref<464x128xf32, #tpu.memory_space<vmem>>, vector<1x32xf32>
    %cst_46 = arith.constant dense<0.000000e+00> : vector<16xf32>
    %148 = vector.multi_reduction <add>, %145, %cst_46 [1] : vector<16x32xf32> to vector<16xf32>
    %149 = vector.shape_cast %148 : vector<16xf32> to vector<16x1xf32>
    %cst_47 = arith.constant 3.200000e+01 : f32
    %150 = vector.broadcast %cst_47 : f32 to vector<16x1xf32>
    %151 = arith.divf %149, %150 : vector<16x1xf32>
    %152 = arith.mulf %145, %145 : vector<16x32xf32>
    %cst_48 = arith.constant dense<0.000000e+00> : vector<16xf32>
    %153 = vector.multi_reduction <add>, %152, %cst_48 [1] : vector<16x32xf32> to vector<16xf32>
    %154 = vector.shape_cast %153 : vector<16xf32> to vector<16x1xf32>
    %cst_49 = arith.constant 3.200000e+01 : f32
    %155 = vector.broadcast %cst_49 : f32 to vector<16x1xf32>
    %156 = arith.divf %154, %155 : vector<16x1xf32>
    %157 = arith.mulf %151, %151 : vector<16x1xf32>
    %158 = arith.subf %156, %157 : vector<16x1xf32>
    %159 = vector.broadcast %151 : vector<16x1xf32> to vector<16x32xf32>
    %160 = arith.subf %145, %159 : vector<16x32xf32>
    %cst_50 = arith.constant 9.99999974E-6 : f32
    %161 = vector.broadcast %cst_50 : f32 to vector<16x1xf32>
    %162 = arith.addf %158, %161 : vector<16x1xf32>
    %163 = math.rsqrt %162 : vector<16x1xf32>
    %164 = vector.broadcast %163 : vector<16x1xf32> to vector<16x32xf32>
    %165 = arith.mulf %160, %164 : vector<16x32xf32>
    %166 = vector.broadcast %146 : vector<1x32xf32> to vector<16x32xf32>
    %167 = arith.mulf %165, %166 : vector<16x32xf32>
    %168 = vector.broadcast %147 : vector<1x32xf32> to vector<16x32xf32>
    %169 = arith.addf %167, %168 : vector<16x32xf32>
    %c320 = arith.constant 320 : index
    %c0_51 = arith.constant 0 : index
    %170 = vector.load %arg1[%c320, %c0_51] : memref<464x128xf32, #tpu.memory_space<vmem>>, vector<32x64xf32>
    %cst_52 = arith.constant dense<0.000000e+00> : vector<16x64xf32>
    %171 = tpu.matmul %169, %170, %cst_52 {dimension_numbers = #tpu.dot_dimension_numbers<[1], [0], [0], [1], [0, 0, 1, 1], [], []>} : vector<16x32xf32>, vector<32x64xf32>, vector<16x64xf32> -> vector<16x64xf32>
    %c352 = arith.constant 352 : index
    %c0_53 = arith.constant 0 : index
    %172 = vector.load %arg1[%c352, %c0_53] : memref<464x128xf32, #tpu.memory_space<vmem>>, vector<1x64xf32>
    %173 = vector.broadcast %172 : vector<1x64xf32> to vector<16x64xf32>
    %174 = arith.addf %171, %173 : vector<16x64xf32>
    %cst_54 = arith.constant 0.000000e+00 : f32
    %175 = vector.broadcast %cst_54 : f32 to vector<16x64xf32>
    %176 = arith.maximumf %174, %175 : vector<16x64xf32>
    %c360 = arith.constant 360 : index
    %c0_55 = arith.constant 0 : index
    %177 = vector.load %arg1[%c360, %c0_55] : memref<464x128xf32, #tpu.memory_space<vmem>>, vector<64x32xf32>
    %cst_56 = arith.constant dense<0.000000e+00> : vector<16x32xf32>
    %178 = tpu.matmul %176, %177, %cst_56 {dimension_numbers = #tpu.dot_dimension_numbers<[1], [0], [0], [1], [0, 0, 1, 1], [], []>} : vector<16x64xf32>, vector<64x32xf32>, vector<16x32xf32> -> vector<16x32xf32>
    %c424 = arith.constant 424 : index
    %c0_57 = arith.constant 0 : index
    %179 = vector.load %arg1[%c424, %c0_57] : memref<464x128xf32, #tpu.memory_space<vmem>>, vector<1x32xf32>
    %180 = vector.broadcast %179 : vector<1x32xf32> to vector<16x32xf32>
    %181 = arith.addf %178, %180 : vector<16x32xf32>
    %182 = arith.addf %169, %181 : vector<16x32xf32>
    %c432 = arith.constant 432 : index
    %c0_58 = arith.constant 0 : index
    %183 = vector.load %arg1[%c432, %c0_58] : memref<464x128xf32, #tpu.memory_space<vmem>>, vector<1x32xf32>
    %c440 = arith.constant 440 : index
    %c0_59 = arith.constant 0 : index
    %184 = vector.load %arg1[%c440, %c0_59] : memref<464x128xf32, #tpu.memory_space<vmem>>, vector<1x32xf32>
    %cst_60 = arith.constant dense<0.000000e+00> : vector<16xf32>
    %185 = vector.multi_reduction <add>, %182, %cst_60 [1] : vector<16x32xf32> to vector<16xf32>
    %186 = vector.shape_cast %185 : vector<16xf32> to vector<16x1xf32>
    %cst_61 = arith.constant 3.200000e+01 : f32
    %187 = vector.broadcast %cst_61 : f32 to vector<16x1xf32>
    %188 = arith.divf %186, %187 : vector<16x1xf32>
    %189 = arith.mulf %182, %182 : vector<16x32xf32>
    %cst_62 = arith.constant dense<0.000000e+00> : vector<16xf32>
    %190 = vector.multi_reduction <add>, %189, %cst_62 [1] : vector<16x32xf32> to vector<16xf32>
    %191 = vector.shape_cast %190 : vector<16xf32> to vector<16x1xf32>
    %cst_63 = arith.constant 3.200000e+01 : f32
    %192 = vector.broadcast %cst_63 : f32 to vector<16x1xf32>
    %193 = arith.divf %191, %192 : vector<16x1xf32>
    %194 = arith.mulf %188, %188 : vector<16x1xf32>
    %195 = arith.subf %193, %194 : vector<16x1xf32>
    %196 = vector.broadcast %188 : vector<16x1xf32> to vector<16x32xf32>
    %197 = arith.subf %182, %196 : vector<16x32xf32>
    %cst_64 = arith.constant 9.99999974E-6 : f32
    %198 = vector.broadcast %cst_64 : f32 to vector<16x1xf32>
    %199 = arith.addf %195, %198 : vector<16x1xf32>
    %200 = math.rsqrt %199 : vector<16x1xf32>
    %201 = vector.broadcast %200 : vector<16x1xf32> to vector<16x32xf32>
    %202 = arith.mulf %197, %201 : vector<16x32xf32>
    %203 = vector.broadcast %183 : vector<1x32xf32> to vector<16x32xf32>
    %204 = arith.mulf %202, %203 : vector<16x32xf32>
    %205 = vector.broadcast %184 : vector<1x32xf32> to vector<16x32xf32>
    %206 = arith.addf %204, %205 : vector<16x32xf32>
    %c448 = arith.constant 448 : index
    %c0_65 = arith.constant 0 : index
    %207 = vector.load %arg1[%c448, %c0_65] : memref<464x128xf32, #tpu.memory_space<vmem>>, vector<1x32xf32>
    %c456 = arith.constant 456 : index
    %c0_66 = arith.constant 0 : index
    %208 = vector.load %arg1[%c456, %c0_66] : memref<464x128xf32, #tpu.memory_space<vmem>>, vector<1x32xf32>
    %cst_67 = arith.constant dense<0.000000e+00> : vector<16xf32>
    %209 = vector.multi_reduction <add>, %206, %cst_67 [1] : vector<16x32xf32> to vector<16xf32>
    %210 = vector.shape_cast %209 : vector<16xf32> to vector<16x1xf32>
    %cst_68 = arith.constant 3.200000e+01 : f32
    %211 = vector.broadcast %cst_68 : f32 to vector<16x1xf32>
    %212 = arith.divf %210, %211 : vector<16x1xf32>
    %213 = arith.mulf %206, %206 : vector<16x32xf32>
    %cst_69 = arith.constant dense<0.000000e+00> : vector<16xf32>
    %214 = vector.multi_reduction <add>, %213, %cst_69 [1] : vector<16x32xf32> to vector<16xf32>
    %215 = vector.shape_cast %214 : vector<16xf32> to vector<16x1xf32>
    %cst_70 = arith.constant 3.200000e+01 : f32
    %216 = vector.broadcast %cst_70 : f32 to vector<16x1xf32>
    %217 = arith.divf %215, %216 : vector<16x1xf32>
    %218 = arith.mulf %212, %212 : vector<16x1xf32>
    %219 = arith.subf %217, %218 : vector<16x1xf32>
    %220 = vector.broadcast %212 : vector<16x1xf32> to vector<16x32xf32>
    %221 = arith.subf %206, %220 : vector<16x32xf32>
    %cst_71 = arith.constant 9.99999974E-6 : f32
    %222 = vector.broadcast %cst_71 : f32 to vector<16x1xf32>
    %223 = arith.addf %219, %222 : vector<16x1xf32>
    %224 = math.rsqrt %223 : vector<16x1xf32>
    %225 = vector.broadcast %224 : vector<16x1xf32> to vector<16x32xf32>
    %226 = arith.mulf %221, %225 : vector<16x32xf32>
    %227 = vector.broadcast %207 : vector<1x32xf32> to vector<16x32xf32>
    %228 = arith.mulf %226, %227 : vector<16x32xf32>
    %229 = vector.broadcast %208 : vector<1x32xf32> to vector<16x32xf32>
    %230 = arith.addf %228, %229 : vector<16x32xf32>
    %c0_72 = arith.constant 0 : index
    %c0_73 = arith.constant 0 : index
    %231 = vector.load %arg2[%c0_72, %c0_73] : memref<16x32xf32, #tpu.memory_space<vmem>>, vector<16x32xf32>
    tpu.vector_store %arg2[%c0_72, %c0_73], %230 {strides = array<i32>} : memref<16x32xf32, #tpu.memory_space<vmem>>, vector<16x32xf32>,
    return
  }
}

</mosaic_0001>

<llo_original>
// kernel: tpu_custom_call.1
$region0: #{tpu_custom_call.1}
  #allocation0 [shape = 'u32[]', space=smem, size = 0x4, offset = 0x4, fixed_abs, tag = 'smem constant byte address 0x4 - core index']
  #allocation1 [shape = 'u32[144,128]{1,0:T(1,128)}', space=vmem, size = 0x12000, scoped, tag = 'internal scratch']
  %s0 = inlined_call_operand.hbm [shape: f32[16,32], index: 0, kind: input, shape index: {}]
  %s1 = inlined_call_operand.hbm [shape: f32[464,128], index: 1, kind: input, shape index: {}]
  %s2 = inlined_call_operand.hbm [shape: f32[16,32], index: 2, kind: output, shape index: {}]
  %s3 = sld [smem:[#allocation0]]
  $region26: #{tpu_custom_call.1} parent=0
    _
  %s5 = ssub.s32 1, %s3
  %s6 = scalar_select 0, %s5, %s3
  $region1: #{tpu_custom_call.1} parent=0
    #allocation2 [shape = 'u8[8192]{0}', space=vmem, size = 0x2000, scoped, tag = 'input window, operand 0, single buffered']
    #allocation3 [shape = 's32[1]{0}', space=sflag, size = 0x4, scoped, tag = 'scoped memory for tpu_custom_call.1']
    #allocation4 [shape = 's32[1]{0}', space=sflag, size = 0x4, scoped, tag = 'scoped memory for tpu_custom_call.1']
    #allocation5 [shape = 'u8[237568]{0}', space=vmem, size = 0x3a000, scoped, tag = 'input window, operand 1, single buffered']
    #allocation6 [shape = 's32[1]{0}', space=sflag, size = 0x4, scoped, tag = 'scoped memory for tpu_custom_call.1']
    #allocation7 [shape = 'u8[8192]{0}', space=vmem, size = 0x2000, scoped, tag = 'output window, operand 0, single buffered']
    %7 = vsyncpa [#allocation3], 0
    %8 = vsyncpa [#allocation6], 0
    %9 = vsyncpa [#allocation4], 0
    // Predicated region
    $region2: #{tpu_custom_call.1} parent=1 // pred_check
      _
    $region3: #{tpu_custom_call.1} parent=1 // pred_check_branch
      %11 = sbr.rel (0) target = $region5
    $region4: #{tpu_custom_call.1} parent=1 // pred_region
      %s13 = ssub.s32 256, 256
      %14 = vsyncadd [#allocation3], %s13
      %s15 = sshll.u32 [#allocation2], 4
      %s16 = int_to_ptr.vmem [resolvable:$true] %s15
      %21 = dma.hbm_to_vmem [thread:$0]  %s0, 256, %s16, [#allocation3], 128, 128, 8
    $region5: #{tpu_custom_call.1} parent=1 // pred_fallthru
      _
    // Predicated region
    $region6: #{tpu_custom_call.1} parent=1 // pred_check
      _
    $region7: #{tpu_custom_call.1} parent=1 // pred_check_branch
      %23 = sbr.rel (0) target = $region9
    $region8: #{tpu_custom_call.1} parent=1 // pred_region
      %s25 = ssub.s32 7424, 7424
      %26 = vsyncadd [#allocation6], %s25
      %s27 = sshll.u32 [#allocation5], 4
      %s28 = int_to_ptr.vmem [resolvable:$true] %s27
      %33 = dma.hbm_to_vmem [thread:$0]  %s1, 7424, %s28, [#allocation6], 128, 128, 8
    $region9: #{tpu_custom_call.1} parent=1 // pred_fallthru
      _
    // Predicated region
    $region10: #{tpu_custom_call.1} parent=1 // pred_check
      _
    $region11: #{tpu_custom_call.1} parent=1 // pred_check_branch
      %35 = sbr.rel (0) target = $region13
    $region12: #{tpu_custom_call.1} parent=1 // pred_region
      %36 = dma.done [#allocation3], 256
    $region13: #{tpu_custom_call.1} parent=1 // pred_fallthru
      _
    // Predicated region
    $region14: #{tpu_custom_call.1} parent=1 // pred_check
      _
    $region15: #{tpu_custom_call.1} parent=1 // pred_check_branch
      %38 = sbr.rel (0) target = $region17
    $region16: #{tpu_custom_call.1} parent=1 // pred_region
      %39 = dma.done [#allocation6], 7424
    $region17: #{tpu_custom_call.1} parent=1 // pred_fallthru
      _
    %v40 = vld [vmem:[#allocation2] sm:$0xff]
    %v41 = vld [vmem:[#allocation2 + $0x8] sm:$0xff]
    %v42 = vld [vmem:[#allocation5] sm:$0xff]
    %v43 = vld [vmem:[#allocation5 + $0x8] sm:$0xff]
    %v44 = vld [vmem:[#allocation5 + $0x10] sm:$0xff]
    %v45 = vld [vmem:[#allocation5 + $0x18] sm:$0xff]
    %v46 = vld [vmem:[#allocation5 + $0x20] sm:$0x1]
    %v47 = vlaneseq
    %v48 = vshrl.u32 %v47, 7
    %v49 = vsub.s32 0, %v48
    %v50 = vrot.slane %v46, %v49
    %vm51 = vcmask 261120
    %v53 = vsel %vm51, %v40, 0
    %v56 = vsel %vm51, %v41, 0
    %58 = vmatprep.subr.mxu0 0.0
    %59 = vmatpush1.msra.mxu0 %v42
    %60 = vmatprep.subr.mxu0 0.0
    %61 = vmatpush1.msra.mxu0 %v43
    %62 = vmatprep.subr.mxu0 0.0
    %63 = vmatpush1.msra.mxu0 %v44
    %64 = vmatprep.subr.mxu0 0.0
    %65 = vmatpush1.msra.mxu0 %v45
    %66 = vmatprep.subr.mxu0 0.0
    %67 = vmatpush1.msra.mxu0 0.0
    %68 = vmatprep.subr.mxu0 0.0
    %69 = vmatpush1.msra.mxu0 0.0
    %70 = vmatprep.subr.mxu0 0.0
    %71 = vmatpush1.msra.mxu0 0.0
    %72 = vmatprep.subr.mxu0 0.0
    %73 = vmatpush1.msra.mxu0 0.0
    %74 = vmatprep.subr.mxu0 0.0
    %75 = vmatpush1.msra.mxu0 0.0
    %76 = vmatprep.subr.mxu0 0.0
    %77 = vmatpush1.msra.mxu0 0.0
    %78 = vmatprep.subr.mxu0 0.0
    %79 = vmatpush1.msra.mxu0 0.0
    %80 = vmatprep.subr.mxu0 0.0
    %81 = vmatpush1.msra.mxu0 0.0
    %82 = vmatprep.subr.mxu0 0.0
    %83 = vmatpush1.msra.mxu0 0.0
    %84 = vmatprep.subr.mxu0 0.0
    %85 = vmatpush1.msra.mxu0 0.0
    %86 = vmatprep.subr.mxu0 0.0
    %87 = vmatpush1.msra.mxu0 0.0
    %88 = vmatprep.subr.mxu0 0.0
    %89 = vmatpush1.msra.mxu0 0.0
    %90 = vmatprep.subr.mxu0 0.0
    %91 = vmatpush1.msra.mxu0 0.0
    %92 = vmatprep.subr.mxu0 0.0
    %93 = vmatpush1.msra.mxu0 0.0
    %94 = vmatprep.subr.mxu0 0.0
    %95 = vmatpush1.msra.mxu0 0.0
    %96 = vmatprep.subr.mxu0 0.0
    %97 = vmatpush1.msra.mxu0 0.0
    %98 = vmatprep.subr.mxu0 0.0
    %99 = vmatpush1.msra.mxu0 0.0
    %100 = vmatprep.subr.mxu0 0.0
    %101 = vmatpush1.msra.mxu0 0.0
    %102 = vmatprep.subr.mxu0 0.0
    %103 = vmatpush1.msra.mxu0 0.0
    %104 = vmatprep.subr.mxu0 0.0
    %105 = vmatpush1.msra.mxu0 0.0
    %106 = vmatprep.subr.mxu0 0.0
    %107 = vmatpush1.msra.mxu0 0.0
    %108 = vmatprep.subr.mxu0 0.0
    %109 = vmatpush1.msra.mxu0 0.0
    %110 = vmatprep.subr.mxu0 0.0
    %111 = vmatpush1.msra.mxu0 0.0
    %112 = vmatprep.subr.mxu0 0.0
    %113 = vmatpush1.msra.mxu0 0.0
    %114 = vmatprep.subr.mxu0 0.0
    %115 = vmatpush1.msra.mxu0 0.0
    %116 = vmatprep.subr.mxu0 0.0
    %117 = vmatpush1.msra.mxu0 0.0
    %118 = vmatprep.subr.mxu0 0.0
    %119 = vmatpush1.msra.mxu0 0.0
    %120 = vmatprep.subr.mxu0 0.0
    %121 = vmatpush1.msra.mxu0 0.0
    %122 = vmatprep.mubr.f32.mxu0 0.0
    %123 = vmatmul.mubr.f32.gmra.mrb[0].mxu0 %v53
    %v124 = vpop.f32.mrb[0].mxu0
    %v125 = vadd.f32 %v50, %v124
    %v126 = vpop.f32.mrb[0].mxu0
    %127 = vmatprep.mubr.f32.mxu0 0.0
    %128 = vmatmul.mubr.f32.gmra.mrb[0].mxu0 %v56
    %v129 = vpop.f32.mrb[0].mxu0
    %v130 = vadd.f32 %v50, %v129
    %v131 = vpop.f32.mrb[0].mxu0
    %132 = vdwg.mxu0
    %135 = vrot.lane.b32.xlu0 %v125, 104
    %v136 = vpop.permute.xlu0 %135
    %137 = vrot.lane.b32.xlu0 %v130, 104
    %v138 = vpop.permute.xlu0 %137
    %139 = vrot.lane.b32.xlu0 %v125, 80
    %v140 = vpop.permute.xlu0 %139
    %141 = vrot.lane.b32.xlu0 %v130, 80
    %v142 = vpop.permute.xlu0 %141
    %143 = vrot.lane.b32.xlu0 %v125, 56
    %v144 = vpop.permute.xlu0 %143
    %145 = vrot.lane.b32.xlu0 %v130, 56
    %v146 = vpop.permute.xlu0 %145
    %147 = vrot.lane.b32.xlu0 %v125, 120
    %v148 = vpop.permute.xlu0 %147
    %vm149 = vcmask 64512
    %v150 = vsel %vm149, %v125, 0
    %v152 = vsel %vm149, %v148, 0
    %154 = vmatprep.subr.mxu0 0.0
    %155 = vmatpush1.xpose.msra.mxu0 %v152
    %156 = vmatprep.subr.mxu0 0.0
    %157 = vmatpush1.xpose.msra.mxu0 0.0
    %158 = vmatprep.subr.mxu0 0.0
    %159 = vmatpush1.xpose.msra.mxu0 0.0
    %160 = vmatprep.subr.mxu0 0.0
    %161 = vmatpush1.xpose.msra.mxu0 0.0
    %162 = vmatprep.subr.mxu0 0.0
    %163 = vmatpush1.xpose.msra.mxu0 0.0
    %164 = vmatprep.subr.mxu0 0.0
    %165 = vmatpush1.xpose.msra.mxu0 0.0
    %166 = vmatprep.subr.mxu0 0.0
    %167 = vmatpush1.xpose.msra.mxu0 0.0
    %168 = vmatprep.subr.mxu0 0.0
    %169 = vmatpush1.xpose.msra.mxu0 0.0
    %170 = vmatprep.subr.mxu0 0.0
    %171 = vmatpush1.xpose.msra.mxu0 0.0
    %172 = vmatprep.subr.mxu0 0.0
    %173 = vmatpush1.xpose.msra.mxu0 0.0
    %174 = vmatprep.subr.mxu0 0.0
    %175 = vmatpush1.xpose.msra.mxu0 0.0
    %176 = vmatprep.subr.mxu0 0.0
    %177 = vmatpush1.xpose.msra.mxu0 0.0
    %178 = vmatprep.subr.mxu0 0.0
    %179 = vmatpush1.xpose.msra.mxu0 0.0
    %180 = vmatprep.subr.mxu0 0.0
    %181 = vmatpush1.xpose.msra.mxu0 0.0
    %182 = vmatprep.subr.mxu0 0.0
    %183 = vmatpush1.xpose.msra.mxu0 0.0
    %184 = vmatprep.subr.mxu0 0.0
    %185 = vmatpush1.xpose.msra.mxu0 0.0
    %186 = vmatprep.subr.mxu0 0.0
    %187 = vmatpush1.xpose.msra.mxu0 0.0
    %188 = vmatprep.subr.mxu0 0.0
    %189 = vmatpush1.xpose.msra.mxu0 0.0
    %190 = vmatprep.subr.mxu0 0.0
    %191 = vmatpush1.xpose.msra.mxu0 0.0
    %192 = vmatprep.subr.mxu0 0.0
    %193 = vmatpush1.xpose.msra.mxu0 0.0
    %194 = vmatprep.subr.mxu0 0.0
    %195 = vmatpush1.xpose.msra.mxu0 0.0
    %196 = vmatprep.subr.mxu0 0.0
    %197 = vmatpush1.xpose.msra.mxu0 0.0
    %198 = vmatprep.subr.mxu0 0.0
    %199 = vmatpush1.xpose.msra.mxu0 0.0
    %200 = vmatprep.subr.mxu0 0.0
    %201 = vmatpush1.xpose.msra.mxu0 0.0
    %202 = vmatprep.subr.mxu0 0.0
    %203 = vmatpush1.xpose.msra.mxu0 0.0
    %204 = vmatprep.subr.mxu0 0.0
    %205 = vmatpush1.xpose.msra.mxu0 0.0
    %206 = vmatprep.subr.mxu0 0.0
    %207 = vmatpush1.xpose.msra.mxu0 0.0
    %208 = vmatprep.subr.mxu0 0.0
    %209 = vmatpush1.xpose.msra.mxu0 0.0
    %210 = vmatprep.subr.mxu0 0.0
    %211 = vmatpush1.xpose.msra.mxu0 0.0
    %212 = vmatprep.subr.mxu0 0.0
    %213 = vmatpush1.xpose.msra.mxu0 0.0
    %214 = vmatprep.subr.mxu0 0.0
    %215 = vmatpush1.xpose.msra.mxu0 0.0
    %216 = vmatprep.subr.mxu0 0.0
    %217 = vmatpush1.xpose.msra.mxu0 0.0
    %218 = vmatprep.mubr.f32.mxu0 0.0
    %219 = vmatmul.mubr.f32.gmra.mrb[0].mxu0 %v150
    %v220 = vpop.f32.mrb[0].mxu0
    %v221 = vadd.f32 0.0, %v220
    %v222 = vpop.f32.mrb[0].mxu0
    %223 = vdwg.mxu0
    %224 = vrot.lane.b32.xlu0 %v130, 120
    %v225 = vpop.permute.xlu0 %224
    %v226 = vsel %vm149, %v130, 0
    %v228 = vsel %vm149, %v225, 0
    %230 = vmatprep.subr.mxu0 0.0
    %231 = vmatpush1.xpose.msra.mxu0 %v228
    %232 = vmatprep.subr.mxu0 0.0
    %233 = vmatpush1.xpose.msra.mxu0 0.0
    %234 = vmatprep.subr.mxu0 0.0
    %235 = vmatpush1.xpose.msra.mxu0 0.0
    %236 = vmatprep.subr.mxu0 0.0
    %237 = vmatpush1.xpose.msra.mxu0 0.0
    %238 = vmatprep.subr.mxu0 0.0
    %239 = vmatpush1.xpose.msra.mxu0 0.0
    %240 = vmatprep.subr.mxu0 0.0
    %241 = vmatpush1.xpose.msra.mxu0 0.0
    %242 = vmatprep.subr.mxu0 0.0
    %243 = vmatpush1.xpose.msra.mxu0 0.0
    %244 = vmatprep.subr.mxu0 0.0
    %245 = vmatpush1.xpose.msra.mxu0 0.0
    %246 = vmatprep.subr.mxu0 0.0
    %247 = vmatpush1.xpose.msra.mxu0 0.0
    %248 = vmatprep.subr.mxu0 0.0
    %249 = vmatpush1.xpose.msra.mxu0 0.0
    %250 = vmatprep.subr.mxu0 0.0
    %251 = vmatpush1.xpose.msra.mxu0 0.0
    %252 = vmatprep.subr.mxu0 0.0
    %253 = vmatpush1.xpose.msra.mxu0 0.0
    %254 = vmatprep.subr.mxu0 0.0
    %255 = vmatpush1.xpose.msra.mxu0 0.0
    %256 = vmatprep.subr.mxu0 0.0
    %257 = vmatpush1.xpose.msra.mxu0 0.0
    %258 = vmatprep.subr.mxu0 0.0
    %259 = vmatpush1.xpose.msra.mxu0 0.0
    %260 = vmatprep.subr.mxu0 0.0
    %261 = vmatpush1.xpose.msra.mxu0 0.0
    %262 = vmatprep.subr.mxu0 0.0
    %263 = vmatpush1.xpose.msra.mxu0 0.0
    %264 = vmatprep.subr.mxu0 0.0
    %265 = vmatpush1.xpose.msra.mxu0 0.0
    %266 = vmatprep.subr.mxu0 0.0
    %267 = vmatpush1.xpose.msra.mxu0 0.0
    %268 = vmatprep.subr.mxu0 0.0
    %269 = vmatpush1.xpose.msra.mxu0 0.0
    %270 = vmatprep.subr.mxu0 0.0
    %271 = vmatpush1.xpose.msra.mxu0 0.0
    %272 = vmatprep.subr.mxu0 0.0
    %273 = vmatpush1.xpose.msra.mxu0 0.0
    %274 = vmatprep.subr.mxu0 0.0
    %275 = vmatpush1.xpose.msra.mxu0 0.0
    %276 = vmatprep.subr.mxu0 0.0
    %277 = vmatpush1.xpose.msra.mxu0 0.0
    %278 = vmatprep.subr.mxu0 0.0
    %279 = vmatpush1.xpose.msra.mxu0 0.0
    %280 = vmatprep.subr.mxu0 0.0
    %281 = vmatpush1.xpose.msra.mxu0 0.0
    %282 = vmatprep.subr.mxu0 0.0
    %283 = vmatpush1.xpose.msra.mxu0 0.0
    %284 = vmatprep.subr.mxu0 0.0
    %285 = vmatpush1.xpose.msra.mxu0 0.0
    %286 = vmatprep.subr.mxu0 0.0
    %287 = vmatpush1.xpose.msra.mxu0 0.0
    %288 = vmatprep.subr.mxu0 0.0
    %289 = vmatpush1.xpose.msra.mxu0 0.0
    %290 = vmatprep.subr.mxu0 0.0
    %291 = vmatpush1.xpose.msra.mxu0 0.0
    %292 = vmatprep.subr.mxu0 0.0
    %293 = vmatpush1.xpose.msra.mxu0 0.0
    %294 = vmatprep.mubr.f32.mxu0 0.0
    %295 = vmatmul.mubr.f32.gmra.mrb[0].mxu0 %v226
    %v296 = vpop.f32.mrb[0].mxu0
    %v297 = vadd.f32 0.0, %v296
    %v298 = vpop.f32.mrb[0].mxu0
    %299 = vdwg.mxu0
    %300 = vrot.lane.b32.xlu0 %v136, 120
    %v301 = vpop.permute.xlu0 %300
    %v302 = vsel %vm149, %v136, 0
    %v304 = vsel %vm149, %v301, 0
    %306 = vmatprep.subr.mxu0 0.0
    %307 = vmatpush1.xpose.msra.mxu0 %v304
    %308 = vmatprep.subr.mxu0 0.0
    %309 = vmatpush1.xpose.msra.mxu0 0.0
    %310 = vmatprep.subr.mxu0 0.0
    %311 = vmatpush1.xpose.msra.mxu0 0.0
    %312 = vmatprep.subr.mxu0 0.0
    %313 = vmatpush1.xpose.msra.mxu0 0.0
    %314 = vmatprep.subr.mxu0 0.0
    %315 = vmatpush1.xpose.msra.mxu0 0.0
    %316 = vmatprep.subr.mxu0 0.0
    %317 = vmatpush1.xpose.msra.mxu0 0.0
    %318 = vmatprep.subr.mxu0 0.0
    %319 = vmatpush1.xpose.msra.mxu0 0.0
    %320 = vmatprep.subr.mxu0 0.0
    %321 = vmatpush1.xpose.msra.mxu0 0.0
    %322 = vmatprep.subr.mxu0 0.0
    %323 = vmatpush1.xpose.msra.mxu0 0.0
    %324 = vmatprep.subr.mxu0 0.0
    %325 = vmatpush1.xpose.msra.mxu0 0.0
    %326 = vmatprep.subr.mxu0 0.0
    %327 = vmatpush1.xpose.msra.mxu0 0.0
    %328 = vmatprep.subr.mxu0 0.0
    %329 = vmatpush1.xpose.msra.mxu0 0.0
    %330 = vmatprep.subr.mxu0 0.0
    %331 = vmatpush1.xpose.msra.mxu0 0.0
    %332 = vmatprep.subr.mxu0 0.0
    %333 = vmatpush1.xpose.msra.mxu0 0.0
    %334 = vmatprep.subr.mxu0 0.0
    %335 = vmatpush1.xpose.msra.mxu0 0.0
    %336 = vmatprep.subr.mxu0 0.0
    %337 = vmatpush1.xpose.msra.mxu0 0.0
    %338 = vmatprep.subr.mxu0 0.0
    %339 = vmatpush1.xpose.msra.mxu0 0.0
    %340 = vmatprep.subr.mxu0 0.0
    %341 = vmatpush1.xpose.msra.mxu0 0.0
    %342 = vmatprep.subr.mxu0 0.0
    %343 = vmatpush1.xpose.msra.mxu0 0.0
    %344 = vmatprep.subr.mxu0 0.0
    %345 = vmatpush1.xpose.msra.mxu0 0.0
    %346 = vmatprep.subr.mxu0 0.0
    %347 = vmatpush1.xpose.msra.mxu0 0.0
    %348 = vmatprep.subr.mxu0 0.0
    %349 = vmatpush1.xpose.msra.mxu0 0.0
    %350 = vmatprep.subr.mxu0 0.0
    %351 = vmatpush1.xpose.msra.mxu0 0.0
    %352 = vmatprep.subr.mxu0 0.0
    %353 = vmatpush1.xpose.msra.mxu0 0.0
    %354 = vmatprep.subr.mxu0 0.0
    %355 = vmatpush1.xpose.msra.mxu0 0.0
    %356 = vmatprep.subr.mxu0 0.0
    %357 = vmatpush1.xpose.msra.mxu0 0.0
    %358 = vmatprep.subr.mxu0 0.0
    %359 = vmatpush1.xpose.msra.mxu0 0.0
    %360 = vmatprep.subr.mxu0 0.0
    %361 = vmatpush1.xpose.msra.mxu0 0.0
    %362 = vmatprep.subr.mxu0 0.0
    %363 = vmatpush1.xpose.msra.mxu0 0.0
    %364 = vmatprep.subr.mxu0 0.0
    %365 = vmatpush1.xpose.msra.mxu0 0.0
    %366 = vmatprep.subr.mxu0 0.0
    %367 = vmatpush1.xpose.msra.mxu0 0.0
    %368 = vmatprep.subr.mxu0 0.0
    %369 = vmatpush1.xpose.msra.mxu0 0.0
    %370 = vmatprep.mubr.f32.mxu0 0.0
    %371 = vmatmul.mubr.f32.gmra.mrb[0].mxu0 %v302
    %v372 = vpop.f32.mrb[0].mxu0
    %v373 = vadd.f32 0.0, %v372
    %v374 = vpop.f32.mrb[0].mxu0
    %375 = vdwg.mxu0
    %376 = vrot.lane.b32.xlu0 %v138, 120
    %v377 = vpop.permute.xlu0 %376
    %v378 = vsel %vm149, %v138, 0
    %v380 = vsel %vm149, %v377, 0
    %382 = vmatprep.subr.mxu0 0.0
    %383 = vmatpush1.xpose.msra.mxu0 %v380
    %384 = vmatprep.subr.mxu0 0.0
    %385 = vmatpush1.xpose.msra.mxu0 0.0
    %386 = vmatprep.subr.mxu0 0.0
    %387 = vmatpush1.xpose.msra.mxu0 0.0
    %388 = vmatprep.subr.mxu0 0.0
    %389 = vmatpush1.xpose.msra.mxu0 0.0
    %390 = vmatprep.subr.mxu0 0.0
    %391 = vmatpush1.xpose.msra.mxu0 0.0
    %392 = vmatprep.subr.mxu0 0.0
    %393 = vmatpush1.xpose.msra.mxu0 0.0
    %394 = vmatprep.subr.mxu0 0.0
    %395 = vmatpush1.xpose.msra.mxu0 0.0
    %396 = vmatprep.subr.mxu0 0.0
    %397 = vmatpush1.xpose.msra.mxu0 0.0
    %398 = vmatprep.subr.mxu0 0.0
    %399 = vmatpush1.xpose.msra.mxu0 0.0
    %400 = vmatprep.subr.mxu0 0.0
    %401 = vmatpush1.xpose.msra.mxu0 0.0
    %402 = vmatprep.subr.mxu0 0.0
    %403 = vmatpush1.xpose.msra.mxu0 0.0
    %404 = vmatprep.subr.mxu0 0.0
    %405 = vmatpush1.xpose.msra.mxu0 0.0
    %406 = vmatprep.subr.mxu0 0.0
    %407 = vmatpush1.xpose.msra.mxu0 0.0
    %408 = vmatprep.subr.mxu0 0.0
    %409 = vmatpush1.xpose.msra.mxu0 0.0
    %410 = vmatprep.subr.mxu0 0.0
    %411 = vmatpush1.xpose.msra.mxu0 0.0
    %412 = vmatprep.subr.mxu0 0.0
    %413 = vmatpush1.xpose.msra.mxu0 0.0
    %414 = vmatprep.subr.mxu0 0.0
    %415 = vmatpush1.xpose.msra.mxu0 0.0
    %416 = vmatprep.subr.mxu0 0.0
    %417 = vmatpush1.xpose.msra.mxu0 0.0
    %418 = vmatprep.subr.mxu0 0.0
    %419 = vmatpush1.xpose.msra.mxu0 0.0
    %420 = vmatprep.subr.mxu0 0.0
    %421 = vmatpush1.xpose.msra.mxu0 0.0
    %422 = vmatprep.subr.mxu0 0.0
    %423 = vmatpush1.xpose.msra.mxu0 0.0
    %424 = vmatprep.subr.mxu0 0.0
    %425 = vmatpush1.xpose.msra.mxu0 0.0
    %426 = vmatprep.subr.mxu0 0.0
    %427 = vmatpush1.xpose.msra.mxu0 0.0
    %428 = vmatprep.subr.mxu0 0.0
    %429 = vmatpush1.xpose.msra.mxu0 0.0
    %430 = vmatprep.subr.mxu0 0.0
    %431 = vmatpush1.xpose.msra.mxu0 0.0
    %432 = vmatprep.subr.mxu0 0.0
    %433 = vmatpush1.xpose.msra.mxu0 0.0
    %434 = vmatprep.subr.mxu0 0.0
    %435 = vmatpush1.xpose.msra.mxu0 0.0
    %436 = vmatprep.subr.mxu0 0.0
    %437 = vmatpush1.xpose.msra.mxu0 0.0
    %438 = vmatprep.subr.mxu0 0.0
    %439 = vmatpush1.xpose.msra.mxu0 0.0
    %440 = vmatprep.subr.mxu0 0.0
    %441 = vmatpush1.xpose.msra.mxu0 0.0
    %442 = vmatprep.subr.mxu0 0.0
    %443 = vmatpush1.xpose.msra.mxu0 0.0
    %444 = vmatprep.subr.mxu0 0.0
    %445 = vmatpush1.xpose.msra.mxu0 0.0
    %446 = vmatprep.mubr.f32.mxu0 0.0
    %447 = vmatmul.mubr.f32.gmra.mrb[0].mxu0 %v378
    %v448 = vpop.f32.mrb[0].mxu0
    %v449 = vadd.f32 0.0, %v448
    %v450 = vpop.f32.mrb[0].mxu0
    %451 = vdwg.mxu0
    %452 = vrot.lane.b32.xlu0 %v140, 120
    %v453 = vpop.permute.xlu0 %452
    %v454 = vsel %vm149, %v140, 0
    %v456 = vsel %vm149, %v453, 0
    %458 = vmatprep.subr.mxu0 0.0
    %459 = vmatpush1.xpose.msra.mxu0 %v456
    %460 = vmatprep.subr.mxu0 0.0
    %461 = vmatpush1.xpose.msra.mxu0 0.0
    %462 = vmatprep.subr.mxu0 0.0
    %463 = vmatpush1.xpose.msra.mxu0 0.0
    %464 = vmatprep.subr.mxu0 0.0
    %465 = vmatpush1.xpose.msra.mxu0 0.0
    %466 = vmatprep.subr.mxu0 0.0
    %467 = vmatpush1.xpose.msra.mxu0 0.0
    %468 = vmatprep.subr.mxu0 0.0
    %469 = vmatpush1.xpose.msra.mxu0 0.0
    %470 = vmatprep.subr.mxu0 0.0
    %471 = vmatpush1.xpose.msra.mxu0 0.0
    %472 = vmatprep.subr.mxu0 0.0
    %473 = vmatpush1.xpose.msra.mxu0 0.0
    %474 = vmatprep.subr.mxu0 0.0
    %475 = vmatpush1.xpose.msra.mxu0 0.0
    %476 = vmatprep.subr.mxu0 0.0
    %477 = vmatpush1.xpose.msra.mxu0 0.0
    %478 = vmatprep.subr.mxu0 0.0
    %479 = vmatpush1.xpose.msra.mxu0 0.0
    %480 = vmatprep.subr.mxu0 0.0
    %481 = vmatpush1.xpose.msra.mxu0 0.0
    %482 = vmatprep.subr.mxu0 0.0
    %483 = vmatpush1.xpose.msra.mxu0 0.0
    %484 = vmatprep.subr.mxu0 0.0
    %485 = vmatpush1.xpose.msra.mxu0 0.0
    %486 = vmatprep.subr.mxu0 0.0
    %487 = vmatpush1.xpose.msra.mxu0 0.0
    %488 = vmatprep.subr.mxu0 0.0
    %489 = vmatpush1.xpose.msra.mxu0 0.0
    %490 = vmatprep.subr.mxu0 0.0
    %491 = vmatpush1.xpose.msra.mxu0 0.0
    %492 = vmatprep.subr.mxu0 0.0
    %493 = vmatpush1.xpose.msra.mxu0 0.0
    %494 = vmatprep.subr.mxu0 0.0
    %495 = vmatpush1.xpose.msra.mxu0 0.0
    %496 = vmatprep.subr.mxu0 0.0
    %497 = vmatpush1.xpose.msra.mxu0 0.0
    %498 = vmatprep.subr.mxu0 0.0
    %499 = vmatpush1.xpose.msra.mxu0 0.0
    %500 = vmatprep.subr.mxu0 0.0
    %501 = vmatpush1.xpose.msra.mxu0 0.0
    %502 = vmatprep.subr.mxu0 0.0
    %503 = vmatpush1.xpose.msra.mxu0 0.0
    %504 = vmatprep.subr.mxu0 0.0
    %505 = vmatpush1.xpose.msra.mxu0 0.0
    %506 = vmatprep.subr.mxu0 0.0
    %507 = vmatpush1.xpose.msra.mxu0 0.0
    %508 = vmatprep.subr.mxu0 0.0
    %509 = vmatpush1.xpose.msra.mxu0 0.0
    %510 = vmatprep.subr.mxu0 0.0
    %511 = vmatpush1.xpose.msra.mxu0 0.0
    %512 = vmatprep.subr.mxu0 0.0
    %513 = vmatpush1.xpose.msra.mxu0 0.0
    %514 = vmatprep.subr.mxu0 0.0
    %515 = vmatpush1.xpose.msra.mxu0 0.0
    %516 = vmatprep.subr.mxu0 0.0
    %517 = vmatpush1.xpose.msra.mxu0 0.0
    %518 = vmatprep.subr.mxu0 0.0
    %519 = vmatpush1.xpose.msra.mxu0 0.0
    %520 = vmatprep.subr.mxu0 0.0
    %521 = vmatpush1.xpose.msra.mxu0 0.0
    %522 = vmatprep.mubr.f32.mxu0 0.0
    %523 = vmatmul.mubr.f32.gmra.mrb[0].mxu0 %v454
    %v524 = vpop.f32.mrb[0].mxu0
    %v525 = vadd.f32 0.0, %v524
    %v526 = vpop.f32.mrb[0].mxu0
    %527 = vdwg.mxu0
    %528 = vrot.lane.b32.xlu0 %v142, 120
    %v529 = vpop.permute.xlu0 %528
    %v530 = vsel %vm149, %v142, 0
    %v532 = vsel %vm149, %v529, 0
    %534 = vmatprep.subr.mxu0 0.0
    %535 = vmatpush1.xpose.msra.mxu0 %v532
    %536 = vmatprep.subr.mxu0 0.0
    %537 = vmatpush1.xpose.msra.mxu0 0.0
    %538 = vmatprep.subr.mxu0 0.0
    %539 = vmatpush1.xpose.msra.mxu0 0.0
    %540 = vmatprep.subr.mxu0 0.0
    %541 = vmatpush1.xpose.msra.mxu0 0.0
    %542 = vmatprep.subr.mxu0 0.0
    %543 = vmatpush1.xpose.msra.mxu0 0.0
    %544 = vmatprep.subr.mxu0 0.0
    %545 = vmatpush1.xpose.msra.mxu0 0.0
    %546 = vmatprep.subr.mxu0 0.0
    %547 = vmatpush1.xpose.msra.mxu0 0.0
    %548 = vmatprep.subr.mxu0 0.0
    %549 = vmatpush1.xpose.msra.mxu0 0.0
    %550 = vmatprep.subr.mxu0 0.0
    %551 = vmatpush1.xpose.msra.mxu0 0.0
    %552 = vmatprep.subr.mxu0 0.0
    %553 = vmatpush1.xpose.msra.mxu0 0.0
    %554 = vmatprep.subr.mxu0 0.0
    %555 = vmatpush1.xpose.msra.mxu0 0.0
    %556 = vmatprep.subr.mxu0 0.0
    %557 = vmatpush1.xpose.msra.mxu0 0.0
    %558 = vmatprep.subr.mxu0 0.0
    %559 = vmatpush1.xpose.msra.mxu0 0.0
    %560 = vmatprep.subr.mxu0 0.0
    %561 = vmatpush1.xpose.msra.mxu0 0.0
    %562 = vmatprep.subr.mxu0 0.0
    %563 = vmatpush1.xpose.msra.mxu0 0.0
    %564 = vmatprep.subr.mxu0 0.0
    %565 = vmatpush1.xpose.msra.mxu0 0.0
    %566 = vmatprep.subr.mxu0 0.0
    %567 = vmatpush1.xpose.msra.mxu0 0.0
    %568 = vmatprep.subr.mxu0 0.0
    %569 = vmatpush1.xpose.msra.mxu0 0.0
    %570 = vmatprep.subr.mxu0 0.0
    %571 = vmatpush1.xpose.msra.mxu0 0.0
    %572 = vmatprep.subr.mxu0 0.0
    %573 = vmatpush1.xpose.msra.mxu0 0.0
    %574 = vmatprep.subr.mxu0 0.0
    %575 = vmatpush1.xpose.msra.mxu0 0.0
    %576 = vmatprep.subr.mxu0 0.0
    %577 = vmatpush1.xpose.msra.mxu0 0.0
    %578 = vmatprep.subr.mxu0 0.0
    %579 = vmatpush1.xpose.msra.mxu0 0.0
    %580 = vmatprep.subr.mxu0 0.0
    %581 = vmatpush1.xpose.msra.mxu0 0.0
    %582 = vmatprep.subr.mxu0 0.0
    %583 = vmatpush1.xpose.msra.mxu0 0.0
    %584 = vmatprep.subr.mxu0 0.0
    %585 = vmatpush1.xpose.msra.mxu0 0.0
    %586 = vmatprep.subr.mxu0 0.0
    %587 = vmatpush1.xpose.msra.mxu0 0.0
    %588 = vmatprep.subr.mxu0 0.0
    %589 = vmatpush1.xpose.msra.mxu0 0.0
    %590 = vmatprep.subr.mxu0 0.0
    %591 = vmatpush1.xpose.msra.mxu0 0.0
    %592 = vmatprep.subr.mxu0 0.0
    %593 = vmatpush1.xpose.msra.mxu0 0.0
    %594 = vmatprep.subr.mxu0 0.0
    %595 = vmatpush1.xpose.msra.mxu0 0.0
    %596 = vmatprep.subr.mxu0 0.0
    %597 = vmatpush1.xpose.msra.mxu0 0.0
    %598 = vmatprep.mubr.f32.mxu0 0.0
    %599 = vmatmul.mubr.f32.gmra.mrb[0].mxu0 %v530
    %v600 = vpop.f32.mrb[0].mxu0
    %v601 = vadd.f32 0.0, %v600
    %v602 = vpop.f32.mrb[0].mxu0
    %603 = vdwg.mxu0
    %604 = vrot.lane.b32.xlu0 %v144, 120
    %v605 = vpop.permute.xlu0 %604
    %v606 = vsel %vm149, %v144, 0
    %v608 = vsel %vm149, %v605, 0
    %610 = vmatprep.subr.mxu0 0.0
    %611 = vmatpush1.xpose.msra.mxu0 %v608
    %612 = vmatprep.subr.mxu0 0.0
    %613 = vmatpush1.xpose.msra.mxu0 0.0
    %614 = vmatprep.subr.mxu0 0.0
    %615 = vmatpush1.xpose.msra.mxu0 0.0
    %616 = vmatprep.subr.mxu0 0.0
    %617 = vmatpush1.xpose.msra.mxu0 0.0
    %618 = vmatprep.subr.mxu0 0.0
    %619 = vmatpush1.xpose.msra.mxu0 0.0
    %620 = vmatprep.subr.mxu0 0.0
    %621 = vmatpush1.xpose.msra.mxu0 0.0
    %622 = vmatprep.subr.mxu0 0.0
    %623 = vmatpush1.xpose.msra.mxu0 0.0
    %624 = vmatprep.subr.mxu0 0.0
    %625 = vmatpush1.xpose.msra.mxu0 0.0
    %626 = vmatprep.subr.mxu0 0.0
    %627 = vmatpush1.xpose.msra.mxu0 0.0
    %628 = vmatprep.subr.mxu0 0.0
    %629 = vmatpush1.xpose.msra.mxu0 0.0
    %630 = vmatprep.subr.mxu0 0.0
    %631 = vmatpush1.xpose.msra.mxu0 0.0
    %632 = vmatprep.subr.mxu0 0.0
    %633 = vmatpush1.xpose.msra.mxu0 0.0
    %634 = vmatprep.subr.mxu0 0.0
    %635 = vmatpush1.xpose.msra.mxu0 0.0
    %636 = vmatprep.subr.mxu0 0.0
    %637 = vmatpush1.xpose.msra.mxu0 0.0
    %638 = vmatprep.subr.mxu0 0.0
    %639 = vmatpush1.xpose.msra.mxu0 0.0
    %640 = vmatprep.subr.mxu0 0.0
    %641 = vmatpush1.xpose.msra.mxu0 0.0
    %642 = vmatprep.subr.mxu0 0.0
    %643 = vmatpush1.xpose.msra.mxu0 0.0
    %644 = vmatprep.subr.mxu0 0.0
    %645 = vmatpush1.xpose.msra.mxu0 0.0
    %646 = vmatprep.subr.mxu0 0.0
    %647 = vmatpush1.xpose.msra.mxu0 0.0
    %648 = vmatprep.subr.mxu0 0.0
    %649 = vmatpush1.xpose.msra.mxu0 0.0
    %650 = vmatprep.subr.mxu0 0.0
    %651 = vmatpush1.xpose.msra.mxu0 0.0
    %652 = vmatprep.subr.mxu0 0.0
    %653 = vmatpush1.xpose.msra.mxu0 0.0
    %654 = vmatprep.subr.mxu0 0.0
    %655 = vmatpush1.xpose.msra.mxu0 0.0
    %656 = vmatprep.subr.mxu0 0.0
    %657 = vmatpush1.xpose.msra.mxu0 0.0
    %658 = vmatprep.subr.mxu0 0.0
    %659 = vmatpush1.xpose.msra.mxu0 0.0
    %660 = vmatprep.subr.mxu0 0.0
    %661 = vmatpush1.xpose.msra.mxu0 0.0
    %662 = vmatprep.subr.mxu0 0.0
    %663 = vmatpush1.xpose.msra.mxu0 0.0
    %664 = vmatprep.subr.mxu0 0.0
    %665 = vmatpush1.xpose.msra.mxu0 0.0
    %666 = vmatprep.subr.mxu0 0.0
    %667 = vmatpush1.xpose.msra.mxu0 0.0
    %668 = vmatprep.subr.mxu0 0.0
    %669 = vmatpush1.xpose.msra.mxu0 0.0
    %670 = vmatprep.subr.mxu0 0.0
    %671 = vmatpush1.xpose.msra.mxu0 0.0
    %672 = vmatprep.subr.mxu0 0.0
    %673 = vmatpush1.xpose.msra.mxu0 0.0
    %674 = vmatprep.mubr.f32.mxu0 0.0
    %675 = vmatmul.mubr.f32.gmra.mrb[0].mxu0 %v606
    %v676 = vpop.f32.mrb[0].mxu0
    %v677 = vadd.f32 0.0, %v676
    %v678 = vpop.f32.mrb[0].mxu0
    %679 = vdwg.mxu0
    %680 = vrot.lane.b32.xlu0 %v146, 120
    %v681 = vpop.permute.xlu0 %680
    %v682 = vsel %vm149, %v146, 0
    %v684 = vsel %vm149, %v681, 0
    %686 = vmatprep.subr.mxu0 0.0
    %687 = vmatpush1.xpose.msra.mxu0 %v684
    %688 = vmatprep.subr.mxu0 0.0
    %689 = vmatpush1.xpose.msra.mxu0 0.0
    %690 = vmatprep.subr.mxu0 0.0
    %691 = vmatpush1.xpose.msra.mxu0 0.0
    %692 = vmatprep.subr.mxu0 0.0
    %693 = vmatpush1.xpose.msra.mxu0 0.0
    %694 = vmatprep.subr.mxu0 0.0
    %695 = vmatpush1.xpose.msra.mxu0 0.0
    %696 = vmatprep.subr.mxu0 0.0
    %697 = vmatpush1.xpose.msra.mxu0 0.0
    %698 = vmatprep.subr.mxu0 0.0
    %699 = vmatpush1.xpose.msra.mxu0 0.0
    %700 = vmatprep.subr.mxu0 0.0
    %701 = vmatpush1.xpose.msra.mxu0 0.0
    %702 = vmatprep.subr.mxu0 0.0
    %703 = vmatpush1.xpose.msra.mxu0 0.0
    %704 = vmatprep.subr.mxu0 0.0
    %705 = vmatpush1.xpose.msra.mxu0 0.0
    %706 = vmatprep.subr.mxu0 0.0
    %707 = vmatpush1.xpose.msra.mxu0 0.0
    %708 = vmatprep.subr.mxu0 0.0
    %709 = vmatpush1.xpose.msra.mxu0 0.0
    %710 = vmatprep.subr.mxu0 0.0
    %711 = vmatpush1.xpose.msra.mxu0 0.0
    %712 = vmatprep.subr.mxu0 0.0
    %713 = vmatpush1.xpose.msra.mxu0 0.0
    %714 = vmatprep.subr.mxu0 0.0
    %715 = vmatpush1.xpose.msra.mxu0 0.0
    %716 = vmatprep.subr.mxu0 0.0
    %717 = vmatpush1.xpose.msra.mxu0 0.0
    %718 = vmatprep.subr.mxu0 0.0
    %719 = vmatpush1.xpose.msra.mxu0 0.0
    %720 = vmatprep.subr.mxu0 0.0
    %721 = vmatpush1.xpose.msra.mxu0 0.0
    %722 = vmatprep.subr.mxu0 0.0
    %723 = vmatpush1.xpose.msra.mxu0 0.0
    %724 = vmatprep.subr.mxu0 0.0
    %725 = vmatpush1.xpose.msra.mxu0 0.0
    %726 = vmatprep.subr.mxu0 0.0
    %727 = vmatpush1.xpose.msra.mxu0 0.0
    %728 = vmatprep.subr.mxu0 0.0
    %729 = vmatpush1.xpose.msra.mxu0 0.0
    %730 = vmatprep.subr.mxu0 0.0
    %731 = vmatpush1.xpose.msra.mxu0 0.0
    %732 = vmatprep.subr.mxu0 0.0
    %733 = vmatpush1.xpose.msra.mxu0 0.0
    %734 = vmatprep.subr.mxu0 0.0
    %735 = vmatpush1.xpose.msra.mxu0 0.0
    %736 = vmatprep.subr.mxu0 0.0
    %737 = vmatpush1.xpose.msra.mxu0 0.0
    %738 = vmatprep.subr.mxu0 0.0
    %739 = vmatpush1.xpose.msra.mxu0 0.0
    %740 = vmatprep.subr.mxu0 0.0
    %741 = vmatpush1.xpose.msra.mxu0 0.0
    %742 = vmatprep.subr.mxu0 0.0
    %743 = vmatpush1.xpose.msra.mxu0 0.0
    %744 = vmatprep.subr.mxu0 0.0
    %745 = vmatpush1.xpose.msra.mxu0 0.0
    %746 = vmatprep.subr.mxu0 0.0
    %747 = vmatpush1.xpose.msra.mxu0 0.0
    %748 = vmatprep.subr.mxu0 0.0
    %749 = vmatpush1.xpose.msra.mxu0 0.0
    %750 = vmatprep.mubr.f32.mxu0 0.0
    %751 = vmatmul.mubr.f32.gmra.mrb[0].mxu0 %v682
    %v752 = vpop.f32.mrb[0].mxu0
    %v753 = vadd.f32 0.0, %v752
    %v754 = vpop.f32.mrb[0].mxu0
    %755 = vdwg.mxu0
    %v756 = vsel %vm149, %v221, -inf
    %757 = vmax.xlane.f32.xlu0 %v756
    %v758 = vpop.xlane.xlu0 %757
    %v759 = vsel %vm149, %v297, -inf
    %760 = vmax.xlane.f32.xlu0 %v759
    %v761 = vpop.xlane.xlu0 %760
    %v762 = vsel %vm149, %v373, -inf
    %763 = vmax.xlane.f32.xlu0 %v762
    %v764 = vpop.xlane.xlu0 %763
    %v765 = vsel %vm149, %v449, -inf
    %766 = vmax.xlane.f32.xlu0 %v765
    %v767 = vpop.xlane.xlu0 %766
    %v768 = vsel %vm149, %v525, -inf
    %769 = vmax.xlane.f32.xlu0 %v768
    %v770 = vpop.xlane.xlu0 %769
    %v771 = vsel %vm149, %v601, -inf
    %772 = vmax.xlane.f32.xlu0 %v771
    %v773 = vpop.xlane.xlu0 %772
    %v774 = vsel %vm149, %v677, -inf
    %775 = vmax.xlane.f32.xlu0 %v774
    %v776 = vpop.xlane.xlu0 %775
    %v777 = vsel %vm149, %v753, -inf
    %778 = vmax.xlane.f32.xlu0 %v777
    %v779 = vpop.xlane.xlu0 %778
    %v780 = vsub.f32 %v221, %v758
    %v781 = vsub.f32 %v297, %v761
    %v782 = vsub.f32 %v373, %v764
    %v783 = vsub.f32 %v449, %v767
    %v784 = vsub.f32 %v525, %v770
    %v785 = vsub.f32 %v601, %v773
    %v786 = vsub.f32 %v677, %v776
    %v787 = vsub.f32 %v753, %v779
    %v788 = vmul.f32 %v780, 1.442695
    %v789 = vpow.pop %v788
    %v790 = vmul.f32 %v781, 1.442695
    %v791 = vpow.pop %v790
    %v792 = vmul.f32 %v782, 1.442695
    %v793 = vpow.pop %v792
    %v794 = vmul.f32 %v783, 1.442695
    %v795 = vpow.pop %v794
    %v796 = vmul.f32 %v784, 1.442695
    %v797 = vpow.pop %v796
    %v798 = vmul.f32 %v785, 1.442695
    %v799 = vpow.pop %v798
    %v800 = vmul.f32 %v786, 1.442695
    %v801 = vpow.pop %v800
    %v802 = vmul.f32 %v787, 1.442695
    %v803 = vpow.pop %v802
    %v804 = vsel %vm149, %v789, 0.0
    %805 = vadd.xlane.f32.xlu0 %v804
    %v806 = vpop.xlane.xlu0 %805
    %v807 = vsel %vm149, %v791, 0.0
    %808 = vadd.xlane.f32.xlu0 %v807
    %v809 = vpop.xlane.xlu0 %808
    %v810 = vsel %vm149, %v793, 0.0
    %811 = vadd.xlane.f32.xlu0 %v810
    %v812 = vpop.xlane.xlu0 %811
    %v813 = vsel %vm149, %v795, 0.0
    %814 = vadd.xlane.f32.xlu0 %v813
    %v815 = vpop.xlane.xlu0 %814
    %v816 = vsel %vm149, %v797, 0.0
    %817 = vadd.xlane.f32.xlu0 %v816
    %v818 = vpop.xlane.xlu0 %817
    %v819 = vsel %vm149, %v799, 0.0
    %820 = vadd.xlane.f32.xlu0 %v819
    %v821 = vpop.xlane.xlu0 %820
    %v822 = vsel %vm149, %v801, 0.0
    %823 = vadd.xlane.f32.xlu0 %v822
    %v824 = vpop.xlane.xlu0 %823
    %v825 = vsel %vm149, %v803, 0.0
    %826 = vadd.xlane.f32.xlu0 %v825
    %v827 = vpop.xlane.xlu0 %826
    %v828 = vrcp.pop %v806
    %v829 = vrcp.pop %v809
    %v830 = vrcp.pop %v812
    %v831 = vrcp.pop %v815
    %v832 = vrcp.pop %v818
    %v833 = vrcp.pop %v821
    %v834 = vrcp.pop %v824
    %v835 = vrcp.pop %v827
    %v836 = vmul.f32 %v806, %v828
    %v837 = vmul.f32 %v809, %v829
    %v838 = vmul.f32 %v812, %v830
    %v839 = vmul.f32 %v815, %v831
    %v840 = vmul.f32 %v818, %v832
    %v841 = vmul.f32 %v821, %v833
    %v842 = vmul.f32 %v824, %v834
    %v843 = vmul.f32 %v827, %v835
    %v844 = vsub.f32 2.0, %v836
    %v845 = vsub.f32 2.0, %v837
    %v846 = vsub.f32 2.0, %v838
    %v847 = vsub.f32 2.0, %v839
    %v848 = vsub.f32 2.0, %v840
    %v849 = vsub.f32 2.0, %v841
    %v850 = vsub.f32 2.0, %v842
    %v851 = vsub.f32 2.0, %v843
    %v852 = vmul.f32 %v828, %v844
    %v853 = vmul.f32 %v829, %v845
    %v854 = vmul.f32 %v830, %v846
    %v855 = vmul.f32 %v831, %v847
    %v856 = vmul.f32 %v832, %v848
    %v857 = vmul.f32 %v833, %v849
    %v858 = vmul.f32 %v834, %v850
    %v859 = vmul.f32 %v835, %v851
    %v860 = vmul.f32 %v789, %v852
    %v861 = vmul.f32 %v791, %v853
    %v862 = vmul.f32 %v793, %v854
    %v863 = vmul.f32 %v795, %v855
    %v864 = vmul.f32 %v797, %v856
    %v865 = vmul.f32 %v799, %v857
    %v866 = vmul.f32 %v801, %v858
    %v867 = vmul.f32 %v803, %v859
    %868 = vrot.lane.b32.xlu0 %v125, 112
    %v869 = vpop.permute.xlu0 %868
    %v872 = vsel %vm149, %v860, 0
    %874 = vmatprep.subr.mxu0 0.0
    %875 = vmatpush1.msra.mxu0 %v869
    %876 = vmatprep.subr.mxu0 0.0
    %877 = vmatpush1.msra.mxu0 0.0
    %878 = vmatprep.subr.mxu0 0.0
    %879 = vmatpush1.msra.mxu0 0.0
    %880 = vmatprep.subr.mxu0 0.0
    %881 = vmatpush1.msra.mxu0 0.0
    %882 = vmatprep.subr.mxu0 0.0
    %883 = vmatpush1.msra.mxu0 0.0
    %884 = vmatprep.subr.mxu0 0.0
    %885 = vmatpush1.msra.mxu0 0.0
    %886 = vmatprep.subr.mxu0 0.0
    %887 = vmatpush1.msra.mxu0 0.0
    %888 = vmatprep.subr.mxu0 0.0
    %889 = vmatpush1.msra.mxu0 0.0
    %890 = vmatprep.subr.mxu0 0.0
    %891 = vmatpush1.msra.mxu0 0.0
    %892 = vmatprep.subr.mxu0 0.0
    %893 = vmatpush1.msra.mxu0 0.0
    %894 = vmatprep.subr.mxu0 0.0
    %895 = vmatpush1.msra.mxu0 0.0
    %896 = vmatprep.subr.mxu0 0.0
    %897 = vmatpush1.msra.mxu0 0.0
    %898 = vmatprep.subr.mxu0 0.0
    %899 = vmatpush1.msra.mxu0 0.0
    %900 = vmatprep.subr.mxu0 0.0
    %901 = vmatpush1.msra.mxu0 0.0
    %902 = vmatprep.subr.mxu0 0.0
    %903 = vmatpush1.msra.mxu0 0.0
    %904 = vmatprep.subr.mxu0 0.0
    %905 = vmatpush1.msra.mxu0 0.0
    %906 = vmatprep.subr.mxu0 0.0
    %907 = vmatpush1.msra.mxu0 0.0
    %908 = vmatprep.subr.mxu0 0.0
    %909 = vmatpush1.msra.mxu0 0.0
    %910 = vmatprep.subr.mxu0 0.0
    %911 = vmatpush1.msra.mxu0 0.0
    %912 = vmatprep.subr.mxu0 0.0
    %913 = vmatpush1.msra.mxu0 0.0
    %914 = vmatprep.subr.mxu0 0.0
    %915 = vmatpush1.msra.mxu0 0.0
    %916 = vmatprep.subr.mxu0 0.0
    %917 = vmatpush1.msra.mxu0 0.0
    %918 = vmatprep.subr.mxu0 0.0
    %919 = vmatpush1.msra.mxu0 0.0
    %920 = vmatprep.subr.mxu0 0.0
    %921 = vmatpush1.msra.mxu0 0.0
    %922 = vmatprep.subr.mxu0 0.0
    %923 = vmatpush1.msra.mxu0 0.0
    %924 = vmatprep.subr.mxu0 0.0
    %925 = vmatpush1.msra.mxu0 0.0
    %926 = vmatprep.subr.mxu0 0.0
    %927 = vmatpush1.msra.mxu0 0.0
    %928 = vmatprep.subr.mxu0 0.0
    %929 = vmatpush1.msra.mxu0 0.0
    %930 = vmatprep.subr.mxu0 0.0
    %931 = vmatpush1.msra.mxu0 0.0
    %932 = vmatprep.subr.mxu0 0.0
    %933 = vmatpush1.msra.mxu0 0.0
    %934 = vmatprep.subr.mxu0 0.0
    %935 = vmatpush1.msra.mxu0 0.0
    %936 = vmatprep.subr.mxu0 0.0
    %937 = vmatpush1.msra.mxu0 0.0
    %938 = vmatprep.mubr.f32.mxu0 0.0
    %939 = vmatmul.mubr.f32.gmra.mrb[0].mxu0 %v872
    %v940 = vpop.f32.mrb[0].mxu0
    %v941 = vadd.f32 0.0, %v940
    %v942 = vpop.f32.mrb[0].mxu0
    %943 = vdwg.mxu0
    %944 = vrot.lane.b32.xlu0 %v130, 112
    %v945 = vpop.permute.xlu0 %944
    %v948 = vsel %vm149, %v861, 0
    %950 = vmatprep.subr.mxu0 0.0
    %951 = vmatpush1.msra.mxu0 %v945
    %952 = vmatprep.subr.mxu0 0.0
    %953 = vmatpush1.msra.mxu0 0.0
    %954 = vmatprep.subr.mxu0 0.0
    %955 = vmatpush1.msra.mxu0 0.0
    %956 = vmatprep.subr.mxu0 0.0
    %957 = vmatpush1.msra.mxu0 0.0
    %958 = vmatprep.subr.mxu0 0.0
    %959 = vmatpush1.msra.mxu0 0.0
    %960 = vmatprep.subr.mxu0 0.0
    %961 = vmatpush1.msra.mxu0 0.0
    %962 = vmatprep.subr.mxu0 0.0
    %963 = vmatpush1.msra.mxu0 0.0
    %964 = vmatprep.subr.mxu0 0.0
    %965 = vmatpush1.msra.mxu0 0.0
    %966 = vmatprep.subr.mxu0 0.0
    %967 = vmatpush1.msra.mxu0 0.0
    %968 = vmatprep.subr.mxu0 0.0
    %969 = vmatpush1.msra.mxu0 0.0
    %970 = vmatprep.subr.mxu0 0.0
    %971 = vmatpush1.msra.mxu0 0.0
    %972 = vmatprep.subr.mxu0 0.0
    %973 = vmatpush1.msra.mxu0 0.0
    %974 = vmatprep.subr.mxu0 0.0
    %975 = vmatpush1.msra.mxu0 0.0
    %976 = vmatprep.subr.mxu0 0.0
    %977 = vmatpush1.msra.mxu0 0.0
    %978 = vmatprep.subr.mxu0 0.0
    %979 = vmatpush1.msra.mxu0 0.0
    %980 = vmatprep.subr.mxu0 0.0
    %981 = vmatpush1.msra.mxu0 0.0
    %982 = vmatprep.subr.mxu0 0.0
    %983 = vmatpush1.msra.mxu0 0.0
    %984 = vmatprep.subr.mxu0 0.0
    %985 = vmatpush1.msra.mxu0 0.0
    %986 = vmatprep.subr.mxu0 0.0
    %987 = vmatpush1.msra.mxu0 0.0
    %988 = vmatprep.subr.mxu0 0.0
    %989 = vmatpush1.msra.mxu0 0.0
    %990 = vmatprep.subr.mxu0 0.0
    %991 = vmatpush1.msra.mxu0 0.0
    %992 = vmatprep.subr.mxu0 0.0
    %993 = vmatpush1.msra.mxu0 0.0
    %994 = vmatprep.subr.mxu0 0.0
    %995 = vmatpush1.msra.mxu0 0.0
    %996 = vmatprep.subr.mxu0 0.0
    %997 = vmatpush1.msra.mxu0 0.0
    %998 = vmatprep.subr.mxu0 0.0
    %999 = vmatpush1.msra.mxu0 0.0
    %1000 = vmatprep.subr.mxu0 0.0
    %1001 = vmatpush1.msra.mxu0 0.0
    %1002 = vmatprep.subr.mxu0 0.0
    %1003 = vmatpush1.msra.mxu0 0.0
    %1004 = vmatprep.subr.mxu0 0.0
    %1005 = vmatpush1.msra.mxu0 0.0
    %1006 = vmatprep.subr.mxu0 0.0
    %1007 = vmatpush1.msra.mxu0 0.0
    %1008 = vmatprep.subr.mxu0 0.0
    %1009 = vmatpush1.msra.mxu0 0.0
    %1010 = vmatprep.subr.mxu0 0.0
    %1011 = vmatpush1.msra.mxu0 0.0
    %1012 = vmatprep.subr.mxu0 0.0
    %1013 = vmatpush1.msra.mxu0 0.0
    %1014 = vmatprep.mubr.f32.mxu0 0.0
    %1015 = vmatmul.mubr.f32.gmra.mrb[0].mxu0 %v948
    %v1016 = vpop.f32.mrb[0].mxu0
    %v1017 = vadd.f32 0.0, %v1016
    %v1018 = vpop.f32.mrb[0].mxu0
    %1019 = vdwg.mxu0
    %1020 = vrot.lane.b32.xlu0 %v136, 112
    %v1021 = vpop.permute.xlu0 %1020
    %v1024 = vsel %vm149, %v862, 0
    %1026 = vmatprep.subr.mxu0 0.0
    %1027 = vmatpush1.msra.mxu0 %v1021
    %1028 = vmatprep.subr.mxu0 0.0
    %1029 = vmatpush1.msra.mxu0 0.0
    %1030 = vmatprep.subr.mxu0 0.0
    %1031 = vmatpush1.msra.mxu0 0.0
    %1032 = vmatprep.subr.mxu0 0.0
    %1033 = vmatpush1.msra.mxu0 0.0
    %1034 = vmatprep.subr.mxu0 0.0
    %1035 = vmatpush1.msra.mxu0 0.0
    %1036 = vmatprep.subr.mxu0 0.0
    %1037 = vmatpush1.msra.mxu0 0.0
    %1038 = vmatprep.subr.mxu0 0.0
    %1039 = vmatpush1.msra.mxu0 0.0
    %1040 = vmatprep.subr.mxu0 0.0
    %1041 = vmatpush1.msra.mxu0 0.0
    %1042 = vmatprep.subr.mxu0 0.0
    %1043 = vmatpush1.msra.mxu0 0.0
    %1044 = vmatprep.subr.mxu0 0.0
    %1045 = vmatpush1.msra.mxu0 0.0
    %1046 = vmatprep.subr.mxu0 0.0
    %1047 = vmatpush1.msra.mxu0 0.0
    %1048 = vmatprep.subr.mxu0 0.0
    %1049 = vmatpush1.msra.mxu0 0.0
    %1050 = vmatprep.subr.mxu0 0.0
    %1051 = vmatpush1.msra.mxu0 0.0
    %1052 = vmatprep.subr.mxu0 0.0
    %1053 = vmatpush1.msra.mxu0 0.0
    %1054 = vmatprep.subr.mxu0 0.0
    %1055 = vmatpush1.msra.mxu0 0.0
    %1056 = vmatprep.subr.mxu0 0.0
    %1057 = vmatpush1.msra.mxu0 0.0
    %1058 = vmatprep.subr.mxu0 0.0
    %1059 = vmatpush1.msra.mxu0 0.0
    %1060 = vmatprep.subr.mxu0 0.0
    %1061 = vmatpush1.msra.mxu0 0.0
    %1062 = vmatprep.subr.mxu0 0.0
    %1063 = vmatpush1.msra.mxu0 0.0
    %1064 = vmatprep.subr.mxu0 0.0
    %1065 = vmatpush1.msra.mxu0 0.0
    %1066 = vmatprep.subr.mxu0 0.0
    %1067 = vmatpush1.msra.mxu0 0.0
    %1068 = vmatprep.subr.mxu0 0.0
    %1069 = vmatpush1.msra.mxu0 0.0
    %1070 = vmatprep.subr.mxu0 0.0
    %1071 = vmatpush1.msra.mxu0 0.0
    %1072 = vmatprep.subr.mxu0 0.0
    %1073 = vmatpush1.msra.mxu0 0.0
    %1074 = vmatprep.subr.mxu0 0.0
    %1075 = vmatpush1.msra.mxu0 0.0
    %1076 = vmatprep.subr.mxu0 0.0
    %1077 = vmatpush1.msra.mxu0 0.0
    %1078 = vmatprep.subr.mxu0 0.0
    %1079 = vmatpush1.msra.mxu0 0.0
    %1080 = vmatprep.subr.mxu0 0.0
    %1081 = vmatpush1.msra.mxu0 0.0
    %1082 = vmatprep.subr.mxu0 0.0
    %1083 = vmatpush1.msra.mxu0 0.0
    %1084 = vmatprep.subr.mxu0 0.0
    %1085 = vmatpush1.msra.mxu0 0.0
    %1086 = vmatprep.subr.mxu0 0.0
    %1087 = vmatpush1.msra.mxu0 0.0
    %1088 = vmatprep.subr.mxu0 0.0
    %1089 = vmatpush1.msra.mxu0 0.0
    %1090 = vmatprep.mubr.f32.mxu0 0.0
    %1091 = vmatmul.mubr.f32.gmra.mrb[0].mxu0 %v1024
    %v1092 = vpop.f32.mrb[0].mxu0
    %v1093 = vadd.f32 0.0, %v1092
    %v1094 = vpop.f32.mrb[0].mxu0
    %1095 = vdwg.mxu0
    %1096 = vrot.lane.b32.xlu0 %v138, 112
    %v1097 = vpop.permute.xlu0 %1096
    %v1100 = vsel %vm149, %v863, 0
    %1102 = vmatprep.subr.mxu0 0.0
    %1103 = vmatpush1.msra.mxu0 %v1097
    %1104 = vmatprep.subr.mxu0 0.0
    %1105 = vmatpush1.msra.mxu0 0.0
    %1106 = vmatprep.subr.mxu0 0.0
    %1107 = vmatpush1.msra.mxu0 0.0
    %1108 = vmatprep.subr.mxu0 0.0
    %1109 = vmatpush1.msra.mxu0 0.0
    %1110 = vmatprep.subr.mxu0 0.0
    %1111 = vmatpush1.msra.mxu0 0.0
    %1112 = vmatprep.subr.mxu0 0.0
    %1113 = vmatpush1.msra.mxu0 0.0
    %1114 = vmatprep.subr.mxu0 0.0
    %1115 = vmatpush1.msra.mxu0 0.0
    %1116 = vmatprep.subr.mxu0 0.0
    %1117 = vmatpush1.msra.mxu0 0.0
    %1118 = vmatprep.subr.mxu0 0.0
    %1119 = vmatpush1.msra.mxu0 0.0
    %1120 = vmatprep.subr.mxu0 0.0
    %1121 = vmatpush1.msra.mxu0 0.0
    %1122 = vmatprep.subr.mxu0 0.0
    %1123 = vmatpush1.msra.mxu0 0.0
    %1124 = vmatprep.subr.mxu0 0.0
    %1125 = vmatpush1.msra.mxu0 0.0
    %1126 = vmatprep.subr.mxu0 0.0
    %1127 = vmatpush1.msra.mxu0 0.0
    %1128 = vmatprep.subr.mxu0 0.0
    %1129 = vmatpush1.msra.mxu0 0.0
    %1130 = vmatprep.subr.mxu0 0.0
    %1131 = vmatpush1.msra.mxu0 0.0
    %1132 = vmatprep.subr.mxu0 0.0
    %1133 = vmatpush1.msra.mxu0 0.0
    %1134 = vmatprep.subr.mxu0 0.0
    %1135 = vmatpush1.msra.mxu0 0.0
    %1136 = vmatprep.subr.mxu0 0.0
    %1137 = vmatpush1.msra.mxu0 0.0
    %1138 = vmatprep.subr.mxu0 0.0
    %1139 = vmatpush1.msra.mxu0 0.0
    %1140 = vmatprep.subr.mxu0 0.0
    %1141 = vmatpush1.msra.mxu0 0.0
    %1142 = vmatprep.subr.mxu0 0.0
    %1143 = vmatpush1.msra.mxu0 0.0
    %1144 = vmatprep.subr.mxu0 0.0
    %1145 = vmatpush1.msra.mxu0 0.0
    %1146 = vmatprep.subr.mxu0 0.0
    %1147 = vmatpush1.msra.mxu0 0.0
    %1148 = vmatprep.subr.mxu0 0.0
    %1149 = vmatpush1.msra.mxu0 0.0
    %1150 = vmatprep.subr.mxu0 0.0
    %1151 = vmatpush1.msra.mxu0 0.0
    %1152 = vmatprep.subr.mxu0 0.0
    %1153 = vmatpush1.msra.mxu0 0.0
    %1154 = vmatprep.subr.mxu0 0.0
    %1155 = vmatpush1.msra.mxu0 0.0
    %1156 = vmatprep.subr.mxu0 0.0
    %1157 = vmatpush1.msra.mxu0 0.0
    %1158 = vmatprep.subr.mxu0 0.0
    %1159 = vmatpush1.msra.mxu0 0.0
    %1160 = vmatprep.subr.mxu0 0.0
    %1161 = vmatpush1.msra.mxu0 0.0
    %1162 = vmatprep.subr.mxu0 0.0
    %1163 = vmatpush1.msra.mxu0 0.0
    %1164 = vmatprep.subr.mxu0 0.0
    %1165 = vmatpush1.msra.mxu0 0.0
    %1166 = vmatprep.mubr.f32.mxu0 0.0
    %1167 = vmatmul.mubr.f32.gmra.mrb[0].mxu0 %v1100
    %v1168 = vpop.f32.mrb[0].mxu0
    %v1169 = vadd.f32 0.0, %v1168
    %v1170 = vpop.f32.mrb[0].mxu0
    %1171 = vdwg.mxu0
    %1172 = vrot.lane.b32.xlu0 %v140, 112
    %v1173 = vpop.permute.xlu0 %1172
    %v1176 = vsel %vm149, %v864, 0
    %1178 = vmatprep.subr.mxu0 0.0
    %1179 = vmatpush1.msra.mxu0 %v1173
    %1180 = vmatprep.subr.mxu0 0.0
    %1181 = vmatpush1.msra.mxu0 0.0
    %1182 = vmatprep.subr.mxu0 0.0
    %1183 = vmatpush1.msra.mxu0 0.0
    %1184 = vmatprep.subr.mxu0 0.0
    %1185 = vmatpush1.msra.mxu0 0.0
    %1186 = vmatprep.subr.mxu0 0.0
    %1187 = vmatpush1.msra.mxu0 0.0
    %1188 = vmatprep.subr.mxu0 0.0
    %1189 = vmatpush1.msra.mxu0 0.0
    %1190 = vmatprep.subr.mxu0 0.0
    %1191 = vmatpush1.msra.mxu0 0.0
    %1192 = vmatprep.subr.mxu0 0.0
    %1193 = vmatpush1.msra.mxu0 0.0
    %1194 = vmatprep.subr.mxu0 0.0
    %1195 = vmatpush1.msra.mxu0 0.0
    %1196 = vmatprep.subr.mxu0 0.0
    %1197 = vmatpush1.msra.mxu0 0.0
    %1198 = vmatprep.subr.mxu0 0.0
    %1199 = vmatpush1.msra.mxu0 0.0
    %1200 = vmatprep.subr.mxu0 0.0
    %1201 = vmatpush1.msra.mxu0 0.0
    %1202 = vmatprep.subr.mxu0 0.0
    %1203 = vmatpush1.msra.mxu0 0.0
    %1204 = vmatprep.subr.mxu0 0.0
    %1205 = vmatpush1.msra.mxu0 0.0
    %1206 = vmatprep.subr.mxu0 0.0
    %1207 = vmatpush1.msra.mxu0 0.0
    %1208 = vmatprep.subr.mxu0 0.0
    %1209 = vmatpush1.msra.mxu0 0.0
    %1210 = vmatprep.subr.mxu0 0.0
    %1211 = vmatpush1.msra.mxu0 0.0
    %1212 = vmatprep.subr.mxu0 0.0
    %1213 = vmatpush1.msra.mxu0 0.0
    %1214 = vmatprep.subr.mxu0 0.0
    %1215 = vmatpush1.msra.mxu0 0.0
    %1216 = vmatprep.subr.mxu0 0.0
    %1217 = vmatpush1.msra.mxu0 0.0
    %1218 = vmatprep.subr.mxu0 0.0
    %1219 = vmatpush1.msra.mxu0 0.0
    %1220 = vmatprep.subr.mxu0 0.0
    %1221 = vmatpush1.msra.mxu0 0.0
    %1222 = vmatprep.subr.mxu0 0.0
    %1223 = vmatpush1.msra.mxu0 0.0
    %1224 = vmatprep.subr.mxu0 0.0
    %1225 = vmatpush1.msra.mxu0 0.0
    %1226 = vmatprep.subr.mxu0 0.0
    %1227 = vmatpush1.msra.mxu0 0.0
    %1228 = vmatprep.subr.mxu0 0.0
    %1229 = vmatpush1.msra.mxu0 0.0
    %1230 = vmatprep.subr.mxu0 0.0
    %1231 = vmatpush1.msra.mxu0 0.0
    %1232 = vmatprep.subr.mxu0 0.0
    %1233 = vmatpush1.msra.mxu0 0.0
    %1234 = vmatprep.subr.mxu0 0.0
    %1235 = vmatpush1.msra.mxu0 0.0
    %1236 = vmatprep.subr.mxu0 0.0
    %1237 = vmatpush1.msra.mxu0 0.0
    %1238 = vmatprep.subr.mxu0 0.0
    %1239 = vmatpush1.msra.mxu0 0.0
    %1240 = vmatprep.subr.mxu0 0.0
    %1241 = vmatpush1.msra.mxu0 0.0
    %1242 = vmatprep.mubr.f32.mxu0 0.0
    %1243 = vmatmul.mubr.f32.gmra.mrb[0].mxu0 %v1176
    %v1244 = vpop.f32.mrb[0].mxu0
    %v1245 = vadd.f32 0.0, %v1244
    %v1246 = vpop.f32.mrb[0].mxu0
    %1247 = vdwg.mxu0
    %1248 = vrot.lane.b32.xlu0 %v142, 112
    %v1249 = vpop.permute.xlu0 %1248
    %v1252 = vsel %vm149, %v865, 0
    %1254 = vmatprep.subr.mxu0 0.0
    %1255 = vmatpush1.msra.mxu0 %v1249
    %1256 = vmatprep.subr.mxu0 0.0
    %1257 = vmatpush1.msra.mxu0 0.0
    %1258 = vmatprep.subr.mxu0 0.0
    %1259 = vmatpush1.msra.mxu0 0.0
    %1260 = vmatprep.subr.mxu0 0.0
    %1261 = vmatpush1.msra.mxu0 0.0
    %1262 = vmatprep.subr.mxu0 0.0
    %1263 = vmatpush1.msra.mxu0 0.0
    %1264 = vmatprep.subr.mxu0 0.0
    %1265 = vmatpush1.msra.mxu0 0.0
    %1266 = vmatprep.subr.mxu0 0.0
    %1267 = vmatpush1.msra.mxu0 0.0
    %1268 = vmatprep.subr.mxu0 0.0
    %1269 = vmatpush1.msra.mxu0 0.0
    %1270 = vmatprep.subr.mxu0 0.0
    %1271 = vmatpush1.msra.mxu0 0.0
    %1272 = vmatprep.subr.mxu0 0.0
    %1273 = vmatpush1.msra.mxu0 0.0
    %1274 = vmatprep.subr.mxu0 0.0
    %1275 = vmatpush1.msra.mxu0 0.0
    %1276 = vmatprep.subr.mxu0 0.0
    %1277 = vmatpush1.msra.mxu0 0.0
    %1278 = vmatprep.subr.mxu0 0.0
    %1279 = vmatpush1.msra.mxu0 0.0
    %1280 = vmatprep.subr.mxu0 0.0
    %1281 = vmatpush1.msra.mxu0 0.0
    %1282 = vmatprep.subr.mxu0 0.0
    %1283 = vmatpush1.msra.mxu0 0.0
    %1284 = vmatprep.subr.mxu0 0.0
    %1285 = vmatpush1.msra.mxu0 0.0
    %1286 = vmatprep.subr.mxu0 0.0
    %1287 = vmatpush1.msra.mxu0 0.0
    %1288 = vmatprep.subr.mxu0 0.0
    %1289 = vmatpush1.msra.mxu0 0.0
    %1290 = vmatprep.subr.mxu0 0.0
    %1291 = vmatpush1.msra.mxu0 0.0
    %1292 = vmatprep.subr.mxu0 0.0
    %1293 = vmatpush1.msra.mxu0 0.0
    %1294 = vmatprep.subr.mxu0 0.0
    %1295 = vmatpush1.msra.mxu0 0.0
    %1296 = vmatprep.subr.mxu0 0.0
    %1297 = vmatpush1.msra.mxu0 0.0
    %1298 = vmatprep.subr.mxu0 0.0
    %1299 = vmatpush1.msra.mxu0 0.0
    %1300 = vmatprep.subr.mxu0 0.0
    %1301 = vmatpush1.msra.mxu0 0.0
    %1302 = vmatprep.subr.mxu0 0.0
    %1303 = vmatpush1.msra.mxu0 0.0
    %1304 = vmatprep.subr.mxu0 0.0
    %1305 = vmatpush1.msra.mxu0 0.0
    %1306 = vmatprep.subr.mxu0 0.0
    %1307 = vmatpush1.msra.mxu0 0.0
    %1308 = vmatprep.subr.mxu0 0.0
    %1309 = vmatpush1.msra.mxu0 0.0
    %1310 = vmatprep.subr.mxu0 0.0
    %1311 = vmatpush1.msra.mxu0 0.0
    %1312 = vmatprep.subr.mxu0 0.0
    %1313 = vmatpush1.msra.mxu0 0.0
    %1314 = vmatprep.subr.mxu0 0.0
    %1315 = vmatpush1.msra.mxu0 0.0
    %1316 = vmatprep.subr.mxu0 0.0
    %1317 = vmatpush1.msra.mxu0 0.0
    %1318 = vmatprep.mubr.f32.mxu0 0.0
    %1319 = vmatmul.mubr.f32.gmra.mrb[0].mxu0 %v1252
    %v1320 = vpop.f32.mrb[0].mxu0
    %v1321 = vadd.f32 0.0, %v1320
    %v1322 = vpop.f32.mrb[0].mxu0
    %1323 = vdwg.mxu0
    %1324 = vrot.lane.b32.xlu0 %v144, 112
    %v1325 = vpop.permute.xlu0 %1324
    %v1328 = vsel %vm149, %v866, 0
    %1330 = vmatprep.subr.mxu0 0.0
    %1331 = vmatpush1.msra.mxu0 %v1325
    %1332 = vmatprep.subr.mxu0 0.0
    %1333 = vmatpush1.msra.mxu0 0.0
    %1334 = vmatprep.subr.mxu0 0.0
    %1335 = vmatpush1.msra.mxu0 0.0
    %1336 = vmatprep.subr.mxu0 0.0
    %1337 = vmatpush1.msra.mxu0 0.0
    %1338 = vmatprep.subr.mxu0 0.0
    %1339 = vmatpush1.msra.mxu0 0.0
    %1340 = vmatprep.subr.mxu0 0.0
    %1341 = vmatpush1.msra.mxu0 0.0
    %1342 = vmatprep.subr.mxu0 0.0
    %1343 = vmatpush1.msra.mxu0 0.0
    %1344 = vmatprep.subr.mxu0 0.0
    %1345 = vmatpush1.msra.mxu0 0.0
    %1346 = vmatprep.subr.mxu0 0.0
    %1347 = vmatpush1.msra.mxu0 0.0
    %1348 = vmatprep.subr.mxu0 0.0
    %1349 = vmatpush1.msra.mxu0 0.0
    %1350 = vmatprep.subr.mxu0 0.0
    %1351 = vmatpush1.msra.mxu0 0.0
    %1352 = vmatprep.subr.mxu0 0.0
    %1353 = vmatpush1.msra.mxu0 0.0
    %1354 = vmatprep.subr.mxu0 0.0
    %1355 = vmatpush1.msra.mxu0 0.0
    %1356 = vmatprep.subr.mxu0 0.0
    %1357 = vmatpush1.msra.mxu0 0.0
    %1358 = vmatprep.subr.mxu0 0.0
    %1359 = vmatpush1.msra.mxu0 0.0
    %1360 = vmatprep.subr.mxu0 0.0
    %1361 = vmatpush1.msra.mxu0 0.0
    %1362 = vmatprep.subr.mxu0 0.0
    %1363 = vmatpush1.msra.mxu0 0.0
    %1364 = vmatprep.subr.mxu0 0.0
    %1365 = vmatpush1.msra.mxu0 0.0
    %1366 = vmatprep.subr.mxu0 0.0
    %1367 = vmatpush1.msra.mxu0 0.0
    %1368 = vmatprep.subr.mxu0 0.0
    %1369 = vmatpush1.msra.mxu0 0.0
    %1370 = vmatprep.subr.mxu0 0.0
    %1371 = vmatpush1.msra.mxu0 0.0
    %1372 = vmatprep.subr.mxu0 0.0
    %1373 = vmatpush1.msra.mxu0 0.0
    %1374 = vmatprep.subr.mxu0 0.0
    %1375 = vmatpush1.msra.mxu0 0.0
    %1376 = vmatprep.subr.mxu0 0.0
    %1377 = vmatpush1.msra.mxu0 0.0
    %1378 = vmatprep.subr.mxu0 0.0
    %1379 = vmatpush1.msra.mxu0 0.0
    %1380 = vmatprep.subr.mxu0 0.0
    %1381 = vmatpush1.msra.mxu0 0.0
    %1382 = vmatprep.subr.mxu0 0.0
    %1383 = vmatpush1.msra.mxu0 0.0
    %1384 = vmatprep.subr.mxu0 0.0
    %1385 = vmatpush1.msra.mxu0 0.0
    %1386 = vmatprep.subr.mxu0 0.0
    %1387 = vmatpush1.msra.mxu0 0.0
    %1388 = vmatprep.subr.mxu0 0.0
    %1389 = vmatpush1.msra.mxu0 0.0
    %1390 = vmatprep.subr.mxu0 0.0
    %1391 = vmatpush1.msra.mxu0 0.0
    %1392 = vmatprep.subr.mxu0 0.0
    %1393 = vmatpush1.msra.mxu0 0.0
    %1394 = vmatprep.mubr.f32.mxu0 0.0
    %1395 = vmatmul.mubr.f32.gmra.mrb[0].mxu0 %v1328
    %v1396 = vpop.f32.mrb[0].mxu0
    %v1397 = vadd.f32 0.0, %v1396
    %v1398 = vpop.f32.mrb[0].mxu0
    %1399 = vdwg.mxu0
    %1400 = vrot.lane.b32.xlu0 %v146, 112
    %v1401 = vpop.permute.xlu0 %1400
    %v1404 = vsel %vm149, %v867, 0
    %1406 = vmatprep.subr.mxu0 0.0
    %1407 = vmatpush1.msra.mxu0 %v1401
    %1408 = vmatprep.subr.mxu0 0.0
    %1409 = vmatpush1.msra.mxu0 0.0
    %1410 = vmatprep.subr.mxu0 0.0
    %1411 = vmatpush1.msra.mxu0 0.0
    %1412 = vmatprep.subr.mxu0 0.0
    %1413 = vmatpush1.msra.mxu0 0.0
    %1414 = vmatprep.subr.mxu0 0.0
    %1415 = vmatpush1.msra.mxu0 0.0
    %1416 = vmatprep.subr.mxu0 0.0
    %1417 = vmatpush1.msra.mxu0 0.0
    %1418 = vmatprep.subr.mxu0 0.0
    %1419 = vmatpush1.msra.mxu0 0.0
    %1420 = vmatprep.subr.mxu0 0.0
    %1421 = vmatpush1.msra.mxu0 0.0
    %1422 = vmatprep.subr.mxu0 0.0
    %1423 = vmatpush1.msra.mxu0 0.0
    %1424 = vmatprep.subr.mxu0 0.0
    %1425 = vmatpush1.msra.mxu0 0.0
    %1426 = vmatprep.subr.mxu0 0.0
    %1427 = vmatpush1.msra.mxu0 0.0
    %1428 = vmatprep.subr.mxu0 0.0
    %1429 = vmatpush1.msra.mxu0 0.0
    %1430 = vmatprep.subr.mxu0 0.0
    %1431 = vmatpush1.msra.mxu0 0.0
    %1432 = vmatprep.subr.mxu0 0.0
    %1433 = vmatpush1.msra.mxu0 0.0
    %1434 = vmatprep.subr.mxu0 0.0
    %1435 = vmatpush1.msra.mxu0 0.0
    %1436 = vmatprep.subr.mxu0 0.0
    %1437 = vmatpush1.msra.mxu0 0.0
    %1438 = vmatprep.subr.mxu0 0.0
    %1439 = vmatpush1.msra.mxu0 0.0
    %1440 = vmatprep.subr.mxu0 0.0
    %1441 = vmatpush1.msra.mxu0 0.0
    %1442 = vmatprep.subr.mxu0 0.0
    %1443 = vmatpush1.msra.mxu0 0.0
    %1444 = vmatprep.subr.mxu0 0.0
    %1445 = vmatpush1.msra.mxu0 0.0
    %1446 = vmatprep.subr.mxu0 0.0
    %1447 = vmatpush1.msra.mxu0 0.0
    %1448 = vmatprep.subr.mxu0 0.0
    %1449 = vmatpush1.msra.mxu0 0.0
    %1450 = vmatprep.subr.mxu0 0.0
    %1451 = vmatpush1.msra.mxu0 0.0
    %1452 = vmatprep.subr.mxu0 0.0
    %1453 = vmatpush1.msra.mxu0 0.0
    %1454 = vmatprep.subr.mxu0 0.0
    %1455 = vmatpush1.msra.mxu0 0.0
    %1456 = vmatprep.subr.mxu0 0.0
    %1457 = vmatpush1.msra.mxu0 0.0
    %1458 = vmatprep.subr.mxu0 0.0
    %1459 = vmatpush1.msra.mxu0 0.0
    %1460 = vmatprep.subr.mxu0 0.0
    %1461 = vmatpush1.msra.mxu0 0.0
    %1462 = vmatprep.subr.mxu0 0.0
    %1463 = vmatpush1.msra.mxu0 0.0
    %1464 = vmatprep.subr.mxu0 0.0
    %1465 = vmatpush1.msra.mxu0 0.0
    %1466 = vmatprep.subr.mxu0 0.0
    %1467 = vmatpush1.msra.mxu0 0.0
    %1468 = vmatprep.subr.mxu0 0.0
    %1469 = vmatpush1.msra.mxu0 0.0
    %1470 = vmatprep.mubr.f32.mxu0 0.0
    %1471 = vmatmul.mubr.f32.gmra.mrb[0].mxu0 %v1404
    %v1472 = vpop.f32.mrb[0].mxu0
    %v1473 = vadd.f32 0.0, %v1472
    %v1474 = vpop.f32.mrb[0].mxu0
    %1475 = vdwg.mxu0
    %1478 = vrot.lane.b32.xlu0 %v1093, 8
    %v1479 = vpop.permute.xlu0 %1478
    %1480 = vrot.lane.b32.xlu0 %v1169, 8
    %v1481 = vpop.permute.xlu0 %1480
    %1486 = vrot.lane.b32.xlu0 %v1245, 16
    %v1487 = vpop.permute.xlu0 %1486
    %1488 = vrot.lane.b32.xlu0 %v1321, 16
    %v1489 = vpop.permute.xlu0 %1488
    %1494 = vrot.lane.b32.xlu0 %v1397, 24
    %v1495 = vpop.permute.xlu0 %1494
    %1496 = vrot.lane.b32.xlu0 %v1473, 24
    %v1497 = vpop.permute.xlu0 %1496
    %v1500 = vsel %vm149, %v941, %v1479
    %v1501 = vsel %vm149, %v1017, %v1481
    %vm1502 = vcmask 130048
    %v1503 = vsel %vm1502, %v1500, %v1487
    %v1504 = vsel %vm1502, %v1501, %v1489
    %vm1505 = vcmask 195584
    %v1506 = vsel %vm1505, %v1503, %v1495
    %v1507 = vsel %vm1505, %v1504, %v1497
    %v1508 = vld [vmem:[#allocation5 + $0x28] sm:$0xff]
    %v1509 = vld [vmem:[#allocation5 + $0x30] sm:$0xff]
    %v1510 = vld [vmem:[#allocation5 + $0x38] sm:$0xff]
    %v1511 = vld [vmem:[#allocation5 + $0x40] sm:$0xff]
    %v1512 = vld [vmem:[#allocation5 + $0x48] sm:$0x1]
    %v1513 = vlaneseq
    %v1514 = vshrl.u32 %v1513, 7
    %v1515 = vsub.s32 0, %v1514
    %v1516 = vrot.slane %v1512, %v1515
    %v1518 = vsel %vm51, %v1506, 0
    %v1521 = vsel %vm51, %v1507, 0
    %1523 = vmatprep.subr.mxu0 0.0
    %1524 = vmatpush1.msra.mxu0 %v1508
    %1525 = vmatprep.subr.mxu0 0.0
    %1526 = vmatpush1.msra.mxu0 %v1509
    %1527 = vmatprep.subr.mxu0 0.0
    %1528 = vmatpush1.msra.mxu0 %v1510
    %1529 = vmatprep.subr.mxu0 0.0
    %1530 = vmatpush1.msra.mxu0 %v1511
    %1531 = vmatprep.subr.mxu0 0.0
    %1532 = vmatpush1.msra.mxu0 0.0
    %1533 = vmatprep.subr.mxu0 0.0
    %1534 = vmatpush1.msra.mxu0 0.0
    %1535 = vmatprep.subr.mxu0 0.0
    %1536 = vmatpush1.msra.mxu0 0.0
    %1537 = vmatprep.subr.mxu0 0.0
    %1538 = vmatpush1.msra.mxu0 0.0
    %1539 = vmatprep.subr.mxu0 0.0
    %1540 = vmatpush1.msra.mxu0 0.0
    %1541 = vmatprep.subr.mxu0 0.0
    %1542 = vmatpush1.msra.mxu0 0.0
    %1543 = vmatprep.subr.mxu0 0.0
    %1544 = vmatpush1.msra.mxu0 0.0
    %1545 = vmatprep.subr.mxu0 0.0
    %1546 = vmatpush1.msra.mxu0 0.0
    %1547 = vmatprep.subr.mxu0 0.0
    %1548 = vmatpush1.msra.mxu0 0.0
    %1549 = vmatprep.subr.mxu0 0.0
    %1550 = vmatpush1.msra.mxu0 0.0
    %1551 = vmatprep.subr.mxu0 0.0
    %1552 = vmatpush1.msra.mxu0 0.0
    %1553 = vmatprep.subr.mxu0 0.0
    %1554 = vmatpush1.msra.mxu0 0.0
    %1555 = vmatprep.subr.mxu0 0.0
    %1556 = vmatpush1.msra.mxu0 0.0
    %1557 = vmatprep.subr.mxu0 0.0
    %1558 = vmatpush1.msra.mxu0 0.0
    %1559 = vmatprep.subr.mxu0 0.0
    %1560 = vmatpush1.msra.mxu0 0.0
    %1561 = vmatprep.subr.mxu0 0.0
    %1562 = vmatpush1.msra.mxu0 0.0
    %1563 = vmatprep.subr.mxu0 0.0
    %1564 = vmatpush1.msra.mxu0 0.0
    %1565 = vmatprep.subr.mxu0 0.0
    %1566 = vmatpush1.msra.mxu0 0.0
    %1567 = vmatprep.subr.mxu0 0.0
    %1568 = vmatpush1.msra.mxu0 0.0
    %1569 = vmatprep.subr.mxu0 0.0
    %1570 = vmatpush1.msra.mxu0 0.0
    %1571 = vmatprep.subr.mxu0 0.0
    %1572 = vmatpush1.msra.mxu0 0.0
    %1573 = vmatprep.subr.mxu0 0.0
    %1574 = vmatpush1.msra.mxu0 0.0
    %1575 = vmatprep.subr.mxu0 0.0
    %1576 = vmatpush1.msra.mxu0 0.0
    %1577 = vmatprep.subr.mxu0 0.0
    %1578 = vmatpush1.msra.mxu0 0.0
    %1579 = vmatprep.subr.mxu0 0.0
    %1580 = vmatpush1.msra.mxu0 0.0
    %1581 = vmatprep.subr.mxu0 0.0
    %1582 = vmatpush1.msra.mxu0 0.0
    %1583 = vmatprep.subr.mxu0 0.0
    %1584 = vmatpush1.msra.mxu0 0.0
    %1585 = vmatprep.subr.mxu0 0.0
    %1586 = vmatpush1.msra.mxu0 0.0
    %1587 = vmatprep.mubr.f32.mxu0 0.0
    %1588 = vmatmul.mubr.f32.gmra.mrb[0].mxu0 %v1518
    %v1589 = vpop.f32.mrb[0].mxu0
    %v1590 = vadd.f32 %v1516, %v1589
    %v1591 = vpop.f32.mrb[0].mxu0
    %1592 = vmatprep.mubr.f32.mxu0 0.0
    %1593 = vmatmul.mubr.f32.gmra.mrb[0].mxu0 %v1521
    %v1594 = vpop.f32.mrb[0].mxu0
    %v1595 = vadd.f32 %v1516, %v1594
    %v1596 = vpop.f32.mrb[0].mxu0
    %1597 = vdwg.mxu0
    %v1598 = vadd.f32 %v40, %v1590
    %v1599 = vadd.f32 %v41, %v1595
    %v1600 = vld [vmem:[#allocation5 + $0x50] sm:$0x1]
    %v1601 = vld [vmem:[#allocation5 + $0x58] sm:$0x1]
    %v1602 = vsel %vm51, %v1598, 0.0
    %1603 = vadd.xlane.f32.xlu0 %v1602
    %v1604 = vpop.xlane.xlu0 %1603
    %v1605 = vsel %vm51, %v1599, 0.0
    %1606 = vadd.xlane.f32.xlu0 %v1605
    %v1607 = vpop.xlane.xlu0 %1606
    %v1608 = vrcp.pop 32.0
    %v1609 = vmul.f32 %v1604, %v1608
    %v1610 = vmul.f32 %v1607, %v1608
    %v1611 = vmul.f32 %v1598, %v1598
    %v1612 = vmul.f32 %v1599, %v1599
    %v1613 = vsel %vm51, %v1611, 0.0
    %1614 = vadd.xlane.f32.xlu0 %v1613
    %v1615 = vpop.xlane.xlu0 %1614
    %v1616 = vsel %vm51, %v1612, 0.0
    %1617 = vadd.xlane.f32.xlu0 %v1616
    %v1618 = vpop.xlane.xlu0 %1617
    %v1619 = vmul.f32 %v1615, %v1608
    %v1620 = vmul.f32 %v1618, %v1608
    %v1621 = vmul.f32 %v1609, %v1609
    %v1622 = vmul.f32 %v1610, %v1610
    %v1623 = vsub.f32 %v1619, %v1621
    %v1624 = vsub.f32 %v1620, %v1622
    %v1625 = vsub.f32 %v1598, %v1609
    %v1626 = vsub.f32 %v1599, %v1610
    %v1627 = vadd.f32 %v1623, 1e-05
    %v1628 = vadd.f32 %v1624, 1e-05
    %v1629 = vrsqrt.pop %v1627
    %v1630 = vrsqrt.pop %v1628
    %v1631 = vmul.f32 %v1625, %v1629
    %v1632 = vmul.f32 %v1626, %v1630
    %v1633 = vlaneseq
    %v1634 = vshrl.u32 %v1633, 7
    %v1635 = vsub.s32 0, %v1634
    %v1636 = vrot.slane %v1600, %v1635
    %v1637 = vmul.f32 %v1631, %v1636
    %v1638 = vmul.f32 %v1632, %v1636
    %v1639 = vlaneseq
    %v1640 = vshrl.u32 %v1639, 7
    %v1641 = vsub.s32 0, %v1640
    %v1642 = vrot.slane %v1601, %v1641
    %v1643 = vadd.f32 %v1637, %v1642
    %v1644 = vadd.f32 %v1638, %v1642
    %v1645 = vld [vmem:[#allocation5 + $0x60] sm:$0xff]
    %v1646 = vld [vmem:[#allocation5 + $0x68] sm:$0xff]
    %v1647 = vld [vmem:[#allocation5 + $0x70] sm:$0xff]
    %v1648 = vld [vmem:[#allocation5 + $0x78] sm:$0xff]
    %v1649 = vld [vmem:[#allocation5 + $0x80] sm:$0x1]
    %v1650 = vlaneseq
    %v1651 = vshrl.u32 %v1650, 7
    %v1652 = vsub.s32 0, %v1651
    %v1653 = vrot.slane %v1649, %v1652
    %v1655 = vsel %vm51, %v1643, 0
    %v1658 = vsel %vm51, %v1644, 0
    %1660 = vmatprep.subr.mxu0 0.0
    %1661 = vmatpush1.msra.mxu0 %v1645
    %1662 = vmatprep.subr.mxu0 0.0
    %1663 = vmatpush1.msra.mxu0 %v1646
    %1664 = vmatprep.subr.mxu0 0.0
    %1665 = vmatpush1.msra.mxu0 %v1647
    %1666 = vmatprep.subr.mxu0 0.0
    %1667 = vmatpush1.msra.mxu0 %v1648
    %1668 = vmatprep.subr.mxu0 0.0
    %1669 = vmatpush1.msra.mxu0 0.0
    %1670 = vmatprep.subr.mxu0 0.0
    %1671 = vmatpush1.msra.mxu0 0.0
    %1672 = vmatprep.subr.mxu0 0.0
    %1673 = vmatpush1.msra.mxu0 0.0
    %1674 = vmatprep.subr.mxu0 0.0
    %1675 = vmatpush1.msra.mxu0 0.0
    %1676 = vmatprep.subr.mxu0 0.0
    %1677 = vmatpush1.msra.mxu0 0.0
    %1678 = vmatprep.subr.mxu0 0.0
    %1679 = vmatpush1.msra.mxu0 0.0
    %1680 = vmatprep.subr.mxu0 0.0
    %1681 = vmatpush1.msra.mxu0 0.0
    %1682 = vmatprep.subr.mxu0 0.0
    %1683 = vmatpush1.msra.mxu0 0.0
    %1684 = vmatprep.subr.mxu0 0.0
    %1685 = vmatpush1.msra.mxu0 0.0
    %1686 = vmatprep.subr.mxu0 0.0
    %1687 = vmatpush1.msra.mxu0 0.0
    %1688 = vmatprep.subr.mxu0 0.0
    %1689 = vmatpush1.msra.mxu0 0.0
    %1690 = vmatprep.subr.mxu0 0.0
    %1691 = vmatpush1.msra.mxu0 0.0
    %1692 = vmatprep.subr.mxu0 0.0
    %1693 = vmatpush1.msra.mxu0 0.0
    %1694 = vmatprep.subr.mxu0 0.0
    %1695 = vmatpush1.msra.mxu0 0.0
    %1696 = vmatprep.subr.mxu0 0.0
    %1697 = vmatpush1.msra.mxu0 0.0
    %1698 = vmatprep.subr.mxu0 0.0
    %1699 = vmatpush1.msra.mxu0 0.0
    %1700 = vmatprep.subr.mxu0 0.0
    %1701 = vmatpush1.msra.mxu0 0.0
    %1702 = vmatprep.subr.mxu0 0.0
    %1703 = vmatpush1.msra.mxu0 0.0
    %1704 = vmatprep.subr.mxu0 0.0
    %1705 = vmatpush1.msra.mxu0 0.0
    %1706 = vmatprep.subr.mxu0 0.0
    %1707 = vmatpush1.msra.mxu0 0.0
    %1708 = vmatprep.subr.mxu0 0.0
    %1709 = vmatpush1.msra.mxu0 0.0
    %1710 = vmatprep.subr.mxu0 0.0
    %1711 = vmatpush1.msra.mxu0 0.0
    %1712 = vmatprep.subr.mxu0 0.0
    %1713 = vmatpush1.msra.mxu0 0.0
    %1714 = vmatprep.subr.mxu0 0.0
    %1715 = vmatpush1.msra.mxu0 0.0
    %1716 = vmatprep.subr.mxu0 0.0
    %1717 = vmatpush1.msra.mxu0 0.0
    %1718 = vmatprep.subr.mxu0 0.0
    %1719 = vmatpush1.msra.mxu0 0.0
    %1720 = vmatprep.subr.mxu0 0.0
    %1721 = vmatpush1.msra.mxu0 0.0
    %1722 = vmatprep.subr.mxu0 0.0
    %1723 = vmatpush1.msra.mxu0 0.0
    %1724 = vmatprep.mubr.f32.mxu0 0.0
    %1725 = vmatmul.mubr.f32.gmra.mrb[0].mxu0 %v1655
    %v1726 = vpop.f32.mrb[0].mxu0
    %v1727 = vadd.f32 %v1653, %v1726
    %v1728 = vpop.f32.mrb[0].mxu0
    %1729 = vmatprep.mubr.f32.mxu0 0.0
    %1730 = vmatmul.mubr.f32.gmra.mrb[0].mxu0 %v1658
    %v1731 = vpop.f32.mrb[0].mxu0
    %v1732 = vadd.f32 %v1653, %v1731
    %v1733 = vpop.f32.mrb[0].mxu0
    %1734 = vdwg.mxu0
    %v1735 = vmax.f32 %v1727, 0.0
    %v1736 = vmax.f32 %v1732, 0.0
    %v1737 = vld [vmem:[#allocation5 + $0x88] sm:$0xff]
    %v1738 = vld [vmem:[#allocation5 + $0x90] sm:$0xff]
    %v1739 = vld [vmem:[#allocation5 + $0x98] sm:$0xff]
    %v1740 = vld [vmem:[#allocation5 + $0xa0] sm:$0xff]
    %v1741 = vld [vmem:[#allocation5 + $0xa8] sm:$0xff]
    %v1742 = vld [vmem:[#allocation5 + $0xb0] sm:$0xff]
    %v1743 = vld [vmem:[#allocation5 + $0xb8] sm:$0xff]
    %v1744 = vld [vmem:[#allocation5 + $0xc0] sm:$0xff]
    %v1745 = vld [vmem:[#allocation5 + $0xc8] sm:$0x1]
    %v1746 = vlaneseq
    %v1747 = vshrl.u32 %v1746, 7
    %v1748 = vsub.s32 0, %v1747
    %v1749 = vrot.slane %v1745, %v1748
    %vm1750 = vcmask 523264
    %v1752 = vsel %vm1750, %v1735, 0
    %v1755 = vsel %vm1750, %v1736, 0
    %1757 = vmatprep.subr.mxu0 0.0
    %1758 = vmatpush1.msra.mxu0 %v1737
    %1759 = vmatprep.subr.mxu0 0.0
    %1760 = vmatpush1.msra.mxu0 %v1738
    %1761 = vmatprep.subr.mxu0 0.0
    %1762 = vmatpush1.msra.mxu0 %v1739
    %1763 = vmatprep.subr.mxu0 0.0
    %1764 = vmatpush1.msra.mxu0 %v1740
    %1765 = vmatprep.subr.mxu0 0.0
    %1766 = vmatpush1.msra.mxu0 %v1741
    %1767 = vmatprep.subr.mxu0 0.0
    %1768 = vmatpush1.msra.mxu0 %v1742
    %1769 = vmatprep.subr.mxu0 0.0
    %1770 = vmatpush1.msra.mxu0 %v1743
    %1771 = vmatprep.subr.mxu0 0.0
    %1772 = vmatpush1.msra.mxu0 %v1744
    %1773 = vmatprep.subr.mxu0 0.0
    %1774 = vmatpush1.msra.mxu0 0.0
    %1775 = vmatprep.subr.mxu0 0.0
    %1776 = vmatpush1.msra.mxu0 0.0
    %1777 = vmatprep.subr.mxu0 0.0
    %1778 = vmatpush1.msra.mxu0 0.0
    %1779 = vmatprep.subr.mxu0 0.0
    %1780 = vmatpush1.msra.mxu0 0.0
    %1781 = vmatprep.subr.mxu0 0.0
    %1782 = vmatpush1.msra.mxu0 0.0
    %1783 = vmatprep.subr.mxu0 0.0
    %1784 = vmatpush1.msra.mxu0 0.0
    %1785 = vmatprep.subr.mxu0 0.0
    %1786 = vmatpush1.msra.mxu0 0.0
    %1787 = vmatprep.subr.mxu0 0.0
    %1788 = vmatpush1.msra.mxu0 0.0
    %1789 = vmatprep.subr.mxu0 0.0
    %1790 = vmatpush1.msra.mxu0 0.0
    %1791 = vmatprep.subr.mxu0 0.0
    %1792 = vmatpush1.msra.mxu0 0.0
    %1793 = vmatprep.subr.mxu0 0.0
    %1794 = vmatpush1.msra.mxu0 0.0
    %1795 = vmatprep.subr.mxu0 0.0
    %1796 = vmatpush1.msra.mxu0 0.0
    %1797 = vmatprep.subr.mxu0 0.0
    %1798 = vmatpush1.msra.mxu0 0.0
    %1799 = vmatprep.subr.mxu0 0.0
    %1800 = vmatpush1.msra.mxu0 0.0
    %1801 = vmatprep.subr.mxu0 0.0
    %1802 = vmatpush1.msra.mxu0 0.0
    %1803 = vmatprep.subr.mxu0 0.0
    %1804 = vmatpush1.msra.mxu0 0.0
    %1805 = vmatprep.subr.mxu0 0.0
    %1806 = vmatpush1.msra.mxu0 0.0
    %1807 = vmatprep.subr.mxu0 0.0
    %1808 = vmatpush1.msra.mxu0 0.0
    %1809 = vmatprep.subr.mxu0 0.0
    %1810 = vmatpush1.msra.mxu0 0.0
    %1811 = vmatprep.subr.mxu0 0.0
    %1812 = vmatpush1.msra.mxu0 0.0
    %1813 = vmatprep.subr.mxu0 0.0
    %1814 = vmatpush1.msra.mxu0 0.0
    %1815 = vmatprep.subr.mxu0 0.0
    %1816 = vmatpush1.msra.mxu0 0.0
    %1817 = vmatprep.subr.mxu0 0.0
    %1818 = vmatpush1.msra.mxu0 0.0
    %1819 = vmatprep.subr.mxu0 0.0
    %1820 = vmatpush1.msra.mxu0 0.0
    %1821 = vmatprep.mubr.f32.mxu0 0.0
    %1822 = vmatmul.mubr.f32.gmra.mrb[0].mxu0 %v1752
    %v1823 = vpop.f32.mrb[0].mxu0
    %v1824 = vadd.f32 %v1749, %v1823
    %v1825 = vpop.f32.mrb[0].mxu0
    %1826 = vmatprep.mubr.f32.mxu0 0.0
    %1827 = vmatmul.mubr.f32.gmra.mrb[0].mxu0 %v1755
    %v1828 = vpop.f32.mrb[0].mxu0
    %v1829 = vadd.f32 %v1749, %v1828
    %v1830 = vpop.f32.mrb[0].mxu0
    %1831 = vdwg.mxu0
    %v1832 = vadd.f32 %v1643, %v1824
    %v1833 = vadd.f32 %v1644, %v1829
    %v1834 = vld [vmem:[#allocation5 + $0xd0] sm:$0x1]
    %v1835 = vld [vmem:[#allocation5 + $0xd8] sm:$0x1]
    %v1836 = vsel %vm51, %v1832, 0.0
    %1837 = vadd.xlane.f32.xlu0 %v1836
    %v1838 = vpop.xlane.xlu0 %1837
    %v1839 = vsel %vm51, %v1833, 0.0
    %1840 = vadd.xlane.f32.xlu0 %v1839
    %v1841 = vpop.xlane.xlu0 %1840
    %v1842 = vmul.f32 %v1838, %v1608
    %v1843 = vmul.f32 %v1841, %v1608
    %v1844 = vmul.f32 %v1832, %v1832
    %v1845 = vmul.f32 %v1833, %v1833
    %v1846 = vsel %vm51, %v1844, 0.0
    %1847 = vadd.xlane.f32.xlu0 %v1846
    %v1848 = vpop.xlane.xlu0 %1847
    %v1849 = vsel %vm51, %v1845, 0.0
    %1850 = vadd.xlane.f32.xlu0 %v1849
    %v1851 = vpop.xlane.xlu0 %1850
    %v1852 = vmul.f32 %v1848, %v1608
    %v1853 = vmul.f32 %v1851, %v1608
    %v1854 = vmul.f32 %v1842, %v1842
    %v1855 = vmul.f32 %v1843, %v1843
    %v1856 = vsub.f32 %v1852, %v1854
    %v1857 = vsub.f32 %v1853, %v1855
    %v1858 = vsub.f32 %v1832, %v1842
    %v1859 = vsub.f32 %v1833, %v1843
    %v1860 = vadd.f32 %v1856, 1e-05
    %v1861 = vadd.f32 %v1857, 1e-05
    %v1862 = vrsqrt.pop %v1860
    %v1863 = vrsqrt.pop %v1861
    %v1864 = vmul.f32 %v1858, %v1862
    %v1865 = vmul.f32 %v1859, %v1863
    %v1866 = vlaneseq
    %v1867 = vshrl.u32 %v1866, 7
    %v1868 = vsub.s32 0, %v1867
    %v1869 = vrot.slane %v1834, %v1868
    %v1870 = vmul.f32 %v1864, %v1869
    %v1871 = vmul.f32 %v1865, %v1869
    %v1872 = vlaneseq
    %v1873 = vshrl.u32 %v1872, 7
    %v1874 = vsub.s32 0, %v1873
    %v1875 = vrot.slane %v1835, %v1874
    %v1876 = vadd.f32 %v1870, %v1875
    %v1877 = vadd.f32 %v1871, %v1875
    %v1878 = vld [vmem:[#allocation5 + $0xe0] sm:$0xff]
    %v1879 = vld [vmem:[#allocation5 + $0xe8] sm:$0xff]
    %v1880 = vld [vmem:[#allocation5 + $0xf0] sm:$0xff]
    %v1881 = vld [vmem:[#allocation5 + $0xf8] sm:$0xff]
    %v1882 = vld [vmem:[#allocation5 + $0x100] sm:$0x1]
    %v1883 = vlaneseq
    %v1884 = vshrl.u32 %v1883, 7
    %v1885 = vsub.s32 0, %v1884
    %v1886 = vrot.slane %v1882, %v1885
    %v1888 = vsel %vm51, %v1876, 0
    %v1891 = vsel %vm51, %v1877, 0
    %1893 = vmatprep.subr.mxu0 0.0
    %1894 = vmatpush1.msra.mxu0 %v1878
    %1895 = vmatprep.subr.mxu0 0.0
    %1896 = vmatpush1.msra.mxu0 %v1879
    %1897 = vmatprep.subr.mxu0 0.0
    %1898 = vmatpush1.msra.mxu0 %v1880
    %1899 = vmatprep.subr.mxu0 0.0
    %1900 = vmatpush1.msra.mxu0 %v1881
    %1901 = vmatprep.subr.mxu0 0.0
    %1902 = vmatpush1.msra.mxu0 0.0
    %1903 = vmatprep.subr.mxu0 0.0
    %1904 = vmatpush1.msra.mxu0 0.0
    %1905 = vmatprep.subr.mxu0 0.0
    %1906 = vmatpush1.msra.mxu0 0.0
    %1907 = vmatprep.subr.mxu0 0.0
    %1908 = vmatpush1.msra.mxu0 0.0
    %1909 = vmatprep.subr.mxu0 0.0
    %1910 = vmatpush1.msra.mxu0 0.0
    %1911 = vmatprep.subr.mxu0 0.0
    %1912 = vmatpush1.msra.mxu0 0.0
    %1913 = vmatprep.subr.mxu0 0.0
    %1914 = vmatpush1.msra.mxu0 0.0
    %1915 = vmatprep.subr.mxu0 0.0
    %1916 = vmatpush1.msra.mxu0 0.0
    %1917 = vmatprep.subr.mxu0 0.0
    %1918 = vmatpush1.msra.mxu0 0.0
    %1919 = vmatprep.subr.mxu0 0.0
    %1920 = vmatpush1.msra.mxu0 0.0
    %1921 = vmatprep.subr.mxu0 0.0
    %1922 = vmatpush1.msra.mxu0 0.0
    %1923 = vmatprep.subr.mxu0 0.0
    %1924 = vmatpush1.msra.mxu0 0.0
    %1925 = vmatprep.subr.mxu0 0.0
    %1926 = vmatpush1.msra.mxu0 0.0
    %1927 = vmatprep.subr.mxu0 0.0
    %1928 = vmatpush1.msra.mxu0 0.0
    %1929 = vmatprep.subr.mxu0 0.0
    %1930 = vmatpush1.msra.mxu0 0.0
    %1931 = vmatprep.subr.mxu0 0.0
    %1932 = vmatpush1.msra.mxu0 0.0
    %1933 = vmatprep.subr.mxu0 0.0
    %1934 = vmatpush1.msra.mxu0 0.0
    %1935 = vmatprep.subr.mxu0 0.0
    %1936 = vmatpush1.msra.mxu0 0.0
    %1937 = vmatprep.subr.mxu0 0.0
    %1938 = vmatpush1.msra.mxu0 0.0
    %1939 = vmatprep.subr.mxu0 0.0
    %1940 = vmatpush1.msra.mxu0 0.0
    %1941 = vmatprep.subr.mxu0 0.0
    %1942 = vmatpush1.msra.mxu0 0.0
    %1943 = vmatprep.subr.mxu0 0.0
    %1944 = vmatpush1.msra.mxu0 0.0
    %1945 = vmatprep.subr.mxu0 0.0
    %1946 = vmatpush1.msra.mxu0 0.0
    %1947 = vmatprep.subr.mxu0 0.0
    %1948 = vmatpush1.msra.mxu0 0.0
    %1949 = vmatprep.subr.mxu0 0.0
    %1950 = vmatpush1.msra.mxu0 0.0
    %1951 = vmatprep.subr.mxu0 0.0
    %1952 = vmatpush1.msra.mxu0 0.0
    %1953 = vmatprep.subr.mxu0 0.0
    %1954 = vmatpush1.msra.mxu0 0.0
    %1955 = vmatprep.subr.mxu0 0.0
    %1956 = vmatpush1.msra.mxu0 0.0
    %1957 = vmatprep.mubr.f32.mxu0 0.0
    %1958 = vmatmul.mubr.f32.gmra.mrb[0].mxu0 %v1888
    %v1959 = vpop.f32.mrb[0].mxu0
    %v1960 = vadd.f32 %v1886, %v1959
    %v1961 = vpop.f32.mrb[0].mxu0
    %1962 = vmatprep.mubr.f32.mxu0 0.0
    %1963 = vmatmul.mubr.f32.gmra.mrb[0].mxu0 %v1891
    %v1964 = vpop.f32.mrb[0].mxu0
    %v1965 = vadd.f32 %v1886, %v1964
    %v1966 = vpop.f32.mrb[0].mxu0
    %1967 = vdwg.mxu0
    %1970 = vrot.lane.b32.xlu0 %v1960, 104
    %v1971 = vpop.permute.xlu0 %1970
    %1972 = vrot.lane.b32.xlu0 %v1965, 104
    %v1973 = vpop.permute.xlu0 %1972
    %1974 = vrot.lane.b32.xlu0 %v1960, 80
    %v1975 = vpop.permute.xlu0 %1974
    %1976 = vrot.lane.b32.xlu0 %v1965, 80
    %v1977 = vpop.permute.xlu0 %1976
    %1978 = vrot.lane.b32.xlu0 %v1960, 56
    %v1979 = vpop.permute.xlu0 %1978
    %1980 = vrot.lane.b32.xlu0 %v1965, 56
    %v1981 = vpop.permute.xlu0 %1980
    %1982 = vrot.lane.b32.xlu0 %v1960, 120
    %v1983 = vpop.permute.xlu0 %1982
    %v1984 = vsel %vm149, %v1960, 0
    %v1986 = vsel %vm149, %v1983, 0
    %1988 = vmatprep.subr.mxu0 0.0
    %1989 = vmatpush1.xpose.msra.mxu0 %v1986
    %1990 = vmatprep.subr.mxu0 0.0
    %1991 = vmatpush1.xpose.msra.mxu0 0.0
    %1992 = vmatprep.subr.mxu0 0.0
    %1993 = vmatpush1.xpose.msra.mxu0 0.0
    %1994 = vmatprep.subr.mxu0 0.0
    %1995 = vmatpush1.xpose.msra.mxu0 0.0
    %1996 = vmatprep.subr.mxu0 0.0
    %1997 = vmatpush1.xpose.msra.mxu0 0.0
    %1998 = vmatprep.subr.mxu0 0.0
    %1999 = vmatpush1.xpose.msra.mxu0 0.0
    %2000 = vmatprep.subr.mxu0 0.0
    %2001 = vmatpush1.xpose.msra.mxu0 0.0
    %2002 = vmatprep.subr.mxu0 0.0
    %2003 = vmatpush1.xpose.msra.mxu0 0.0
    %2004 = vmatprep.subr.mxu0 0.0
    %2005 = vmatpush1.xpose.msra.mxu0 0.0
    %2006 = vmatprep.subr.mxu0 0.0
    %2007 = vmatpush1.xpose.msra.mxu0 0.0
    %2008 = vmatprep.subr.mxu0 0.0
    %2009 = vmatpush1.xpose.msra.mxu0 0.0
    %2010 = vmatprep.subr.mxu0 0.0
    %2011 = vmatpush1.xpose.msra.mxu0 0.0
    %2012 = vmatprep.subr.mxu0 0.0
    %2013 = vmatpush1.xpose.msra.mxu0 0.0
    %2014 = vmatprep.subr.mxu0 0.0
    %2015 = vmatpush1.xpose.msra.mxu0 0.0
    %2016 = vmatprep.subr.mxu0 0.0
    %2017 = vmatpush1.xpose.msra.mxu0 0.0
    %2018 = vmatprep.subr.mxu0 0.0
    %2019 = vmatpush1.xpose.msra.mxu0 0.0
    %2020 = vmatprep.subr.mxu0 0.0
    %2021 = vmatpush1.xpose.msra.mxu0 0.0
    %2022 = vmatprep.subr.mxu0 0.0
    %2023 = vmatpush1.xpose.msra.mxu0 0.0
    %2024 = vmatprep.subr.mxu0 0.0
    %2025 = vmatpush1.xpose.msra.mxu0 0.0
    %2026 = vmatprep.subr.mxu0 0.0
    %2027 = vmatpush1.xpose.msra.mxu0 0.0
    %2028 = vmatprep.subr.mxu0 0.0
    %2029 = vmatpush1.xpose.msra.mxu0 0.0
    %2030 = vmatprep.subr.mxu0 0.0
    %2031 = vmatpush1.xpose.msra.mxu0 0.0
    %2032 = vmatprep.subr.mxu0 0.0
    %2033 = vmatpush1.xpose.msra.mxu0 0.0
    %2034 = vmatprep.subr.mxu0 0.0
    %2035 = vmatpush1.xpose.msra.mxu0 0.0
    %2036 = vmatprep.subr.mxu0 0.0
    %2037 = vmatpush1.xpose.msra.mxu0 0.0
    %2038 = vmatprep.subr.mxu0 0.0
    %2039 = vmatpush1.xpose.msra.mxu0 0.0
    %2040 = vmatprep.subr.mxu0 0.0
    %2041 = vmatpush1.xpose.msra.mxu0 0.0
    %2042 = vmatprep.subr.mxu0 0.0
    %2043 = vmatpush1.xpose.msra.mxu0 0.0
    %2044 = vmatprep.subr.mxu0 0.0
    %2045 = vmatpush1.xpose.msra.mxu0 0.0
    %2046 = vmatprep.subr.mxu0 0.0
    %2047 = vmatpush1.xpose.msra.mxu0 0.0
    %2048 = vmatprep.subr.mxu0 0.0
    %2049 = vmatpush1.xpose.msra.mxu0 0.0
    %2050 = vmatprep.subr.mxu0 0.0
    %2051 = vmatpush1.xpose.msra.mxu0 0.0
    %2052 = vmatprep.mubr.f32.mxu0 0.0
    %2053 = vmatmul.mubr.f32.gmra.mrb[0].mxu0 %v1984
    %v2054 = vpop.f32.mrb[0].mxu0
    %v2055 = vadd.f32 0.0, %v2054
    %v2056 = vpop.f32.mrb[0].mxu0
    %2057 = vdwg.mxu0
    %2058 = vrot.lane.b32.xlu0 %v1965, 120
    %v2059 = vpop.permute.xlu0 %2058
    %v2060 = vsel %vm149, %v1965, 0
    %v2062 = vsel %vm149, %v2059, 0
    %2064 = vmatprep.subr.mxu0 0.0
    %2065 = vmatpush1.xpose.msra.mxu0 %v2062
    %2066 = vmatprep.subr.mxu0 0.0
    %2067 = vmatpush1.xpose.msra.mxu0 0.0
    %2068 = vmatprep.subr.mxu0 0.0
    %2069 = vmatpush1.xpose.msra.mxu0 0.0
    %2070 = vmatprep.subr.mxu0 0.0
    %2071 = vmatpush1.xpose.msra.mxu0 0.0
    %2072 = vmatprep.subr.mxu0 0.0
    %2073 = vmatpush1.xpose.msra.mxu0 0.0
    %2074 = vmatprep.subr.mxu0 0.0
    %2075 = vmatpush1.xpose.msra.mxu0 0.0
    %2076 = vmatprep.subr.mxu0 0.0
    %2077 = vmatpush1.xpose.msra.mxu0 0.0
    %2078 = vmatprep.subr.mxu0 0.0
    %2079 = vmatpush1.xpose.msra.mxu0 0.0
    %2080 = vmatprep.subr.mxu0 0.0
    %2081 = vmatpush1.xpose.msra.mxu0 0.0
    %2082 = vmatprep.subr.mxu0 0.0
    %2083 = vmatpush1.xpose.msra.mxu0 0.0
    %2084 = vmatprep.subr.mxu0 0.0
    %2085 = vmatpush1.xpose.msra.mxu0 0.0
    %2086 = vmatprep.subr.mxu0 0.0
    %2087 = vmatpush1.xpose.msra.mxu0 0.0
    %2088 = vmatprep.subr.mxu0 0.0
    %2089 = vmatpush1.xpose.msra.mxu0 0.0
    %2090 = vmatprep.subr.mxu0 0.0
    %2091 = vmatpush1.xpose.msra.mxu0 0.0
    %2092 = vmatprep.subr.mxu0 0.0
    %2093 = vmatpush1.xpose.msra.mxu0 0.0
    %2094 = vmatprep.subr.mxu0 0.0
    %2095 = vmatpush1.xpose.msra.mxu0 0.0
    %2096 = vmatprep.subr.mxu0 0.0
    %2097 = vmatpush1.xpose.msra.mxu0 0.0
    %2098 = vmatprep.subr.mxu0 0.0
    %2099 = vmatpush1.xpose.msra.mxu0 0.0
    %2100 = vmatprep.subr.mxu0 0.0
    %2101 = vmatpush1.xpose.msra.mxu0 0.0
    %2102 = vmatprep.subr.mxu0 0.0
    %2103 = vmatpush1.xpose.msra.mxu0 0.0
    %2104 = vmatprep.subr.mxu0 0.0
    %2105 = vmatpush1.xpose.msra.mxu0 0.0
    %2106 = vmatprep.subr.mxu0 0.0
    %2107 = vmatpush1.xpose.msra.mxu0 0.0
    %2108 = vmatprep.subr.mxu0 0.0
    %2109 = vmatpush1.xpose.msra.mxu0 0.0
    %2110 = vmatprep.subr.mxu0 0.0
    %2111 = vmatpush1.xpose.msra.mxu0 0.0
    %2112 = vmatprep.subr.mxu0 0.0
    %2113 = vmatpush1.xpose.msra.mxu0 0.0
    %2114 = vmatprep.subr.mxu0 0.0
    %2115 = vmatpush1.xpose.msra.mxu0 0.0
    %2116 = vmatprep.subr.mxu0 0.0
    %2117 = vmatpush1.xpose.msra.mxu0 0.0
    %2118 = vmatprep.subr.mxu0 0.0
    %2119 = vmatpush1.xpose.msra.mxu0 0.0
    %2120 = vmatprep.subr.mxu0 0.0
    %2121 = vmatpush1.xpose.msra.mxu0 0.0
    %2122 = vmatprep.subr.mxu0 0.0
    %2123 = vmatpush1.xpose.msra.mxu0 0.0
    %2124 = vmatprep.subr.mxu0 0.0
    %2125 = vmatpush1.xpose.msra.mxu0 0.0
    %2126 = vmatprep.subr.mxu0 0.0
    %2127 = vmatpush1.xpose.msra.mxu0 0.0
    %2128 = vmatprep.mubr.f32.mxu0 0.0
    %2129 = vmatmul.mubr.f32.gmra.mrb[0].mxu0 %v2060
    %v2130 = vpop.f32.mrb[0].mxu0
    %v2131 = vadd.f32 0.0, %v2130
    %v2132 = vpop.f32.mrb[0].mxu0
    %2133 = vdwg.mxu0
    %2134 = vrot.lane.b32.xlu0 %v1971, 120
    %v2135 = vpop.permute.xlu0 %2134
    %v2136 = vsel %vm149, %v1971, 0
    %v2138 = vsel %vm149, %v2135, 0
    %2140 = vmatprep.subr.mxu0 0.0
    %2141 = vmatpush1.xpose.msra.mxu0 %v2138
    %2142 = vmatprep.subr.mxu0 0.0
    %2143 = vmatpush1.xpose.msra.mxu0 0.0
    %2144 = vmatprep.subr.mxu0 0.0
    %2145 = vmatpush1.xpose.msra.mxu0 0.0
    %2146 = vmatprep.subr.mxu0 0.0
    %2147 = vmatpush1.xpose.msra.mxu0 0.0
    %2148 = vmatprep.subr.mxu0 0.0
    %2149 = vmatpush1.xpose.msra.mxu0 0.0
    %2150 = vmatprep.subr.mxu0 0.0
    %2151 = vmatpush1.xpose.msra.mxu0 0.0
    %2152 = vmatprep.subr.mxu0 0.0
    %2153 = vmatpush1.xpose.msra.mxu0 0.0
    %2154 = vmatprep.subr.mxu0 0.0
    %2155 = vmatpush1.xpose.msra.mxu0 0.0
    %2156 = vmatprep.subr.mxu0 0.0
    %2157 = vmatpush1.xpose.msra.mxu0 0.0
    %2158 = vmatprep.subr.mxu0 0.0
    %2159 = vmatpush1.xpose.msra.mxu0 0.0
    %2160 = vmatprep.subr.mxu0 0.0
    %2161 = vmatpush1.xpose.msra.mxu0 0.0
    %2162 = vmatprep.subr.mxu0 0.0
    %2163 = vmatpush1.xpose.msra.mxu0 0.0
    %2164 = vmatprep.subr.mxu0 0.0
    %2165 = vmatpush1.xpose.msra.mxu0 0.0
    %2166 = vmatprep.subr.mxu0 0.0
    %2167 = vmatpush1.xpose.msra.mxu0 0.0
    %2168 = vmatprep.subr.mxu0 0.0
    %2169 = vmatpush1.xpose.msra.mxu0 0.0
    %2170 = vmatprep.subr.mxu0 0.0
    %2171 = vmatpush1.xpose.msra.mxu0 0.0
    %2172 = vmatprep.subr.mxu0 0.0
    %2173 = vmatpush1.xpose.msra.mxu0 0.0
    %2174 = vmatprep.subr.mxu0 0.0
    %2175 = vmatpush1.xpose.msra.mxu0 0.0
    %2176 = vmatprep.subr.mxu0 0.0
    %2177 = vmatpush1.xpose.msra.mxu0 0.0
    %2178 = vmatprep.subr.mxu0 0.0
    %2179 = vmatpush1.xpose.msra.mxu0 0.0
    %2180 = vmatprep.subr.mxu0 0.0
    %2181 = vmatpush1.xpose.msra.mxu0 0.0
    %2182 = vmatprep.subr.mxu0 0.0
    %2183 = vmatpush1.xpose.msra.mxu0 0.0
    %2184 = vmatprep.subr.mxu0 0.0
    %2185 = vmatpush1.xpose.msra.mxu0 0.0
    %2186 = vmatprep.subr.mxu0 0.0
    %2187 = vmatpush1.xpose.msra.mxu0 0.0
    %2188 = vmatprep.subr.mxu0 0.0
    %2189 = vmatpush1.xpose.msra.mxu0 0.0
    %2190 = vmatprep.subr.mxu0 0.0
    %2191 = vmatpush1.xpose.msra.mxu0 0.0
    %2192 = vmatprep.subr.mxu0 0.0
    %2193 = vmatpush1.xpose.msra.mxu0 0.0
    %2194 = vmatprep.subr.mxu0 0.0
    %2195 = vmatpush1.xpose.msra.mxu0 0.0
    %2196 = vmatprep.subr.mxu0 0.0
    %2197 = vmatpush1.xpose.msra.mxu0 0.0
    %2198 = vmatprep.subr.mxu0 0.0
    %2199 = vmatpush1.xpose.msra.mxu0 0.0
    %2200 = vmatprep.subr.mxu0 0.0
    %2201 = vmatpush1.xpose.msra.mxu0 0.0
    %2202 = vmatprep.subr.mxu0 0.0
    %2203 = vmatpush1.xpose.msra.mxu0 0.0
    %2204 = vmatprep.mubr.f32.mxu0 0.0
    %2205 = vmatmul.mubr.f32.gmra.mrb[0].mxu0 %v2136
    %v2206 = vpop.f32.mrb[0].mxu0
    %v2207 = vadd.f32 0.0, %v2206
    %v2208 = vpop.f32.mrb[0].mxu0
    %2209 = vdwg.mxu0
    %2210 = vrot.lane.b32.xlu0 %v1973, 120
    %v2211 = vpop.permute.xlu0 %2210
    %v2212 = vsel %vm149, %v1973, 0
    %v2214 = vsel %vm149, %v2211, 0
    %2216 = vmatprep.subr.mxu0 0.0
    %2217 = vmatpush1.xpose.msra.mxu0 %v2214
    %2218 = vmatprep.subr.mxu0 0.0
    %2219 = vmatpush1.xpose.msra.mxu0 0.0
    %2220 = vmatprep.subr.mxu0 0.0
    %2221 = vmatpush1.xpose.msra.mxu0 0.0
    %2222 = vmatprep.subr.mxu0 0.0
    %2223 = vmatpush1.xpose.msra.mxu0 0.0
    %2224 = vmatprep.subr.mxu0 0.0
    %2225 = vmatpush1.xpose.msra.mxu0 0.0
    %2226 = vmatprep.subr.mxu0 0.0
    %2227 = vmatpush1.xpose.msra.mxu0 0.0
    %2228 = vmatprep.subr.mxu0 0.0
    %2229 = vmatpush1.xpose.msra.mxu0 0.0
    %2230 = vmatprep.subr.mxu0 0.0
    %2231 = vmatpush1.xpose.msra.mxu0 0.0
    %2232 = vmatprep.subr.mxu0 0.0
    %2233 = vmatpush1.xpose.msra.mxu0 0.0
    %2234 = vmatprep.subr.mxu0 0.0
    %2235 = vmatpush1.xpose.msra.mxu0 0.0
    %2236 = vmatprep.subr.mxu0 0.0
    %2237 = vmatpush1.xpose.msra.mxu0 0.0
    %2238 = vmatprep.subr.mxu0 0.0
    %2239 = vmatpush1.xpose.msra.mxu0 0.0
    %2240 = vmatprep.subr.mxu0 0.0
    %2241 = vmatpush1.xpose.msra.mxu0 0.0
    %2242 = vmatprep.subr.mxu0 0.0
    %2243 = vmatpush1.xpose.msra.mxu0 0.0
    %2244 = vmatprep.subr.mxu0 0.0
    %2245 = vmatpush1.xpose.msra.mxu0 0.0
    %2246 = vmatprep.subr.mxu0 0.0
    %2247 = vmatpush1.xpose.msra.mxu0 0.0
    %2248 = vmatprep.subr.mxu0 0.0
    %2249 = vmatpush1.xpose.msra.mxu0 0.0
    %2250 = vmatprep.subr.mxu0 0.0
    %2251 = vmatpush1.xpose.msra.mxu0 0.0
    %2252 = vmatprep.subr.mxu0 0.0
    %2253 = vmatpush1.xpose.msra.mxu0 0.0
    %2254 = vmatprep.subr.mxu0 0.0
    %2255 = vmatpush1.xpose.msra.mxu0 0.0
    %2256 = vmatprep.subr.mxu0 0.0
    %2257 = vmatpush1.xpose.msra.mxu0 0.0
    %2258 = vmatprep.subr.mxu0 0.0
    %2259 = vmatpush1.xpose.msra.mxu0 0.0
    %2260 = vmatprep.subr.mxu0 0.0
    %2261 = vmatpush1.xpose.msra.mxu0 0.0
    %2262 = vmatprep.subr.mxu0 0.0
    %2263 = vmatpush1.xpose.msra.mxu0 0.0
    %2264 = vmatprep.subr.mxu0 0.0
    %2265 = vmatpush1.xpose.msra.mxu0 0.0
    %2266 = vmatprep.subr.mxu0 0.0
    %2267 = vmatpush1.xpose.msra.mxu0 0.0
    %2268 = vmatprep.subr.mxu0 0.0
    %2269 = vmatpush1.xpose.msra.mxu0 0.0
    %2270 = vmatprep.subr.mxu0 0.0
    %2271 = vmatpush1.xpose.msra.mxu0 0.0
    %2272 = vmatprep.subr.mxu0 0.0
    %2273 = vmatpush1.xpose.msra.mxu0 0.0
    %2274 = vmatprep.subr.mxu0 0.0
    %2275 = vmatpush1.xpose.msra.mxu0 0.0
    %2276 = vmatprep.subr.mxu0 0.0
    %2277 = vmatpush1.xpose.msra.mxu0 0.0
    %2278 = vmatprep.subr.mxu0 0.0
    %2279 = vmatpush1.xpose.msra.mxu0 0.0
    %2280 = vmatprep.mubr.f32.mxu0 0.0
    %2281 = vmatmul.mubr.f32.gmra.mrb[0].mxu0 %v2212
    %v2282 = vpop.f32.mrb[0].mxu0
    %v2283 = vadd.f32 0.0, %v2282
    %v2284 = vpop.f32.mrb[0].mxu0
    %2285 = vdwg.mxu0
    %2286 = vrot.lane.b32.xlu0 %v1975, 120
    %v2287 = vpop.permute.xlu0 %2286
    %v2288 = vsel %vm149, %v1975, 0
    %v2290 = vsel %vm149, %v2287, 0
    %2292 = vmatprep.subr.mxu0 0.0
    %2293 = vmatpush1.xpose.msra.mxu0 %v2290
    %2294 = vmatprep.subr.mxu0 0.0
    %2295 = vmatpush1.xpose.msra.mxu0 0.0
    %2296 = vmatprep.subr.mxu0 0.0
    %2297 = vmatpush1.xpose.msra.mxu0 0.0
    %2298 = vmatprep.subr.mxu0 0.0
    %2299 = vmatpush1.xpose.msra.mxu0 0.0
    %2300 = vmatprep.subr.mxu0 0.0
    %2301 = vmatpush1.xpose.msra.mxu0 0.0
    %2302 = vmatprep.subr.mxu0 0.0
    %2303 = vmatpush1.xpose.msra.mxu0 0.0
    %2304 = vmatprep.subr.mxu0 0.0
    %2305 = vmatpush1.xpose.msra.mxu0 0.0
    %2306 = vmatprep.subr.mxu0 0.0
    %2307 = vmatpush1.xpose.msra.mxu0 0.0
    %2308 = vmatprep.subr.mxu0 0.0
    %2309 = vmatpush1.xpose.msra.mxu0 0.0
    %2310 = vmatprep.subr.mxu0 0.0
    %2311 = vmatpush1.xpose.msra.mxu0 0.0
    %2312 = vmatprep.subr.mxu0 0.0
    %2313 = vmatpush1.xpose.msra.mxu0 0.0
    %2314 = vmatprep.subr.mxu0 0.0
    %2315 = vmatpush1.xpose.msra.mxu0 0.0
    %2316 = vmatprep.subr.mxu0 0.0
    %2317 = vmatpush1.xpose.msra.mxu0 0.0
    %2318 = vmatprep.subr.mxu0 0.0
    %2319 = vmatpush1.xpose.msra.mxu0 0.0
    %2320 = vmatprep.subr.mxu0 0.0
    %2321 = vmatpush1.xpose.msra.mxu0 0.0
    %2322 = vmatprep.subr.mxu0 0.0
    %2323 = vmatpush1.xpose.msra.mxu0 0.0
    %2324 = vmatprep.subr.mxu0 0.0
    %2325 = vmatpush1.xpose.msra.mxu0 0.0
    %2326 = vmatprep.subr.mxu0 0.0
    %2327 = vmatpush1.xpose.msra.mxu0 0.0
    %2328 = vmatprep.subr.mxu0 0.0
    %2329 = vmatpush1.xpose.msra.mxu0 0.0
    %2330 = vmatprep.subr.mxu0 0.0
    %2331 = vmatpush1.xpose.msra.mxu0 0.0
    %2332 = vmatprep.subr.mxu0 0.0
    %2333 = vmatpush1.xpose.msra.mxu0 0.0
    %2334 = vmatprep.subr.mxu0 0.0
    %2335 = vmatpush1.xpose.msra.mxu0 0.0
    %2336 = vmatprep.subr.mxu0 0.0
    %2337 = vmatpush1.xpose.msra.mxu0 0.0
    %2338 = vmatprep.subr.mxu0 0.0
    %2339 = vmatpush1.xpose.msra.mxu0 0.0
    %2340 = vmatprep.subr.mxu0 0.0
    %2341 = vmatpush1.xpose.msra.mxu0 0.0
    %2342 = vmatprep.subr.mxu0 0.0
    %2343 = vmatpush1.xpose.msra.mxu0 0.0
    %2344 = vmatprep.subr.mxu0 0.0
    %2345 = vmatpush1.xpose.msra.mxu0 0.0
    %2346 = vmatprep.subr.mxu0 0.0
    %2347 = vmatpush1.xpose.msra.mxu0 0.0
    %2348 = vmatprep.subr.mxu0 0.0
    %2349 = vmatpush1.xpose.msra.mxu0 0.0
    %2350 = vmatprep.subr.mxu0 0.0
    %2351 = vmatpush1.xpose.msra.mxu0 0.0
    %2352 = vmatprep.subr.mxu0 0.0
    %2353 = vmatpush1.xpose.msra.mxu0 0.0
    %2354 = vmatprep.subr.mxu0 0.0
    %2355 = vmatpush1.xpose.msra.mxu0 0.0
    %2356 = vmatprep.mubr.f32.mxu0 0.0
    %2357 = vmatmul.mubr.f32.gmra.mrb[0].mxu0 %v2288
    %v2358 = vpop.f32.mrb[0].mxu0
    %v2359 = vadd.f32 0.0, %v2358
    %v2360 = vpop.f32.mrb[0].mxu0
    %2361 = vdwg.mxu0
    %2362 = vrot.lane.b32.xlu0 %v1977, 120
    %v2363 = vpop.permute.xlu0 %2362
    %v2364 = vsel %vm149, %v1977, 0
    %v2366 = vsel %vm149, %v2363, 0
    %2368 = vmatprep.subr.mxu0 0.0
    %2369 = vmatpush1.xpose.msra.mxu0 %v2366
    %2370 = vmatprep.subr.mxu0 0.0
    %2371 = vmatpush1.xpose.msra.mxu0 0.0
    %2372 = vmatprep.subr.mxu0 0.0
    %2373 = vmatpush1.xpose.msra.mxu0 0.0
    %2374 = vmatprep.subr.mxu0 0.0
    %2375 = vmatpush1.xpose.msra.mxu0 0.0
    %2376 = vmatprep.subr.mxu0 0.0
    %2377 = vmatpush1.xpose.msra.mxu0 0.0
    %2378 = vmatprep.subr.mxu0 0.0
    %2379 = vmatpush1.xpose.msra.mxu0 0.0
    %2380 = vmatprep.subr.mxu0 0.0
    %2381 = vmatpush1.xpose.msra.mxu0 0.0
    %2382 = vmatprep.subr.mxu0 0.0
    %2383 = vmatpush1.xpose.msra.mxu0 0.0
    %2384 = vmatprep.subr.mxu0 0.0
    %2385 = vmatpush1.xpose.msra.mxu0 0.0
    %2386 = vmatprep.subr.mxu0 0.0
    %2387 = vmatpush1.xpose.msra.mxu0 0.0
    %2388 = vmatprep.subr.mxu0 0.0
    %2389 = vmatpush1.xpose.msra.mxu0 0.0
    %2390 = vmatprep.subr.mxu0 0.0
    %2391 = vmatpush1.xpose.msra.mxu0 0.0
    %2392 = vmatprep.subr.mxu0 0.0
    %2393 = vmatpush1.xpose.msra.mxu0 0.0
    %2394 = vmatprep.subr.mxu0 0.0
    %2395 = vmatpush1.xpose.msra.mxu0 0.0
    %2396 = vmatprep.subr.mxu0 0.0
    %2397 = vmatpush1.xpose.msra.mxu0 0.0
    %2398 = vmatprep.subr.mxu0 0.0
    %2399 = vmatpush1.xpose.msra.mxu0 0.0
    %2400 = vmatprep.subr.mxu0 0.0
    %2401 = vmatpush1.xpose.msra.mxu0 0.0
    %2402 = vmatprep.subr.mxu0 0.0
    %2403 = vmatpush1.xpose.msra.mxu0 0.0
    %2404 = vmatprep.subr.mxu0 0.0
    %2405 = vmatpush1.xpose.msra.mxu0 0.0
    %2406 = vmatprep.subr.mxu0 0.0
    %2407 = vmatpush1.xpose.msra.mxu0 0.0
    %2408 = vmatprep.subr.mxu0 0.0
    %2409 = vmatpush1.xpose.msra.mxu0 0.0
    %2410 = vmatprep.subr.mxu0 0.0
    %2411 = vmatpush1.xpose.msra.mxu0 0.0
    %2412 = vmatprep.subr.mxu0 0.0
    %2413 = vmatpush1.xpose.msra.mxu0 0.0
    %2414 = vmatprep.subr.mxu0 0.0
    %2415 = vmatpush1.xpose.msra.mxu0 0.0
    %2416 = vmatprep.subr.mxu0 0.0
    %2417 = vmatpush1.xpose.msra.mxu0 0.0
    %2418 = vmatprep.subr.mxu0 0.0
    %2419 = vmatpush1.xpose.msra.mxu0 0.0
    %2420 = vmatprep.subr.mxu0 0.0
    %2421 = vmatpush1.xpose.msra.mxu0 0.0
    %2422 = vmatprep.subr.mxu0 0.0
    %2423 = vmatpush1.xpose.msra.mxu0 0.0
    %2424 = vmatprep.subr.mxu0 0.0
    %2425 = vmatpush1.xpose.msra.mxu0 0.0
    %2426 = vmatprep.subr.mxu0 0.0
    %2427 = vmatpush1.xpose.msra.mxu0 0.0
    %2428 = vmatprep.subr.mxu0 0.0
    %2429 = vmatpush1.xpose.msra.mxu0 0.0
    %2430 = vmatprep.subr.mxu0 0.0
    %2431 = vmatpush1.xpose.msra.mxu0 0.0
    %2432 = vmatprep.mubr.f32.mxu0 0.0
    %2433 = vmatmul.mubr.f32.gmra.mrb[0].mxu0 %v2364
    %v2434 = vpop.f32.mrb[0].mxu0
    %v2435 = vadd.f32 0.0, %v2434
    %v2436 = vpop.f32.mrb[0].mxu0
    %2437 = vdwg.mxu0
    %2438 = vrot.lane.b32.xlu0 %v1979, 120
    %v2439 = vpop.permute.xlu0 %2438
    %v2440 = vsel %vm149, %v1979, 0
    %v2442 = vsel %vm149, %v2439, 0
    %2444 = vmatprep.subr.mxu0 0.0
    %2445 = vmatpush1.xpose.msra.mxu0 %v2442
    %2446 = vmatprep.subr.mxu0 0.0
    %2447 = vmatpush1.xpose.msra.mxu0 0.0
    %2448 = vmatprep.subr.mxu0 0.0
    %2449 = vmatpush1.xpose.msra.mxu0 0.0
    %2450 = vmatprep.subr.mxu0 0.0
    %2451 = vmatpush1.xpose.msra.mxu0 0.0
    %2452 = vmatprep.subr.mxu0 0.0
    %2453 = vmatpush1.xpose.msra.mxu0 0.0
    %2454 = vmatprep.subr.mxu0 0.0
    %2455 = vmatpush1.xpose.msra.mxu0 0.0
    %2456 = vmatprep.subr.mxu0 0.0
    %2457 = vmatpush1.xpose.msra.mxu0 0.0
    %2458 = vmatprep.subr.mxu0 0.0
    %2459 = vmatpush1.xpose.msra.mxu0 0.0
    %2460 = vmatprep.subr.mxu0 0.0
    %2461 = vmatpush1.xpose.msra.mxu0 0.0
    %2462 = vmatprep.subr.mxu0 0.0
    %2463 = vmatpush1.xpose.msra.mxu0 0.0
    %2464 = vmatprep.subr.mxu0 0.0
    %2465 = vmatpush1.xpose.msra.mxu0 0.0
    %2466 = vmatprep.subr.mxu0 0.0
    %2467 = vmatpush1.xpose.msra.mxu0 0.0
    %2468 = vmatprep.subr.mxu0 0.0
    %2469 = vmatpush1.xpose.msra.mxu0 0.0
    %2470 = vmatprep.subr.mxu0 0.0
    %2471 = vmatpush1.xpose.msra.mxu0 0.0
    %2472 = vmatprep.subr.mxu0 0.0
    %2473 = vmatpush1.xpose.msra.mxu0 0.0
    %2474 = vmatprep.subr.mxu0 0.0
    %2475 = vmatpush1.xpose.msra.mxu0 0.0
    %2476 = vmatprep.subr.mxu0 0.0
    %2477 = vmatpush1.xpose.msra.mxu0 0.0
    %2478 = vmatprep.subr.mxu0 0.0
    %2479 = vmatpush1.xpose.msra.mxu0 0.0
    %2480 = vmatprep.subr.mxu0 0.0
    %2481 = vmatpush1.xpose.msra.mxu0 0.0
    %2482 = vmatprep.subr.mxu0 0.0
    %2483 = vmatpush1.xpose.msra.mxu0 0.0
    %2484 = vmatprep.subr.mxu0 0.0
    %2485 = vmatpush1.xpose.msra.mxu0 0.0
    %2486 = vmatprep.subr.mxu0 0.0
    %2487 = vmatpush1.xpose.msra.mxu0 0.0
    %2488 = vmatprep.subr.mxu0 0.0
    %2489 = vmatpush1.xpose.msra.mxu0 0.0
    %2490 = vmatprep.subr.mxu0 0.0
    %2491 = vmatpush1.xpose.msra.mxu0 0.0
    %2492 = vmatprep.subr.mxu0 0.0
    %2493 = vmatpush1.xpose.msra.mxu0 0.0
    %2494 = vmatprep.subr.mxu0 0.0
    %2495 = vmatpush1.xpose.msra.mxu0 0.0
    %2496 = vmatprep.subr.mxu0 0.0
    %2497 = vmatpush1.xpose.msra.mxu0 0.0
    %2498 = vmatprep.subr.mxu0 0.0
    %2499 = vmatpush1.xpose.msra.mxu0 0.0
    %2500 = vmatprep.subr.mxu0 0.0
    %2501 = vmatpush1.xpose.msra.mxu0 0.0
    %2502 = vmatprep.subr.mxu0 0.0
    %2503 = vmatpush1.xpose.msra.mxu0 0.0
    %2504 = vmatprep.subr.mxu0 0.0
    %2505 = vmatpush1.xpose.msra.mxu0 0.0
    %2506 = vmatprep.subr.mxu0 0.0
    %2507 = vmatpush1.xpose.msra.mxu0 0.0
    %2508 = vmatprep.mubr.f32.mxu0 0.0
    %2509 = vmatmul.mubr.f32.gmra.mrb[0].mxu0 %v2440
    %v2510 = vpop.f32.mrb[0].mxu0
    %v2511 = vadd.f32 0.0, %v2510
    %v2512 = vpop.f32.mrb[0].mxu0
    %2513 = vdwg.mxu0
    %2514 = vrot.lane.b32.xlu0 %v1981, 120
    %v2515 = vpop.permute.xlu0 %2514
    %v2516 = vsel %vm149, %v1981, 0
    %v2518 = vsel %vm149, %v2515, 0
    %2520 = vmatprep.subr.mxu0 0.0
    %2521 = vmatpush1.xpose.msra.mxu0 %v2518
    %2522 = vmatprep.subr.mxu0 0.0
    %2523 = vmatpush1.xpose.msra.mxu0 0.0
    %2524 = vmatprep.subr.mxu0 0.0
    %2525 = vmatpush1.xpose.msra.mxu0 0.0
    %2526 = vmatprep.subr.mxu0 0.0
    %2527 = vmatpush1.xpose.msra.mxu0 0.0
    %2528 = vmatprep.subr.mxu0 0.0
    %2529 = vmatpush1.xpose.msra.mxu0 0.0
    %2530 = vmatprep.subr.mxu0 0.0
    %2531 = vmatpush1.xpose.msra.mxu0 0.0
    %2532 = vmatprep.subr.mxu0 0.0
    %2533 = vmatpush1.xpose.msra.mxu0 0.0
    %2534 = vmatprep.subr.mxu0 0.0
    %2535 = vmatpush1.xpose.msra.mxu0 0.0
    %2536 = vmatprep.subr.mxu0 0.0
    %2537 = vmatpush1.xpose.msra.mxu0 0.0
    %2538 = vmatprep.subr.mxu0 0.0
    %2539 = vmatpush1.xpose.msra.mxu0 0.0
    %2540 = vmatprep.subr.mxu0 0.0
    %2541 = vmatpush1.xpose.msra.mxu0 0.0
    %2542 = vmatprep.subr.mxu0 0.0
    %2543 = vmatpush1.xpose.msra.mxu0 0.0
    %2544 = vmatprep.subr.mxu0 0.0
    %2545 = vmatpush1.xpose.msra.mxu0 0.0
    %2546 = vmatprep.subr.mxu0 0.0
    %2547 = vmatpush1.xpose.msra.mxu0 0.0
    %2548 = vmatprep.subr.mxu0 0.0
    %2549 = vmatpush1.xpose.msra.mxu0 0.0
    %2550 = vmatprep.subr.mxu0 0.0
    %2551 = vmatpush1.xpose.msra.mxu0 0.0
    %2552 = vmatprep.subr.mxu0 0.0
    %2553 = vmatpush1.xpose.msra.mxu0 0.0
    %2554 = vmatprep.subr.mxu0 0.0
    %2555 = vmatpush1.xpose.msra.mxu0 0.0
    %2556 = vmatprep.subr.mxu0 0.0
    %2557 = vmatpush1.xpose.msra.mxu0 0.0
    %2558 = vmatprep.subr.mxu0 0.0
    %2559 = vmatpush1.xpose.msra.mxu0 0.0
    %2560 = vmatprep.subr.mxu0 0.0
    %2561 = vmatpush1.xpose.msra.mxu0 0.0
    %2562 = vmatprep.subr.mxu0 0.0
    %2563 = vmatpush1.xpose.msra.mxu0 0.0
    %2564 = vmatprep.subr.mxu0 0.0
    %2565 = vmatpush1.xpose.msra.mxu0 0.0
    %2566 = vmatprep.subr.mxu0 0.0
    %2567 = vmatpush1.xpose.msra.mxu0 0.0
    %2568 = vmatprep.subr.mxu0 0.0
    %2569 = vmatpush1.xpose.msra.mxu0 0.0
    %2570 = vmatprep.subr.mxu0 0.0
    %2571 = vmatpush1.xpose.msra.mxu0 0.0
    %2572 = vmatprep.subr.mxu0 0.0
    %2573 = vmatpush1.xpose.msra.mxu0 0.0
    %2574 = vmatprep.subr.mxu0 0.0
    %2575 = vmatpush1.xpose.msra.mxu0 0.0
    %2576 = vmatprep.subr.mxu0 0.0
    %2577 = vmatpush1.xpose.msra.mxu0 0.0
    %2578 = vmatprep.subr.mxu0 0.0
    %2579 = vmatpush1.xpose.msra.mxu0 0.0
    %2580 = vmatprep.subr.mxu0 0.0
    %2581 = vmatpush1.xpose.msra.mxu0 0.0
    %2582 = vmatprep.subr.mxu0 0.0
    %2583 = vmatpush1.xpose.msra.mxu0 0.0
    %2584 = vmatprep.mubr.f32.mxu0 0.0
    %2585 = vmatmul.mubr.f32.gmra.mrb[0].mxu0 %v2516
    %v2586 = vpop.f32.mrb[0].mxu0
    %v2587 = vadd.f32 0.0, %v2586
    %v2588 = vpop.f32.mrb[0].mxu0
    %2589 = vdwg.mxu0
    %v2590 = vsel %vm149, %v2055, -inf
    %2591 = vmax.xlane.f32.xlu0 %v2590
    %v2592 = vpop.xlane.xlu0 %2591
    %v2593 = vsel %vm149, %v2131, -inf
    %2594 = vmax.xlane.f32.xlu0 %v2593
    %v2595 = vpop.xlane.xlu0 %2594
    %v2596 = vsel %vm149, %v2207, -inf
    %2597 = vmax.xlane.f32.xlu0 %v2596
    %v2598 = vpop.xlane.xlu0 %2597
    %v2599 = vsel %vm149, %v2283, -inf
    %2600 = vmax.xlane.f32.xlu0 %v2599
    %v2601 = vpop.xlane.xlu0 %2600
    %v2602 = vsel %vm149, %v2359, -inf
    %2603 = vmax.xlane.f32.xlu0 %v2602
    %v2604 = vpop.xlane.xlu0 %2603
    %v2605 = vsel %vm149, %v2435, -inf
    %2606 = vmax.xlane.f32.xlu0 %v2605
    %v2607 = vpop.xlane.xlu0 %2606
    %v2608 = vsel %vm149, %v2511, -inf
    %2609 = vmax.xlane.f32.xlu0 %v2608
    %v2610 = vpop.xlane.xlu0 %2609
    %v2611 = vsel %vm149, %v2587, -inf
    %2612 = vmax.xlane.f32.xlu0 %v2611
    %v2613 = vpop.xlane.xlu0 %2612
    %v2614 = vsub.f32 %v2055, %v2592
    %v2615 = vsub.f32 %v2131, %v2595
    %v2616 = vsub.f32 %v2207, %v2598
    %v2617 = vsub.f32 %v2283, %v2601
    %v2618 = vsub.f32 %v2359, %v2604
    %v2619 = vsub.f32 %v2435, %v2607
    %v2620 = vsub.f32 %v2511, %v2610
    %v2621 = vsub.f32 %v2587, %v2613
    %v2622 = vmul.f32 %v2614, 1.442695
    %v2623 = vpow.pop %v2622
    %v2624 = vmul.f32 %v2615, 1.442695
    %v2625 = vpow.pop %v2624
    %v2626 = vmul.f32 %v2616, 1.442695
    %v2627 = vpow.pop %v2626
    %v2628 = vmul.f32 %v2617, 1.442695
    %v2629 = vpow.pop %v2628
    %v2630 = vmul.f32 %v2618, 1.442695
    %v2631 = vpow.pop %v2630
    %v2632 = vmul.f32 %v2619, 1.442695
    %v2633 = vpow.pop %v2632
    %v2634 = vmul.f32 %v2620, 1.442695
    %v2635 = vpow.pop %v2634
    %v2636 = vmul.f32 %v2621, 1.442695
    %v2637 = vpow.pop %v2636
    %v2638 = vsel %vm149, %v2623, 0.0
    %2639 = vadd.xlane.f32.xlu0 %v2638
    %v2640 = vpop.xlane.xlu0 %2639
    %v2641 = vsel %vm149, %v2625, 0.0
    %2642 = vadd.xlane.f32.xlu0 %v2641
    %v2643 = vpop.xlane.xlu0 %2642
    %v2644 = vsel %vm149, %v2627, 0.0
    %2645 = vadd.xlane.f32.xlu0 %v2644
    %v2646 = vpop.xlane.xlu0 %2645
    %v2647 = vsel %vm149, %v2629, 0.0
    %2648 = vadd.xlane.f32.xlu0 %v2647
    %v2649 = vpop.xlane.xlu0 %2648
    %v2650 = vsel %vm149, %v2631, 0.0
    %2651 = vadd.xlane.f32.xlu0 %v2650
    %v2652 = vpop.xlane.xlu0 %2651
    %v2653 = vsel %vm149, %v2633, 0.0
    %2654 = vadd.xlane.f32.xlu0 %v2653
    %v2655 = vpop.xlane.xlu0 %2654
    %v2656 = vsel %vm149, %v2635, 0.0
    %2657 = vadd.xlane.f32.xlu0 %v2656
    %v2658 = vpop.xlane.xlu0 %2657
    %v2659 = vsel %vm149, %v2637, 0.0
    %2660 = vadd.xlane.f32.xlu0 %v2659
    %v2661 = vpop.xlane.xlu0 %2660
    %v2662 = vrcp.pop %v2640
    %v2663 = vrcp.pop %v2643
    %v2664 = vrcp.pop %v2646
    %v2665 = vrcp.pop %v2649
    %v2666 = vrcp.pop %v2652
    %v2667 = vrcp.pop %v2655
    %v2668 = vrcp.pop %v2658
    %v2669 = vrcp.pop %v2661
    %v2670 = vmul.f32 %v2640, %v2662
    %v2671 = vmul.f32 %v2643, %v2663
    %v2672 = vmul.f32 %v2646, %v2664
    %v2673 = vmul.f32 %v2649, %v2665
    %v2674 = vmul.f32 %v2652, %v2666
    %v2675 = vmul.f32 %v2655, %v2667
    %v2676 = vmul.f32 %v2658, %v2668
    %v2677 = vmul.f32 %v2661, %v2669
    %v2678 = vsub.f32 2.0, %v2670
    %v2679 = vsub.f32 2.0, %v2671
    %v2680 = vsub.f32 2.0, %v2672
    %v2681 = vsub.f32 2.0, %v2673
    %v2682 = vsub.f32 2.0, %v2674
    %v2683 = vsub.f32 2.0, %v2675
    %v2684 = vsub.f32 2.0, %v2676
    %v2685 = vsub.f32 2.0, %v2677
    %v2686 = vmul.f32 %v2662, %v2678
    %v2687 = vmul.f32 %v2663, %v2679
    %v2688 = vmul.f32 %v2664, %v2680
    %v2689 = vmul.f32 %v2665, %v2681
    %v2690 = vmul.f32 %v2666, %v2682
    %v2691 = vmul.f32 %v2667, %v2683
    %v2692 = vmul.f32 %v2668, %v2684
    %v2693 = vmul.f32 %v2669, %v2685
    %v2694 = vmul.f32 %v2623, %v2686
    %v2695 = vmul.f32 %v2625, %v2687
    %v2696 = vmul.f32 %v2627, %v2688
    %v2697 = vmul.f32 %v2629, %v2689
    %v2698 = vmul.f32 %v2631, %v2690
    %v2699 = vmul.f32 %v2633, %v2691
    %v2700 = vmul.f32 %v2635, %v2692
    %v2701 = vmul.f32 %v2637, %v2693
    %2702 = vrot.lane.b32.xlu0 %v1960, 112
    %v2703 = vpop.permute.xlu0 %2702
    %v2706 = vsel %vm149, %v2694, 0
    %2708 = vmatprep.subr.mxu0 0.0
    %2709 = vmatpush1.msra.mxu0 %v2703
    %2710 = vmatprep.subr.mxu0 0.0
    %2711 = vmatpush1.msra.mxu0 0.0
    %2712 = vmatprep.subr.mxu0 0.0
    %2713 = vmatpush1.msra.mxu0 0.0
    %2714 = vmatprep.subr.mxu0 0.0
    %2715 = vmatpush1.msra.mxu0 0.0
    %2716 = vmatprep.subr.mxu0 0.0
    %2717 = vmatpush1.msra.mxu0 0.0
    %2718 = vmatprep.subr.mxu0 0.0
    %2719 = vmatpush1.msra.mxu0 0.0
    %2720 = vmatprep.subr.mxu0 0.0
    %2721 = vmatpush1.msra.mxu0 0.0
    %2722 = vmatprep.subr.mxu0 0.0
    %2723 = vmatpush1.msra.mxu0 0.0
    %2724 = vmatprep.subr.mxu0 0.0
    %2725 = vmatpush1.msra.mxu0 0.0
    %2726 = vmatprep.subr.mxu0 0.0
    %2727 = vmatpush1.msra.mxu0 0.0
    %2728 = vmatprep.subr.mxu0 0.0
    %2729 = vmatpush1.msra.mxu0 0.0
    %2730 = vmatprep.subr.mxu0 0.0
    %2731 = vmatpush1.msra.mxu0 0.0
    %2732 = vmatprep.subr.mxu0 0.0
    %2733 = vmatpush1.msra.mxu0 0.0
    %2734 = vmatprep.subr.mxu0 0.0
    %2735 = vmatpush1.msra.mxu0 0.0
    %2736 = vmatprep.subr.mxu0 0.0
    %2737 = vmatpush1.msra.mxu0 0.0
    %2738 = vmatprep.subr.mxu0 0.0
    %2739 = vmatpush1.msra.mxu0 0.0
    %2740 = vmatprep.subr.mxu0 0.0
    %2741 = vmatpush1.msra.mxu0 0.0
    %2742 = vmatprep.subr.mxu0 0.0
    %2743 = vmatpush1.msra.mxu0 0.0
    %2744 = vmatprep.subr.mxu0 0.0
    %2745 = vmatpush1.msra.mxu0 0.0
    %2746 = vmatprep.subr.mxu0 0.0
    %2747 = vmatpush1.msra.mxu0 0.0
    %2748 = vmatprep.subr.mxu0 0.0
    %2749 = vmatpush1.msra.mxu0 0.0
    %2750 = vmatprep.subr.mxu0 0.0
    %2751 = vmatpush1.msra.mxu0 0.0
    %2752 = vmatprep.subr.mxu0 0.0
    %2753 = vmatpush1.msra.mxu0 0.0
    %2754 = vmatprep.subr.mxu0 0.0
    %2755 = vmatpush1.msra.mxu0 0.0
    %2756 = vmatprep.subr.mxu0 0.0
    %2757 = vmatpush1.msra.mxu0 0.0
    %2758 = vmatprep.subr.mxu0 0.0
    %2759 = vmatpush1.msra.mxu0 0.0
    %2760 = vmatprep.subr.mxu0 0.0
    %2761 = vmatpush1.msra.mxu0 0.0
    %2762 = vmatprep.subr.mxu0 0.0
    %2763 = vmatpush1.msra.mxu0 0.0
    %2764 = vmatprep.subr.mxu0 0.0
    %2765 = vmatpush1.msra.mxu0 0.0
    %2766 = vmatprep.subr.mxu0 0.0
    %2767 = vmatpush1.msra.mxu0 0.0
    %2768 = vmatprep.subr.mxu0 0.0
    %2769 = vmatpush1.msra.mxu0 0.0
    %2770 = vmatprep.subr.mxu0 0.0
    %2771 = vmatpush1.msra.mxu0 0.0
    %2772 = vmatprep.mubr.f32.mxu0 0.0
    %2773 = vmatmul.mubr.f32.gmra.mrb[0].mxu0 %v2706
    %v2774 = vpop.f32.mrb[0].mxu0
    %v2775 = vadd.f32 0.0, %v2774
    %v2776 = vpop.f32.mrb[0].mxu0
    %2777 = vdwg.mxu0
    %2778 = vrot.lane.b32.xlu0 %v1965, 112
    %v2779 = vpop.permute.xlu0 %2778
    %v2782 = vsel %vm149, %v2695, 0
    %2784 = vmatprep.subr.mxu0 0.0
    %2785 = vmatpush1.msra.mxu0 %v2779
    %2786 = vmatprep.subr.mxu0 0.0
    %2787 = vmatpush1.msra.mxu0 0.0
    %2788 = vmatprep.subr.mxu0 0.0
    %2789 = vmatpush1.msra.mxu0 0.0
    %2790 = vmatprep.subr.mxu0 0.0
    %2791 = vmatpush1.msra.mxu0 0.0
    %2792 = vmatprep.subr.mxu0 0.0
    %2793 = vmatpush1.msra.mxu0 0.0
    %2794 = vmatprep.subr.mxu0 0.0
    %2795 = vmatpush1.msra.mxu0 0.0
    %2796 = vmatprep.subr.mxu0 0.0
    %2797 = vmatpush1.msra.mxu0 0.0
    %2798 = vmatprep.subr.mxu0 0.0
    %2799 = vmatpush1.msra.mxu0 0.0
    %2800 = vmatprep.subr.mxu0 0.0
    %2801 = vmatpush1.msra.mxu0 0.0
    %2802 = vmatprep.subr.mxu0 0.0
    %2803 = vmatpush1.msra.mxu0 0.0
    %2804 = vmatprep.subr.mxu0 0.0
    %2805 = vmatpush1.msra.mxu0 0.0
    %2806 = vmatprep.subr.mxu0 0.0
    %2807 = vmatpush1.msra.mxu0 0.0
    %2808 = vmatprep.subr.mxu0 0.0
    %2809 = vmatpush1.msra.mxu0 0.0
    %2810 = vmatprep.subr.mxu0 0.0
    %2811 = vmatpush1.msra.mxu0 0.0
    %2812 = vmatprep.subr.mxu0 0.0
    %2813 = vmatpush1.msra.mxu0 0.0
    %2814 = vmatprep.subr.mxu0 0.0
    %2815 = vmatpush1.msra.mxu0 0.0
    %2816 = vmatprep.subr.mxu0 0.0
    %2817 = vmatpush1.msra.mxu0 0.0
    %2818 = vmatprep.subr.mxu0 0.0
    %2819 = vmatpush1.msra.mxu0 0.0
    %2820 = vmatprep.subr.mxu0 0.0
    %2821 = vmatpush1.msra.mxu0 0.0
    %2822 = vmatprep.subr.mxu0 0.0
    %2823 = vmatpush1.msra.mxu0 0.0
    %2824 = vmatprep.subr.mxu0 0.0
    %2825 = vmatpush1.msra.mxu0 0.0
    %2826 = vmatprep.subr.mxu0 0.0
    %2827 = vmatpush1.msra.mxu0 0.0
    %2828 = vmatprep.subr.mxu0 0.0
    %2829 = vmatpush1.msra.mxu0 0.0
    %2830 = vmatprep.subr.mxu0 0.0
    %2831 = vmatpush1.msra.mxu0 0.0
    %2832 = vmatprep.subr.mxu0 0.0
    %2833 = vmatpush1.msra.mxu0 0.0
    %2834 = vmatprep.subr.mxu0 0.0
    %2835 = vmatpush1.msra.mxu0 0.0
    %2836 = vmatprep.subr.mxu0 0.0
    %2837 = vmatpush1.msra.mxu0 0.0
    %2838 = vmatprep.subr.mxu0 0.0
    %2839 = vmatpush1.msra.mxu0 0.0
    %2840 = vmatprep.subr.mxu0 0.0
    %2841 = vmatpush1.msra.mxu0 0.0
    %2842 = vmatprep.subr.mxu0 0.0
    %2843 = vmatpush1.msra.mxu0 0.0
    %2844 = vmatprep.subr.mxu0 0.0
    %2845 = vmatpush1.msra.mxu0 0.0
    %2846 = vmatprep.subr.mxu0 0.0
    %2847 = vmatpush1.msra.mxu0 0.0
    %2848 = vmatprep.mubr.f32.mxu0 0.0
    %2849 = vmatmul.mubr.f32.gmra.mrb[0].mxu0 %v2782
    %v2850 = vpop.f32.mrb[0].mxu0
    %v2851 = vadd.f32 0.0, %v2850
    %v2852 = vpop.f32.mrb[0].mxu0
    %2853 = vdwg.mxu0
    %2854 = vrot.lane.b32.xlu0 %v1971, 112
    %v2855 = vpop.permute.xlu0 %2854
    %v2858 = vsel %vm149, %v2696, 0
    %2860 = vmatprep.subr.mxu0 0.0
    %2861 = vmatpush1.msra.mxu0 %v2855
    %2862 = vmatprep.subr.mxu0 0.0
    %2863 = vmatpush1.msra.mxu0 0.0
    %2864 = vmatprep.subr.mxu0 0.0
    %2865 = vmatpush1.msra.mxu0 0.0
    %2866 = vmatprep.subr.mxu0 0.0
    %2867 = vmatpush1.msra.mxu0 0.0
    %2868 = vmatprep.subr.mxu0 0.0
    %2869 = vmatpush1.msra.mxu0 0.0
    %2870 = vmatprep.subr.mxu0 0.0
    %2871 = vmatpush1.msra.mxu0 0.0
    %2872 = vmatprep.subr.mxu0 0.0
    %2873 = vmatpush1.msra.mxu0 0.0
    %2874 = vmatprep.subr.mxu0 0.0
    %2875 = vmatpush1.msra.mxu0 0.0
    %2876 = vmatprep.subr.mxu0 0.0
    %2877 = vmatpush1.msra.mxu0 0.0
    %2878 = vmatprep.subr.mxu0 0.0
    %2879 = vmatpush1.msra.mxu0 0.0
    %2880 = vmatprep.subr.mxu0 0.0
    %2881 = vmatpush1.msra.mxu0 0.0
    %2882 = vmatprep.subr.mxu0 0.0
    %2883 = vmatpush1.msra.mxu0 0.0
    %2884 = vmatprep.subr.mxu0 0.0
    %2885 = vmatpush1.msra.mxu0 0.0
    %2886 = vmatprep.subr.mxu0 0.0
    %2887 = vmatpush1.msra.mxu0 0.0
    %2888 = vmatprep.subr.mxu0 0.0
    %2889 = vmatpush1.msra.mxu0 0.0
    %2890 = vmatprep.subr.mxu0 0.0
    %2891 = vmatpush1.msra.mxu0 0.0
    %2892 = vmatprep.subr.mxu0 0.0
    %2893 = vmatpush1.msra.mxu0 0.0
    %2894 = vmatprep.subr.mxu0 0.0
    %2895 = vmatpush1.msra.mxu0 0.0
    %2896 = vmatprep.subr.mxu0 0.0
    %2897 = vmatpush1.msra.mxu0 0.0
    %2898 = vmatprep.subr.mxu0 0.0
    %2899 = vmatpush1.msra.mxu0 0.0
    %2900 = vmatprep.subr.mxu0 0.0
    %2901 = vmatpush1.msra.mxu0 0.0
    %2902 = vmatprep.subr.mxu0 0.0
    %2903 = vmatpush1.msra.mxu0 0.0
    %2904 = vmatprep.subr.mxu0 0.0
    %2905 = vmatpush1.msra.mxu0 0.0
    %2906 = vmatprep.subr.mxu0 0.0
    %2907 = vmatpush1.msra.mxu0 0.0
    %2908 = vmatprep.subr.mxu0 0.0
    %2909 = vmatpush1.msra.mxu0 0.0
    %2910 = vmatprep.subr.mxu0 0.0
    %2911 = vmatpush1.msra.mxu0 0.0
    %2912 = vmatprep.subr.mxu0 0.0
    %2913 = vmatpush1.msra.mxu0 0.0
    %2914 = vmatprep.subr.mxu0 0.0
    %2915 = vmatpush1.msra.mxu0 0.0
    %2916 = vmatprep.subr.mxu0 0.0
    %2917 = vmatpush1.msra.mxu0 0.0
    %2918 = vmatprep.subr.mxu0 0.0
    %2919 = vmatpush1.msra.mxu0 0.0
    %2920 = vmatprep.subr.mxu0 0.0
    %2921 = vmatpush1.msra.mxu0 0.0
    %2922 = vmatprep.subr.mxu0 0.0
    %2923 = vmatpush1.msra.mxu0 0.0
    %2924 = vmatprep.mubr.f32.mxu0 0.0
    %2925 = vmatmul.mubr.f32.gmra.mrb[0].mxu0 %v2858
    %v2926 = vpop.f32.mrb[0].mxu0
    %v2927 = vadd.f32 0.0, %v2926
    %v2928 = vpop.f32.mrb[0].mxu0
    %2929 = vdwg.mxu0
    %2930 = vrot.lane.b32.xlu0 %v1973, 112
    %v2931 = vpop.permute.xlu0 %2930
    %v2934 = vsel %vm149, %v2697, 0
    %2936 = vmatprep.subr.mxu0 0.0
    %2937 = vmatpush1.msra.mxu0 %v2931
    %2938 = vmatprep.subr.mxu0 0.0
    %2939 = vmatpush1.msra.mxu0 0.0
    %2940 = vmatprep.subr.mxu0 0.0
    %2941 = vmatpush1.msra.mxu0 0.0
    %2942 = vmatprep.subr.mxu0 0.0
    %2943 = vmatpush1.msra.mxu0 0.0
    %2944 = vmatprep.subr.mxu0 0.0
    %2945 = vmatpush1.msra.mxu0 0.0
    %2946 = vmatprep.subr.mxu0 0.0
    %2947 = vmatpush1.msra.mxu0 0.0
    %2948 = vmatprep.subr.mxu0 0.0
    %2949 = vmatpush1.msra.mxu0 0.0
    %2950 = vmatprep.subr.mxu0 0.0
    %2951 = vmatpush1.msra.mxu0 0.0
    %2952 = vmatprep.subr.mxu0 0.0
    %2953 = vmatpush1.msra.mxu0 0.0
    %2954 = vmatprep.subr.mxu0 0.0
    %2955 = vmatpush1.msra.mxu0 0.0
    %2956 = vmatprep.subr.mxu0 0.0
    %2957 = vmatpush1.msra.mxu0 0.0
    %2958 = vmatprep.subr.mxu0 0.0
    %2959 = vmatpush1.msra.mxu0 0.0
    %2960 = vmatprep.subr.mxu0 0.0
    %2961 = vmatpush1.msra.mxu0 0.0
    %2962 = vmatprep.subr.mxu0 0.0
    %2963 = vmatpush1.msra.mxu0 0.0
    %2964 = vmatprep.subr.mxu0 0.0
    %2965 = vmatpush1.msra.mxu0 0.0
    %2966 = vmatprep.subr.mxu0 0.0
    %2967 = vmatpush1.msra.mxu0 0.0
    %2968 = vmatprep.subr.mxu0 0.0
    %2969 = vmatpush1.msra.mxu0 0.0
    %2970 = vmatprep.subr.mxu0 0.0
    %2971 = vmatpush1.msra.mxu0 0.0
    %2972 = vmatprep.subr.mxu0 0.0
    %2973 = vmatpush1.msra.mxu0 0.0
    %2974 = vmatprep.subr.mxu0 0.0
    %2975 = vmatpush1.msra.mxu0 0.0
    %2976 = vmatprep.subr.mxu0 0.0
    %2977 = vmatpush1.msra.mxu0 0.0
    %2978 = vmatprep.subr.mxu0 0.0
    %2979 = vmatpush1.msra.mxu0 0.0
    %2980 = vmatprep.subr.mxu0 0.0
    %2981 = vmatpush1.msra.mxu0 0.0
    %2982 = vmatprep.subr.mxu0 0.0
    %2983 = vmatpush1.msra.mxu0 0.0
    %2984 = vmatprep.subr.mxu0 0.0
    %2985 = vmatpush1.msra.mxu0 0.0
    %2986 = vmatprep.subr.mxu0 0.0
    %2987 = vmatpush1.msra.mxu0 0.0
    %2988 = vmatprep.subr.mxu0 0.0
    %2989 = vmatpush1.msra.mxu0 0.0
    %2990 = vmatprep.subr.mxu0 0.0
    %2991 = vmatpush1.msra.mxu0 0.0
    %2992 = vmatprep.subr.mxu0 0.0
    %2993 = vmatpush1.msra.mxu0 0.0
    %2994 = vmatprep.subr.mxu0 0.0
    %2995 = vmatpush1.msra.mxu0 0.0
    %2996 = vmatprep.subr.mxu0 0.0
    %2997 = vmatpush1.msra.mxu0 0.0
    %2998 = vmatprep.subr.mxu0 0.0
    %2999 = vmatpush1.msra.mxu0 0.0
    %3000 = vmatprep.mubr.f32.mxu0 0.0
    %3001 = vmatmul.mubr.f32.gmra.mrb[0].mxu0 %v2934
    %v3002 = vpop.f32.mrb[0].mxu0
    %v3003 = vadd.f32 0.0, %v3002
    %v3004 = vpop.f32.mrb[0].mxu0
    %3005 = vdwg.mxu0
    %3006 = vrot.lane.b32.xlu0 %v1975, 112
    %v3007 = vpop.permute.xlu0 %3006
    %v3010 = vsel %vm149, %v2698, 0
    %3012 = vmatprep.subr.mxu0 0.0
    %3013 = vmatpush1.msra.mxu0 %v3007
    %3014 = vmatprep.subr.mxu0 0.0
    %3015 = vmatpush1.msra.mxu0 0.0
    %3016 = vmatprep.subr.mxu0 0.0
    %3017 = vmatpush1.msra.mxu0 0.0
    %3018 = vmatprep.subr.mxu0 0.0
    %3019 = vmatpush1.msra.mxu0 0.0
    %3020 = vmatprep.subr.mxu0 0.0
    %3021 = vmatpush1.msra.mxu0 0.0
    %3022 = vmatprep.subr.mxu0 0.0
    %3023 = vmatpush1.msra.mxu0 0.0
    %3024 = vmatprep.subr.mxu0 0.0
    %3025 = vmatpush1.msra.mxu0 0.0
    %3026 = vmatprep.subr.mxu0 0.0
    %3027 = vmatpush1.msra.mxu0 0.0
    %3028 = vmatprep.subr.mxu0 0.0
    %3029 = vmatpush1.msra.mxu0 0.0
    %3030 = vmatprep.subr.mxu0 0.0
    %3031 = vmatpush1.msra.mxu0 0.0
    %3032 = vmatprep.subr.mxu0 0.0
    %3033 = vmatpush1.msra.mxu0 0.0
    %3034 = vmatprep.subr.mxu0 0.0
    %3035 = vmatpush1.msra.mxu0 0.0
    %3036 = vmatprep.subr.mxu0 0.0
    %3037 = vmatpush1.msra.mxu0 0.0
    %3038 = vmatprep.subr.mxu0 0.0
    %3039 = vmatpush1.msra.mxu0 0.0
    %3040 = vmatprep.subr.mxu0 0.0
    %3041 = vmatpush1.msra.mxu0 0.0
    %3042 = vmatprep.subr.mxu0 0.0
    %3043 = vmatpush1.msra.mxu0 0.0
    %3044 = vmatprep.subr.mxu0 0.0
    %3045 = vmatpush1.msra.mxu0 0.0
    %3046 = vmatprep.subr.mxu0 0.0
    %3047 = vmatpush1.msra.mxu0 0.0
    %3048 = vmatprep.subr.mxu0 0.0
    %3049 = vmatpush1.msra.mxu0 0.0
    %3050 = vmatprep.subr.mxu0 0.0
    %3051 = vmatpush1.msra.mxu0 0.0
    %3052 = vmatprep.subr.mxu0 0.0
    %3053 = vmatpush1.msra.mxu0 0.0
    %3054 = vmatprep.subr.mxu0 0.0
    %3055 = vmatpush1.msra.mxu0 0.0
    %3056 = vmatprep.subr.mxu0 0.0
    %3057 = vmatpush1.msra.mxu0 0.0
    %3058 = vmatprep.subr.mxu0 0.0
    %3059 = vmatpush1.msra.mxu0 0.0
    %3060 = vmatprep.subr.mxu0 0.0
    %3061 = vmatpush1.msra.mxu0 0.0
    %3062 = vmatprep.subr.mxu0 0.0
    %3063 = vmatpush1.msra.mxu0 0.0
    %3064 = vmatprep.subr.mxu0 0.0
    %3065 = vmatpush1.msra.mxu0 0.0
    %3066 = vmatprep.subr.mxu0 0.0
    %3067 = vmatpush1.msra.mxu0 0.0
    %3068 = vmatprep.subr.mxu0 0.0
    %3069 = vmatpush1.msra.mxu0 0.0
    %3070 = vmatprep.subr.mxu0 0.0
    %3071 = vmatpush1.msra.mxu0 0.0
    %3072 = vmatprep.subr.mxu0 0.0
    %3073 = vmatpush1.msra.mxu0 0.0
    %3074 = vmatprep.subr.mxu0 0.0
    %3075 = vmatpush1.msra.mxu0 0.0
    %3076 = vmatprep.mubr.f32.mxu0 0.0
    %3077 = vmatmul.mubr.f32.gmra.mrb[0].mxu0 %v3010
    %v3078 = vpop.f32.mrb[0].mxu0
    %v3079 = vadd.f32 0.0, %v3078
    %v3080 = vpop.f32.mrb[0].mxu0
    %3081 = vdwg.mxu0
    %3082 = vrot.lane.b32.xlu0 %v1977, 112
    %v3083 = vpop.permute.xlu0 %3082
    %v3086 = vsel %vm149, %v2699, 0
    %3088 = vmatprep.subr.mxu0 0.0
    %3089 = vmatpush1.msra.mxu0 %v3083
    %3090 = vmatprep.subr.mxu0 0.0
    %3091 = vmatpush1.msra.mxu0 0.0
    %3092 = vmatprep.subr.mxu0 0.0
    %3093 = vmatpush1.msra.mxu0 0.0
    %3094 = vmatprep.subr.mxu0 0.0
    %3095 = vmatpush1.msra.mxu0 0.0
    %3096 = vmatprep.subr.mxu0 0.0
    %3097 = vmatpush1.msra.mxu0 0.0
    %3098 = vmatprep.subr.mxu0 0.0
    %3099 = vmatpush1.msra.mxu0 0.0
    %3100 = vmatprep.subr.mxu0 0.0
    %3101 = vmatpush1.msra.mxu0 0.0
    %3102 = vmatprep.subr.mxu0 0.0
    %3103 = vmatpush1.msra.mxu0 0.0
    %3104 = vmatprep.subr.mxu0 0.0
    %3105 = vmatpush1.msra.mxu0 0.0
    %3106 = vmatprep.subr.mxu0 0.0
    %3107 = vmatpush1.msra.mxu0 0.0
    %3108 = vmatprep.subr.mxu0 0.0
    %3109 = vmatpush1.msra.mxu0 0.0
    %3110 = vmatprep.subr.mxu0 0.0
    %3111 = vmatpush1.msra.mxu0 0.0
    %3112 = vmatprep.subr.mxu0 0.0
    %3113 = vmatpush1.msra.mxu0 0.0
    %3114 = vmatprep.subr.mxu0 0.0
    %3115 = vmatpush1.msra.mxu0 0.0
    %3116 = vmatprep.subr.mxu0 0.0
    %3117 = vmatpush1.msra.mxu0 0.0
    %3118 = vmatprep.subr.mxu0 0.0
    %3119 = vmatpush1.msra.mxu0 0.0
    %3120 = vmatprep.subr.mxu0 0.0
    %3121 = vmatpush1.msra.mxu0 0.0
    %3122 = vmatprep.subr.mxu0 0.0
    %3123 = vmatpush1.msra.mxu0 0.0
    %3124 = vmatprep.subr.mxu0 0.0
    %3125 = vmatpush1.msra.mxu0 0.0
    %3126 = vmatprep.subr.mxu0 0.0
    %3127 = vmatpush1.msra.mxu0 0.0
    %3128 = vmatprep.subr.mxu0 0.0
    %3129 = vmatpush1.msra.mxu0 0.0
    %3130 = vmatprep.subr.mxu0 0.0
    %3131 = vmatpush1.msra.mxu0 0.0
    %3132 = vmatprep.subr.mxu0 0.0
    %3133 = vmatpush1.msra.mxu0 0.0
    %3134 = vmatprep.subr.mxu0 0.0
    %3135 = vmatpush1.msra.mxu0 0.0
    %3136 = vmatprep.subr.mxu0 0.0
    %3137 = vmatpush1.msra.mxu0 0.0
    %3138 = vmatprep.subr.mxu0 0.0
    %3139 = vmatpush1.msra.mxu0 0.0
    %3140 = vmatprep.subr.mxu0 0.0
    %3141 = vmatpush1.msra.mxu0 0.0
    %3142 = vmatprep.subr.mxu0 0.0
    %3143 = vmatpush1.msra.mxu0 0.0
    %3144 = vmatprep.subr.mxu0 0.0
    %3145 = vmatpush1.msra.mxu0 0.0
    %3146 = vmatprep.subr.mxu0 0.0
    %3147 = vmatpush1.msra.mxu0 0.0
    %3148 = vmatprep.subr.mxu0 0.0
    %3149 = vmatpush1.msra.mxu0 0.0
    %3150 = vmatprep.subr.mxu0 0.0
    %3151 = vmatpush1.msra.mxu0 0.0
    %3152 = vmatprep.mubr.f32.mxu0 0.0
    %3153 = vmatmul.mubr.f32.gmra.mrb[0].mxu0 %v3086
    %v3154 = vpop.f32.mrb[0].mxu0
    %v3155 = vadd.f32 0.0, %v3154
    %v3156 = vpop.f32.mrb[0].mxu0
    %3157 = vdwg.mxu0
    %3158 = vrot.lane.b32.xlu0 %v1979, 112
    %v3159 = vpop.permute.xlu0 %3158
    %v3162 = vsel %vm149, %v2700, 0
    %3164 = vmatprep.subr.mxu0 0.0
    %3165 = vmatpush1.msra.mxu0 %v3159
    %3166 = vmatprep.subr.mxu0 0.0
    %3167 = vmatpush1.msra.mxu0 0.0
    %3168 = vmatprep.subr.mxu0 0.0
    %3169 = vmatpush1.msra.mxu0 0.0
    %3170 = vmatprep.subr.mxu0 0.0
    %3171 = vmatpush1.msra.mxu0 0.0
    %3172 = vmatprep.subr.mxu0 0.0
    %3173 = vmatpush1.msra.mxu0 0.0
    %3174 = vmatprep.subr.mxu0 0.0
    %3175 = vmatpush1.msra.mxu0 0.0
    %3176 = vmatprep.subr.mxu0 0.0
    %3177 = vmatpush1.msra.mxu0 0.0
    %3178 = vmatprep.subr.mxu0 0.0
    %3179 = vmatpush1.msra.mxu0 0.0
    %3180 = vmatprep.subr.mxu0 0.0
    %3181 = vmatpush1.msra.mxu0 0.0
    %3182 = vmatprep.subr.mxu0 0.0
    %3183 = vmatpush1.msra.mxu0 0.0
    %3184 = vmatprep.subr.mxu0 0.0
    %3185 = vmatpush1.msra.mxu0 0.0
    %3186 = vmatprep.subr.mxu0 0.0
    %3187 = vmatpush1.msra.mxu0 0.0
    %3188 = vmatprep.subr.mxu0 0.0
    %3189 = vmatpush1.msra.mxu0 0.0
    %3190 = vmatprep.subr.mxu0 0.0
    %3191 = vmatpush1.msra.mxu0 0.0
    %3192 = vmatprep.subr.mxu0 0.0
    %3193 = vmatpush1.msra.mxu0 0.0
    %3194 = vmatprep.subr.mxu0 0.0
    %3195 = vmatpush1.msra.mxu0 0.0
    %3196 = vmatprep.subr.mxu0 0.0
    %3197 = vmatpush1.msra.mxu0 0.0
    %3198 = vmatprep.subr.mxu0 0.0
    %3199 = vmatpush1.msra.mxu0 0.0
    %3200 = vmatprep.subr.mxu0 0.0
    %3201 = vmatpush1.msra.mxu0 0.0
    %3202 = vmatprep.subr.mxu0 0.0
    %3203 = vmatpush1.msra.mxu0 0.0
    %3204 = vmatprep.subr.mxu0 0.0
    %3205 = vmatpush1.msra.mxu0 0.0
    %3206 = vmatprep.subr.mxu0 0.0
    %3207 = vmatpush1.msra.mxu0 0.0
    %3208 = vmatprep.subr.mxu0 0.0
    %3209 = vmatpush1.msra.mxu0 0.0
    %3210 = vmatprep.subr.mxu0 0.0
    %3211 = vmatpush1.msra.mxu0 0.0
    %3212 = vmatprep.subr.mxu0 0.0
    %3213 = vmatpush1.msra.mxu0 0.0
    %3214 = vmatprep.subr.mxu0 0.0
    %3215 = vmatpush1.msra.mxu0 0.0
    %3216 = vmatprep.subr.mxu0 0.0
    %3217 = vmatpush1.msra.mxu0 0.0
    %3218 = vmatprep.subr.mxu0 0.0
    %3219 = vmatpush1.msra.mxu0 0.0
    %3220 = vmatprep.subr.mxu0 0.0
    %3221 = vmatpush1.msra.mxu0 0.0
    %3222 = vmatprep.subr.mxu0 0.0
    %3223 = vmatpush1.msra.mxu0 0.0
    %3224 = vmatprep.subr.mxu0 0.0
    %3225 = vmatpush1.msra.mxu0 0.0
    %3226 = vmatprep.subr.mxu0 0.0
    %3227 = vmatpush1.msra.mxu0 0.0
    %3228 = vmatprep.mubr.f32.mxu0 0.0
    %3229 = vmatmul.mubr.f32.gmra.mrb[0].mxu0 %v3162
    %v3230 = vpop.f32.mrb[0].mxu0
    %v3231 = vadd.f32 0.0, %v3230
    %v3232 = vpop.f32.mrb[0].mxu0
    %3233 = vdwg.mxu0
    %3234 = vrot.lane.b32.xlu0 %v1981, 112
    %v3235 = vpop.permute.xlu0 %3234
    %v3238 = vsel %vm149, %v2701, 0
    %3240 = vmatprep.subr.mxu0 0.0
    %3241 = vmatpush1.msra.mxu0 %v3235
    %3242 = vmatprep.subr.mxu0 0.0
    %3243 = vmatpush1.msra.mxu0 0.0
    %3244 = vmatprep.subr.mxu0 0.0
    %3245 = vmatpush1.msra.mxu0 0.0
    %3246 = vmatprep.subr.mxu0 0.0
    %3247 = vmatpush1.msra.mxu0 0.0
    %3248 = vmatprep.subr.mxu0 0.0
    %3249 = vmatpush1.msra.mxu0 0.0
    %3250 = vmatprep.subr.mxu0 0.0
    %3251 = vmatpush1.msra.mxu0 0.0
    %3252 = vmatprep.subr.mxu0 0.0
    %3253 = vmatpush1.msra.mxu0 0.0
    %3254 = vmatprep.subr.mxu0 0.0
    %3255 = vmatpush1.msra.mxu0 0.0
    %3256 = vmatprep.subr.mxu0 0.0
    %3257 = vmatpush1.msra.mxu0 0.0
    %3258 = vmatprep.subr.mxu0 0.0
    %3259 = vmatpush1.msra.mxu0 0.0
    %3260 = vmatprep.subr.mxu0 0.0
    %3261 = vmatpush1.msra.mxu0 0.0
    %3262 = vmatprep.subr.mxu0 0.0
    %3263 = vmatpush1.msra.mxu0 0.0
    %3264 = vmatprep.subr.mxu0 0.0
    %3265 = vmatpush1.msra.mxu0 0.0
    %3266 = vmatprep.subr.mxu0 0.0
    %3267 = vmatpush1.msra.mxu0 0.0
    %3268 = vmatprep.subr.mxu0 0.0
    %3269 = vmatpush1.msra.mxu0 0.0
    %3270 = vmatprep.subr.mxu0 0.0
    %3271 = vmatpush1.msra.mxu0 0.0
    %3272 = vmatprep.subr.mxu0 0.0
    %3273 = vmatpush1.msra.mxu0 0.0
    %3274 = vmatprep.subr.mxu0 0.0
    %3275 = vmatpush1.msra.mxu0 0.0
    %3276 = vmatprep.subr.mxu0 0.0
    %3277 = vmatpush1.msra.mxu0 0.0
    %3278 = vmatprep.subr.mxu0 0.0
    %3279 = vmatpush1.msra.mxu0 0.0
    %3280 = vmatprep.subr.mxu0 0.0
    %3281 = vmatpush1.msra.mxu0 0.0
    %3282 = vmatprep.subr.mxu0 0.0
    %3283 = vmatpush1.msra.mxu0 0.0
    %3284 = vmatprep.subr.mxu0 0.0
    %3285 = vmatpush1.msra.mxu0 0.0
    %3286 = vmatprep.subr.mxu0 0.0
    %3287 = vmatpush1.msra.mxu0 0.0
    %3288 = vmatprep.subr.mxu0 0.0
    %3289 = vmatpush1.msra.mxu0 0.0
    %3290 = vmatprep.subr.mxu0 0.0
    %3291 = vmatpush1.msra.mxu0 0.0
    %3292 = vmatprep.subr.mxu0 0.0
    %3293 = vmatpush1.msra.mxu0 0.0
    %3294 = vmatprep.subr.mxu0 0.0
    %3295 = vmatpush1.msra.mxu0 0.0
    %3296 = vmatprep.subr.mxu0 0.0
    %3297 = vmatpush1.msra.mxu0 0.0
    %3298 = vmatprep.subr.mxu0 0.0
    %3299 = vmatpush1.msra.mxu0 0.0
    %3300 = vmatprep.subr.mxu0 0.0
    %3301 = vmatpush1.msra.mxu0 0.0
    %3302 = vmatprep.subr.mxu0 0.0
    %3303 = vmatpush1.msra.mxu0 0.0
    %3304 = vmatprep.mubr.f32.mxu0 0.0
    %3305 = vmatmul.mubr.f32.gmra.mrb[0].mxu0 %v3238
    %v3306 = vpop.f32.mrb[0].mxu0
    %v3307 = vadd.f32 0.0, %v3306
    %v3308 = vpop.f32.mrb[0].mxu0
    %3309 = vdwg.mxu0
    %3312 = vrot.lane.b32.xlu0 %v2927, 8
    %v3313 = vpop.permute.xlu0 %3312
    %3314 = vrot.lane.b32.xlu0 %v3003, 8
    %v3315 = vpop.permute.xlu0 %3314
    %3320 = vrot.lane.b32.xlu0 %v3079, 16
    %v3321 = vpop.permute.xlu0 %3320
    %3322 = vrot.lane.b32.xlu0 %v3155, 16
    %v3323 = vpop.permute.xlu0 %3322
    %3328 = vrot.lane.b32.xlu0 %v3231, 24
    %v3329 = vpop.permute.xlu0 %3328
    %3330 = vrot.lane.b32.xlu0 %v3307, 24
    %v3331 = vpop.permute.xlu0 %3330
    %v3334 = vsel %vm149, %v2775, %v3313
    %v3335 = vsel %vm149, %v2851, %v3315
    %v3336 = vsel %vm1502, %v3334, %v3321
    %v3337 = vsel %vm1502, %v3335, %v3323
    %v3338 = vsel %vm1505, %v3336, %v3329
    %v3339 = vsel %vm1505, %v3337, %v3331
    %v3340 = vld [vmem:[#allocation5 + $0x108] sm:$0xff]
    %v3341 = vld [vmem:[#allocation5 + $0x110] sm:$0xff]
    %v3342 = vld [vmem:[#allocation5 + $0x118] sm:$0xff]
    %v3343 = vld [vmem:[#allocation5 + $0x120] sm:$0xff]
    %v3344 = vld [vmem:[#allocation5 + $0x128] sm:$0x1]
    %v3345 = vlaneseq
    %v3346 = vshrl.u32 %v3345, 7
    %v3347 = vsub.s32 0, %v3346
    %v3348 = vrot.slane %v3344, %v3347
    %v3350 = vsel %vm51, %v3338, 0
    %v3353 = vsel %vm51, %v3339, 0
    %3355 = vmatprep.subr.mxu0 0.0
    %3356 = vmatpush1.msra.mxu0 %v3340
    %3357 = vmatprep.subr.mxu0 0.0
    %3358 = vmatpush1.msra.mxu0 %v3341
    %3359 = vmatprep.subr.mxu0 0.0
    %3360 = vmatpush1.msra.mxu0 %v3342
    %3361 = vmatprep.subr.mxu0 0.0
    %3362 = vmatpush1.msra.mxu0 %v3343
    %3363 = vmatprep.subr.mxu0 0.0
    %3364 = vmatpush1.msra.mxu0 0.0
    %3365 = vmatprep.subr.mxu0 0.0
    %3366 = vmatpush1.msra.mxu0 0.0
    %3367 = vmatprep.subr.mxu0 0.0
    %3368 = vmatpush1.msra.mxu0 0.0
    %3369 = vmatprep.subr.mxu0 0.0
    %3370 = vmatpush1.msra.mxu0 0.0
    %3371 = vmatprep.subr.mxu0 0.0
    %3372 = vmatpush1.msra.mxu0 0.0
    %3373 = vmatprep.subr.mxu0 0.0
    %3374 = vmatpush1.msra.mxu0 0.0
    %3375 = vmatprep.subr.mxu0 0.0
    %3376 = vmatpush1.msra.mxu0 0.0
    %3377 = vmatprep.subr.mxu0 0.0
    %3378 = vmatpush1.msra.mxu0 0.0
    %3379 = vmatprep.subr.mxu0 0.0
    %3380 = vmatpush1.msra.mxu0 0.0
    %3381 = vmatprep.subr.mxu0 0.0
    %3382 = vmatpush1.msra.mxu0 0.0
    %3383 = vmatprep.subr.mxu0 0.0
    %3384 = vmatpush1.msra.mxu0 0.0
    %3385 = vmatprep.subr.mxu0 0.0
    %3386 = vmatpush1.msra.mxu0 0.0
    %3387 = vmatprep.subr.mxu0 0.0
    %3388 = vmatpush1.msra.mxu0 0.0
    %3389 = vmatprep.subr.mxu0 0.0
    %3390 = vmatpush1.msra.mxu0 0.0
    %3391 = vmatprep.subr.mxu0 0.0
    %3392 = vmatpush1.msra.mxu0 0.0
    %3393 = vmatprep.subr.mxu0 0.0
    %3394 = vmatpush1.msra.mxu0 0.0
    %3395 = vmatprep.subr.mxu0 0.0
    %3396 = vmatpush1.msra.mxu0 0.0
    %3397 = vmatprep.subr.mxu0 0.0
    %3398 = vmatpush1.msra.mxu0 0.0
    %3399 = vmatprep.subr.mxu0 0.0
    %3400 = vmatpush1.msra.mxu0 0.0
    %3401 = vmatprep.subr.mxu0 0.0
    %3402 = vmatpush1.msra.mxu0 0.0
    %3403 = vmatprep.subr.mxu0 0.0
    %3404 = vmatpush1.msra.mxu0 0.0
    %3405 = vmatprep.subr.mxu0 0.0
    %3406 = vmatpush1.msra.mxu0 0.0
    %3407 = vmatprep.subr.mxu0 0.0
    %3408 = vmatpush1.msra.mxu0 0.0
    %3409 = vmatprep.subr.mxu0 0.0
    %3410 = vmatpush1.msra.mxu0 0.0
    %3411 = vmatprep.subr.mxu0 0.0
    %3412 = vmatpush1.msra.mxu0 0.0
    %3413 = vmatprep.subr.mxu0 0.0
    %3414 = vmatpush1.msra.mxu0 0.0
    %3415 = vmatprep.subr.mxu0 0.0
    %3416 = vmatpush1.msra.mxu0 0.0
    %3417 = vmatprep.subr.mxu0 0.0
    %3418 = vmatpush1.msra.mxu0 0.0
    %3419 = vmatprep.mubr.f32.mxu0 0.0
    %3420 = vmatmul.mubr.f32.gmra.mrb[0].mxu0 %v3350
    %v3421 = vpop.f32.mrb[0].mxu0
    %v3422 = vadd.f32 %v3348, %v3421
    %v3423 = vpop.f32.mrb[0].mxu0
    %3424 = vmatprep.mubr.f32.mxu0 0.0
    %3425 = vmatmul.mubr.f32.gmra.mrb[0].mxu0 %v3353
    %v3426 = vpop.f32.mrb[0].mxu0
    %v3427 = vadd.f32 %v3348, %v3426
    %v3428 = vpop.f32.mrb[0].mxu0
    %3429 = vdwg.mxu0
    %v3430 = vadd.f32 %v1876, %v3422
    %v3431 = vadd.f32 %v1877, %v3427
    %v3432 = vld [vmem:[#allocation5 + $0x130] sm:$0x1]
    %v3433 = vld [vmem:[#allocation5 + $0x138] sm:$0x1]
    %v3434 = vsel %vm51, %v3430, 0.0
    %3435 = vadd.xlane.f32.xlu0 %v3434
    %v3436 = vpop.xlane.xlu0 %3435
    %v3437 = vsel %vm51, %v3431, 0.0
    %3438 = vadd.xlane.f32.xlu0 %v3437
    %v3439 = vpop.xlane.xlu0 %3438
    %v3440 = vmul.f32 %v3436, %v1608
    %v3441 = vmul.f32 %v3439, %v1608
    %v3442 = vmul.f32 %v3430, %v3430
    %v3443 = vmul.f32 %v3431, %v3431
    %v3444 = vsel %vm51, %v3442, 0.0
    %3445 = vadd.xlane.f32.xlu0 %v3444
    %v3446 = vpop.xlane.xlu0 %3445
    %v3447 = vsel %vm51, %v3443, 0.0
    %3448 = vadd.xlane.f32.xlu0 %v3447
    %v3449 = vpop.xlane.xlu0 %3448
    %v3450 = vmul.f32 %v3446, %v1608
    %v3451 = vmul.f32 %v3449, %v1608
    %v3452 = vmul.f32 %v3440, %v3440
    %v3453 = vmul.f32 %v3441, %v3441
    %v3454 = vsub.f32 %v3450, %v3452
    %v3455 = vsub.f32 %v3451, %v3453
    %v3456 = vsub.f32 %v3430, %v3440
    %v3457 = vsub.f32 %v3431, %v3441
    %v3458 = vadd.f32 %v3454, 1e-05
    %v3459 = vadd.f32 %v3455, 1e-05
    %v3460 = vrsqrt.pop %v3458
    %v3461 = vrsqrt.pop %v3459
    %v3462 = vmul.f32 %v3456, %v3460
    %v3463 = vmul.f32 %v3457, %v3461
    %v3464 = vlaneseq
    %v3465 = vshrl.u32 %v3464, 7
    %v3466 = vsub.s32 0, %v3465
    %v3467 = vrot.slane %v3432, %v3466
    %v3468 = vmul.f32 %v3462, %v3467
    %v3469 = vmul.f32 %v3463, %v3467
    %v3470 = vlaneseq
    %v3471 = vshrl.u32 %v3470, 7
    %v3472 = vsub.s32 0, %v3471
    %v3473 = vrot.slane %v3433, %v3472
    %v3474 = vadd.f32 %v3468, %v3473
    %v3475 = vadd.f32 %v3469, %v3473
    %v3476 = vld [vmem:[#allocation5 + $0x140] sm:$0xff]
    %v3477 = vld [vmem:[#allocation5 + $0x148] sm:$0xff]
    %v3478 = vld [vmem:[#allocation5 + $0x150] sm:$0xff]
    %v3479 = vld [vmem:[#allocation5 + $0x158] sm:$0xff]
    %v3480 = vld [vmem:[#allocation5 + $0x160] sm:$0x1]
    %v3481 = vlaneseq
    %v3482 = vshrl.u32 %v3481, 7
    %v3483 = vsub.s32 0, %v3482
    %v3484 = vrot.slane %v3480, %v3483
    %v3486 = vsel %vm51, %v3474, 0
    %v3489 = vsel %vm51, %v3475, 0
    %3491 = vmatprep.subr.mxu0 0.0
    %3492 = vmatpush1.msra.mxu0 %v3476
    %3493 = vmatprep.subr.mxu0 0.0
    %3494 = vmatpush1.msra.mxu0 %v3477
    %3495 = vmatprep.subr.mxu0 0.0
    %3496 = vmatpush1.msra.mxu0 %v3478
    %3497 = vmatprep.subr.mxu0 0.0
    %3498 = vmatpush1.msra.mxu0 %v3479
    %3499 = vmatprep.subr.mxu0 0.0
    %3500 = vmatpush1.msra.mxu0 0.0
    %3501 = vmatprep.subr.mxu0 0.0
    %3502 = vmatpush1.msra.mxu0 0.0
    %3503 = vmatprep.subr.mxu0 0.0
    %3504 = vmatpush1.msra.mxu0 0.0
    %3505 = vmatprep.subr.mxu0 0.0
    %3506 = vmatpush1.msra.mxu0 0.0
    %3507 = vmatprep.subr.mxu0 0.0
    %3508 = vmatpush1.msra.mxu0 0.0
    %3509 = vmatprep.subr.mxu0 0.0
    %3510 = vmatpush1.msra.mxu0 0.0
    %3511 = vmatprep.subr.mxu0 0.0
    %3512 = vmatpush1.msra.mxu0 0.0
    %3513 = vmatprep.subr.mxu0 0.0
    %3514 = vmatpush1.msra.mxu0 0.0
    %3515 = vmatprep.subr.mxu0 0.0
    %3516 = vmatpush1.msra.mxu0 0.0
    %3517 = vmatprep.subr.mxu0 0.0
    %3518 = vmatpush1.msra.mxu0 0.0
    %3519 = vmatprep.subr.mxu0 0.0
    %3520 = vmatpush1.msra.mxu0 0.0
    %3521 = vmatprep.subr.mxu0 0.0
    %3522 = vmatpush1.msra.mxu0 0.0
    %3523 = vmatprep.subr.mxu0 0.0
    %3524 = vmatpush1.msra.mxu0 0.0
    %3525 = vmatprep.subr.mxu0 0.0
    %3526 = vmatpush1.msra.mxu0 0.0
    %3527 = vmatprep.subr.mxu0 0.0
    %3528 = vmatpush1.msra.mxu0 0.0
    %3529 = vmatprep.subr.mxu0 0.0
    %3530 = vmatpush1.msra.mxu0 0.0
    %3531 = vmatprep.subr.mxu0 0.0
    %3532 = vmatpush1.msra.mxu0 0.0
    %3533 = vmatprep.subr.mxu0 0.0
    %3534 = vmatpush1.msra.mxu0 0.0
    %3535 = vmatprep.subr.mxu0 0.0
    %3536 = vmatpush1.msra.mxu0 0.0
    %3537 = vmatprep.subr.mxu0 0.0
    %3538 = vmatpush1.msra.mxu0 0.0
    %3539 = vmatprep.subr.mxu0 0.0
    %3540 = vmatpush1.msra.mxu0 0.0
    %3541 = vmatprep.subr.mxu0 0.0
    %3542 = vmatpush1.msra.mxu0 0.0
    %3543 = vmatprep.subr.mxu0 0.0
    %3544 = vmatpush1.msra.mxu0 0.0
    %3545 = vmatprep.subr.mxu0 0.0
    %3546 = vmatpush1.msra.mxu0 0.0
    %3547 = vmatprep.subr.mxu0 0.0
    %3548 = vmatpush1.msra.mxu0 0.0
    %3549 = vmatprep.subr.mxu0 0.0
    %3550 = vmatpush1.msra.mxu0 0.0
    %3551 = vmatprep.subr.mxu0 0.0
    %3552 = vmatpush1.msra.mxu0 0.0
    %3553 = vmatprep.subr.mxu0 0.0
    %3554 = vmatpush1.msra.mxu0 0.0
    %3555 = vmatprep.mubr.f32.mxu0 0.0
    %3556 = vmatmul.mubr.f32.gmra.mrb[0].mxu0 %v3486
    %v3557 = vpop.f32.mrb[0].mxu0
    %v3558 = vadd.f32 %v3484, %v3557
    %v3559 = vpop.f32.mrb[0].mxu0
    %3560 = vmatprep.mubr.f32.mxu0 0.0
    %3561 = vmatmul.mubr.f32.gmra.mrb[0].mxu0 %v3489
    %v3562 = vpop.f32.mrb[0].mxu0
    %v3563 = vadd.f32 %v3484, %v3562
    %v3564 = vpop.f32.mrb[0].mxu0
    %3565 = vdwg.mxu0
    %v3566 = vmax.f32 %v3558, 0.0
    %v3567 = vmax.f32 %v3563, 0.0
    %v3568 = vld [vmem:[#allocation5 + $0x168] sm:$0xff]
    %v3569 = vld [vmem:[#allocation5 + $0x170] sm:$0xff]
    %v3570 = vld [vmem:[#allocation5 + $0x178] sm:$0xff]
    %v3571 = vld [vmem:[#allocation5 + $0x180] sm:$0xff]
    %v3572 = vld [vmem:[#allocation5 + $0x188] sm:$0xff]
    %v3573 = vld [vmem:[#allocation5 + $0x190] sm:$0xff]
    %v3574 = vld [vmem:[#allocation5 + $0x198] sm:$0xff]
    %v3575 = vld [vmem:[#allocation5 + $0x1a0] sm:$0xff]
    %v3576 = vld [vmem:[#allocation5 + $0x1a8] sm:$0x1]
    %v3577 = vlaneseq
    %v3578 = vshrl.u32 %v3577, 7
    %v3579 = vsub.s32 0, %v3578
    %v3580 = vrot.slane %v3576, %v3579
    %v3582 = vsel %vm1750, %v3566, 0
    %v3585 = vsel %vm1750, %v3567, 0
    %3587 = vmatprep.subr.mxu0 0.0
    %3588 = vmatpush1.msra.mxu0 %v3568
    %3589 = vmatprep.subr.mxu0 0.0
    %3590 = vmatpush1.msra.mxu0 %v3569
    %3591 = vmatprep.subr.mxu0 0.0
    %3592 = vmatpush1.msra.mxu0 %v3570
    %3593 = vmatprep.subr.mxu0 0.0
    %3594 = vmatpush1.msra.mxu0 %v3571
    %3595 = vmatprep.subr.mxu0 0.0
    %3596 = vmatpush1.msra.mxu0 %v3572
    %3597 = vmatprep.subr.mxu0 0.0
    %3598 = vmatpush1.msra.mxu0 %v3573
    %3599 = vmatprep.subr.mxu0 0.0
    %3600 = vmatpush1.msra.mxu0 %v3574
    %3601 = vmatprep.subr.mxu0 0.0
    %3602 = vmatpush1.msra.mxu0 %v3575
    %3603 = vmatprep.subr.mxu0 0.0
    %3604 = vmatpush1.msra.mxu0 0.0
    %3605 = vmatprep.subr.mxu0 0.0
    %3606 = vmatpush1.msra.mxu0 0.0
    %3607 = vmatprep.subr.mxu0 0.0
    %3608 = vmatpush1.msra.mxu0 0.0
    %3609 = vmatprep.subr.mxu0 0.0
    %3610 = vmatpush1.msra.mxu0 0.0
    %3611 = vmatprep.subr.mxu0 0.0
    %3612 = vmatpush1.msra.mxu0 0.0
    %3613 = vmatprep.subr.mxu0 0.0
    %3614 = vmatpush1.msra.mxu0 0.0
    %3615 = vmatprep.subr.mxu0 0.0
    %3616 = vmatpush1.msra.mxu0 0.0
    %3617 = vmatprep.subr.mxu0 0.0
    %3618 = vmatpush1.msra.mxu0 0.0
    %3619 = vmatprep.subr.mxu0 0.0
    %3620 = vmatpush1.msra.mxu0 0.0
    %3621 = vmatprep.subr.mxu0 0.0
    %3622 = vmatpush1.msra.mxu0 0.0
    %3623 = vmatprep.subr.mxu0 0.0
    %3624 = vmatpush1.msra.mxu0 0.0
    %3625 = vmatprep.subr.mxu0 0.0
    %3626 = vmatpush1.msra.mxu0 0.0
    %3627 = vmatprep.subr.mxu0 0.0
    %3628 = vmatpush1.msra.mxu0 0.0
    %3629 = vmatprep.subr.mxu0 0.0
    %3630 = vmatpush1.msra.mxu0 0.0
    %3631 = vmatprep.subr.mxu0 0.0
    %3632 = vmatpush1.msra.mxu0 0.0
    %3633 = vmatprep.subr.mxu0 0.0
    %3634 = vmatpush1.msra.mxu0 0.0
    %3635 = vmatprep.subr.mxu0 0.0
    %3636 = vmatpush1.msra.mxu0 0.0
    %3637 = vmatprep.subr.mxu0 0.0
    %3638 = vmatpush1.msra.mxu0 0.0
    %3639 = vmatprep.subr.mxu0 0.0
    %3640 = vmatpush1.msra.mxu0 0.0
    %3641 = vmatprep.subr.mxu0 0.0
    %3642 = vmatpush1.msra.mxu0 0.0
    %3643 = vmatprep.subr.mxu0 0.0
    %3644 = vmatpush1.msra.mxu0 0.0
    %3645 = vmatprep.subr.mxu0 0.0
    %3646 = vmatpush1.msra.mxu0 0.0
    %3647 = vmatprep.subr.mxu0 0.0
    %3648 = vmatpush1.msra.mxu0 0.0
    %3649 = vmatprep.subr.mxu0 0.0
    %3650 = vmatpush1.msra.mxu0 0.0
    %3651 = vmatprep.mubr.f32.mxu0 0.0
    %3652 = vmatmul.mubr.f32.gmra.mrb[0].mxu0 %v3582
    %v3653 = vpop.f32.mrb[0].mxu0
    %v3654 = vadd.f32 %v3580, %v3653
    %v3655 = vpop.f32.mrb[0].mxu0
    %3656 = vmatprep.mubr.f32.mxu0 0.0
    %3657 = vmatmul.mubr.f32.gmra.mrb[0].mxu0 %v3585
    %v3658 = vpop.f32.mrb[0].mxu0
    %v3659 = vadd.f32 %v3580, %v3658
    %v3660 = vpop.f32.mrb[0].mxu0
    %3661 = vdwg.mxu0
    %v3662 = vadd.f32 %v3474, %v3654
    %v3663 = vadd.f32 %v3475, %v3659
    %v3664 = vld [vmem:[#allocation5 + $0x1b0] sm:$0x1]
    %v3665 = vld [vmem:[#allocation5 + $0x1b8] sm:$0x1]
    %v3666 = vsel %vm51, %v3662, 0.0
    %3667 = vadd.xlane.f32.xlu0 %v3666
    %v3668 = vpop.xlane.xlu0 %3667
    %v3669 = vsel %vm51, %v3663, 0.0
    %3670 = vadd.xlane.f32.xlu0 %v3669
    %v3671 = vpop.xlane.xlu0 %3670
    %v3672 = vmul.f32 %v3668, %v1608
    %v3673 = vmul.f32 %v3671, %v1608
    %v3674 = vmul.f32 %v3662, %v3662
    %v3675 = vmul.f32 %v3663, %v3663
    %v3676 = vsel %vm51, %v3674, 0.0
    %3677 = vadd.xlane.f32.xlu0 %v3676
    %v3678 = vpop.xlane.xlu0 %3677
    %v3679 = vsel %vm51, %v3675, 0.0
    %3680 = vadd.xlane.f32.xlu0 %v3679
    %v3681 = vpop.xlane.xlu0 %3680
    %v3682 = vmul.f32 %v3678, %v1608
    %v3683 = vmul.f32 %v3681, %v1608
    %v3684 = vmul.f32 %v3672, %v3672
    %v3685 = vmul.f32 %v3673, %v3673
    %v3686 = vsub.f32 %v3682, %v3684
    %v3687 = vsub.f32 %v3683, %v3685
    %v3688 = vsub.f32 %v3662, %v3672
    %v3689 = vsub.f32 %v3663, %v3673
    %v3690 = vadd.f32 %v3686, 1e-05
    %v3691 = vadd.f32 %v3687, 1e-05
    %v3692 = vrsqrt.pop %v3690
    %v3693 = vrsqrt.pop %v3691
    %v3694 = vmul.f32 %v3688, %v3692
    %v3695 = vmul.f32 %v3689, %v3693
    %v3696 = vlaneseq
    %v3697 = vshrl.u32 %v3696, 7
    %v3698 = vsub.s32 0, %v3697
    %v3699 = vrot.slane %v3664, %v3698
    %v3700 = vmul.f32 %v3694, %v3699
    %v3701 = vmul.f32 %v3695, %v3699
    %v3702 = vlaneseq
    %v3703 = vshrl.u32 %v3702, 7
    %v3704 = vsub.s32 0, %v3703
    %v3705 = vrot.slane %v3665, %v3704
    %v3706 = vadd.f32 %v3700, %v3705
    %v3707 = vadd.f32 %v3701, %v3705
    %v3708 = vld [vmem:[#allocation5 + $0x1c0] sm:$0x1]
    %v3709 = vld [vmem:[#allocation5 + $0x1c8] sm:$0x1]
    %v3710 = vsel %vm51, %v3706, 0.0
    %3711 = vadd.xlane.f32.xlu0 %v3710
    %v3712 = vpop.xlane.xlu0 %3711
    %v3713 = vsel %vm51, %v3707, 0.0
    %3714 = vadd.xlane.f32.xlu0 %v3713
    %v3715 = vpop.xlane.xlu0 %3714
    %v3716 = vmul.f32 %v3712, %v1608
    %v3717 = vmul.f32 %v3715, %v1608
    %v3718 = vmul.f32 %v3706, %v3706
    %v3719 = vmul.f32 %v3707, %v3707
    %v3720 = vsel %vm51, %v3718, 0.0
    %3721 = vadd.xlane.f32.xlu0 %v3720
    %v3722 = vpop.xlane.xlu0 %3721
    %v3723 = vsel %vm51, %v3719, 0.0
    %3724 = vadd.xlane.f32.xlu0 %v3723
    %v3725 = vpop.xlane.xlu0 %3724
    %v3726 = vmul.f32 %v3722, %v1608
    %v3727 = vmul.f32 %v3725, %v1608
    %v3728 = vmul.f32 %v3716, %v3716
    %v3729 = vmul.f32 %v3717, %v3717
    %v3730 = vsub.f32 %v3726, %v3728
    %v3731 = vsub.f32 %v3727, %v3729
    %v3732 = vsub.f32 %v3706, %v3716
    %v3733 = vsub.f32 %v3707, %v3717
    %v3734 = vadd.f32 %v3730, 1e-05
    %v3735 = vadd.f32 %v3731, 1e-05
    %v3736 = vrsqrt.pop %v3734
    %v3737 = vrsqrt.pop %v3735
    %v3738 = vmul.f32 %v3732, %v3736
    %v3739 = vmul.f32 %v3733, %v3737
    %v3740 = vlaneseq
    %v3741 = vshrl.u32 %v3740, 7
    %v3742 = vsub.s32 0, %v3741
    %v3743 = vrot.slane %v3708, %v3742
    %v3744 = vmul.f32 %v3738, %v3743
    %v3745 = vmul.f32 %v3739, %v3743
    %v3746 = vlaneseq
    %v3747 = vshrl.u32 %v3746, 7
    %v3748 = vsub.s32 0, %v3747
    %v3749 = vrot.slane %v3709, %v3748
    %v3750 = vadd.f32 %v3744, %v3749
    %v3751 = vadd.f32 %v3745, %v3749
    %3752 = vst.msk [vmem:[#allocation7] sm:$0xff] %vm51, %v3750
    %3753 = vst.msk [vmem:[#allocation7 + $0x8] sm:$0xff] %vm51, %v3751
    // Predicated region
    $region18: #{tpu_custom_call.1} parent=1 // pred_check
      _
    $region19: #{tpu_custom_call.1} parent=1 // pred_check_branch
      %3755 = sbr.rel (0) target = $region21
    $region20: #{tpu_custom_call.1} parent=1 // pred_region
      %s3757 = ssub.s32 256, 256
      %3758 = vsyncadd [#allocation4], %s3757
      %s3759 = sshll.u32 [#allocation7], 4
      %s3760 = int_to_ptr.vmem [resolvable:$true] %s3759
      %3765 = dma.vmem_to_hbm [thread:$0]  %s3760, 256, %s2, [#allocation4], 128, 128, 8
    $region21: #{tpu_custom_call.1} parent=1 // pred_fallthru
      _
    // Predicated region
    $region22: #{tpu_custom_call.1} parent=1 // pred_check
      _
    $region23: #{tpu_custom_call.1} parent=1 // pred_check_branch
      %3767 = sbr.rel (0) target = $region25
    $region24: #{tpu_custom_call.1} parent=1 // pred_region
      %3768 = dma.done [#allocation4], 256
    $region25: #{tpu_custom_call.1} parent=1 // pred_fallthru
      _
    %3769 = vsyncpa [#allocation3], 1
    %3770 = vsyncpa [#allocation6], 1
    %3771 = vsyncpa [#allocation4], 1

</llo_original>
